<compile_context>
chip_gen: v7x
topology: tpu7x:2x2x1
jax: 0.10.0
libtpu: 0.0.40
codegen_flags: <defaults>
</compile_context>

<pallas_src>
from functools import partial

import jax
import jax.numpy as jnp
from jax.experimental import pallas as pl
from jax.experimental.pallas import tpu as pltpu


def _round_up(v, m):
    return -(-v // m) * m


def convlstm_cell_kernel(x_ref, h_ref, c_ref, w_ref, shift_ref,
                         h_out_ref, c_out_ref, buf_ref, *,
                         H, W, Ch, KH, KW, P, OFF):
    """One batch element per grid step.

    x_ref     : (1, H, W, Cin)     bf16  input frame
    h_ref     : (1, H, W, Ch)      bf16  previous hidden state
    c_ref     : (1, H, W, Ch)      f32   previous cell state
    w_ref     : (KW, KH*C, 4*Ch)   bf16  conv weights (BN scale folded in,
                                         KH taps stacked on the contraction)
    shift_ref : (1, 4*Ch)          f32   folded conv bias + BN shift
    h_out_ref : (1, H, W, Ch)      f32
    c_out_ref : (1, H, W, Ch)      f32   (aliases the c input buffer)
    buf_ref   : (NB, P, C)         bf16  zero-padded staging scratch
    """
    G4 = 4 * Ch
    NB, _, C = buf_ref.shape
    ph, pw = (KH - 1) // 2, (KW - 1) // 2
    M = H * P                       # conv output rows at padded row pitch P
    stk_len = M + KW - 1

    # -- stage cat([x, h]) into the zero-padded buffer (no wrapper concat/pad) --
    buf_ref[...] = jnp.zeros_like(buf_ref)
    comb = jnp.concatenate([x_ref[0], h_ref[0]], axis=-1)          # (H, W, C)
    # image row hh lives at rows [OFF, OFF+W) of padded row-block (hh + ph):
    # flat row index of padded pixel (hp, wp) is  hp*P + wp + (OFF - pw).
    buf_ref[ph:ph + H, OFF:OFF + W, :] = comb

    # flat view of the padded image (layout-preserving: P is a multiple of 16)
    buf = buf_ref[...].reshape(NB * P, C)

    # -- stack the KH row-shifted views on the channel axis: K = KH*C ----------
    # (row offsets dh*P are tile aligned, so these slices are cheap)
    stk = jnp.concatenate(
        [buf[dh * P:dh * P + stk_len, :] for dh in range(KH)], axis=-1)

    # -- conv = KW fat matmuls (bf16 x bf16, f32 accumulation on the MXU) ------
    acc = jnp.dot(stk[0:M, :], w_ref[0], preferred_element_type=jnp.float32)
    for dw in range(1, KW):
        acc = acc + jnp.dot(stk[dw:dw + M, :], w_ref[dw],
                            preferred_element_type=jnp.float32)

    # -- epilogue: trim to valid pixels, folded bias/BN, LSTM gates ------------
    off = OFF - pw
    cc = acc.reshape(H, P, G4)[:, off:off + W, :] + shift_ref[...]  # (H, W, 4Ch)
    # Dropout: identity in eval mode.

    # full-width transcendentals (EUP); tanh quadrant selected by lane index
    lane = jax.lax.broadcasted_iota(jnp.int32, cc.shape, 2)
    act = jnp.where(lane >= 3 * Ch, jnp.tanh(cc), jax.nn.sigmoid(cc))

    i = act[:, :, 0 * Ch:1 * Ch]
    f = act[:, :, 1 * Ch:2 * Ch]
    o = act[:, :, 2 * Ch:3 * Ch]
    g = act[:, :, 3 * Ch:4 * Ch]

    c_cur = c_ref[0]                                      # (H, W, Ch) f32
    c_next = f * c_cur + i * g
    h_next = o * jnp.tanh(c_next)
    c_out_ref[0] = c_next
    h_out_ref[0] = h_next


@jax.jit
def convlstm_cell_forward(x_nchw, h_nchw, c_nchw, w_oihw, conv_bias,
                          bn_gamma, bn_beta, bn_mean, bn_var, eps=1e-5):
    """NCHW glue, BN/bias folding, weight restack, pallas_call."""
    B, Cin, H, W = x_nchw.shape
    Ch = h_nchw.shape[1]
    O, C, KH, KW = w_oihw.shape
    assert O == 4 * Ch and C == Cin + Ch
    assert KH % 2 == 1 and KW % 2 == 1, "even kernels (pad_last_dim) unsupported"
    G4 = 4 * Ch

    # NCHW -> NHWC; conv operands in bf16, cell state stays f32.
    x = jnp.transpose(x_nchw, (0, 2, 3, 1)).astype(jnp.bfloat16)
    h = jnp.transpose(h_nchw, (0, 2, 3, 1)).astype(jnp.bfloat16)
    c = jnp.transpose(c_nchw, (0, 2, 3, 1)).astype(jnp.float32)

    # Fold eval-mode BatchNorm and the conv bias into weights + one shift.
    scale = bn_gamma / jnp.sqrt(bn_var + eps)
    shift = (bn_beta - bn_mean * scale + conv_bias * scale).reshape(1, G4)
    shift = shift.astype(jnp.float32)
    w_fold = w_oihw * scale[:, None, None, None]                    # OIHW
    # (O, C, KH, KW) -> (KW, KH, C, O) -> (KW, KH*C, O): KH stacked on K.
    w_stk = jnp.transpose(w_fold, (3, 2, 1, 0)).reshape(KW, KH * C, G4)
    w_stk = w_stk.astype(jnp.bfloat16)

    # Geometry of the in-kernel padded staging buffer (bf16 tile aligned).
    pw = (KW - 1) // 2
    OFF = 16                                   # image row offset inside a block
    assert pw <= OFF and KW - 1 <= OFF
    P = _round_up(OFF + W, 16)                 # padded row pitch
    stk_len = H * P + KW - 1
    NB = max(H + KH - 1, -(-((KH - 1) * P + stk_len) // P))

    kernel = partial(convlstm_cell_kernel,
                     H=H, W=W, Ch=Ch, KH=KH, KW=KW, P=P, OFF=OFF)

    h_next, c_next = pl.pallas_call(
        kernel,
        grid=(B,),
        in_specs=[
            pl.BlockSpec((1, H, W, Cin), lambda b: (b, 0, 0, 0)),   # x   bf16
            pl.BlockSpec((1, H, W, Ch), lambda b: (b, 0, 0, 0)),    # h   bf16
            pl.BlockSpec((1, H, W, Ch), lambda b: (b, 0, 0, 0)),    # c   f32
            pl.BlockSpec((KW, KH * C, G4), lambda b: (0, 0, 0)),    # weights
            pl.BlockSpec((1, G4), lambda b: (0, 0)),                # shift
        ],
        out_specs=(
            pl.BlockSpec((1, H, W, Ch), lambda b: (b, 0, 0, 0)),    # h_next
            pl.BlockSpec((1, H, W, Ch), lambda b: (b, 0, 0, 0)),    # c_next
        ),
        out_shape=(
            jax.ShapeDtypeStruct((B, H, W, Ch), jnp.float32),
            jax.ShapeDtypeStruct((B, H, W, Ch), jnp.float32),
        ),
        scratch_shapes=[pltpu.VMEM((NB, P, C), jnp.bfloat16)],
        input_output_aliases={2: 1},            # reuse c's buffer for c_next
        compiler_params=pltpu.CompilerParams(
            dimension_semantics=("parallel",),
            vmem_limit_bytes=32 * 1024 * 1024),
    )(x, h, c, w_stk, shift)

    return (jnp.transpose(h_next, (0, 3, 1, 2)),
            jnp.transpose(c_next, (0, 3, 1, 2)))


def convlstm_cell_reference(x, h, c, w, b, gamma, beta, mean, var,
                            eps=1e-5, bf16_conv_path=False):
    """Pure-JAX NCHW reference.  bf16_conv_path=True mirrors the kernel's
    quantization (BN scale folded into bf16 weights, bf16 activations, f32
    accumulation); False follows the PyTorch module op-for-op in f32."""
    Ch = h.shape[1]
    kh, kw = w.shape[2], w.shape[3]
    pad = [((kh - 1) // 2,) * 2, ((kw - 1) // 2,) * 2]
    dn = ('NCHW', 'OIHW', 'NCHW')
    if bf16_conv_path:
        scale = gamma / jnp.sqrt(var + eps)
        shift = beta - mean * scale + b * scale
        wc = (w * scale[:, None, None, None]).astype(jnp.bfloat16)
        wc = wc.astype(jnp.float32)
        comb = jnp.concatenate([x, h], axis=1).astype(jnp.bfloat16)
        comb = comb.astype(jnp.float32)
        cc = jax.lax.conv_general_dilated(
            comb, wc, (1, 1), pad, dimension_numbers=dn,
            precision=jax.lax.Precision.HIGHEST)
        cc = cc + shift.reshape(1, -1, 1, 1)
    else:
        comb = jnp.concatenate([x, h], axis=1)
        cc = jax.lax.conv_general_dilated(
            comb, w, (1, 1), pad, dimension_numbers=dn,
            precision=jax.lax.Precision.HIGHEST)
        cc = cc + b.reshape(1, -1, 1, 1)
        cc = ((cc - mean.reshape(1, -1, 1, 1))
              / jnp.sqrt(var.reshape(1, -1, 1, 1) + eps)
              * gamma.reshape(1, -1, 1, 1) + beta.reshape(1, -1, 1, 1))
    i = jax.nn.sigmoid(cc[:, 0 * Ch:1 * Ch])
    f = jax.nn.sigmoid(cc[:, 1 * Ch:2 * Ch])
    o = jax.nn.sigmoid(cc[:, 2 * Ch:3 * Ch])
    g = jnp.tanh(cc[:, 3 * Ch:4 * Ch])
    c_next = f * c + i * g
    h_next = o * jnp.tanh(c_next)
    return h_next, c_next


if __name__ == "__main__":
    # Small shapes consistent with the module.
    B, Cin, Chid, H, W = 2, 4, 32, 16, 16
    KH = KW = 3

    key = jax.random.PRNGKey(0)
    keys = jax.random.split(key, 9)

    x = jax.random.normal(keys[0], (B, Cin, H, W), jnp.float32)       # NCHW
    h_cur = jax.random.normal(keys[1], (B, Chid, H, W), jnp.float32)
    c_cur = jax.random.normal(keys[2], (B, Chid, H, W), jnp.float32)

    # Conv2d(in=Cin+Chid, out=4*Chid, k=3, padding=1, bias=True), OIHW weight.
    fan_in = (Cin + Chid) * KH * KW
    bound = float(fan_in) ** -0.5
    w = jax.random.uniform(keys[3], (4 * Chid, Cin + Chid, KH, KW),
                           jnp.float32, -bound, bound)
    b = jax.random.uniform(keys[4], (4 * Chid,), jnp.float32, -bound, bound)

    # BatchNorm2d(4*Chid) in eval mode with non-trivial affine / running stats.
    gamma = jax.random.uniform(keys[5], (4 * Chid,), jnp.float32, 0.8, 1.2)
    beta = 0.1 * jax.random.normal(keys[6], (4 * Chid,), jnp.float32)
    run_mean = 0.1 * jax.random.normal(keys[7], (4 * Chid,), jnp.float32)
    run_var = jax.random.uniform(keys[8], (4 * Chid,), jnp.float32, 0.5, 1.5)

    h_next, c_next = convlstm_cell_forward(
        x, h_cur, c_cur, w, b, gamma, beta, run_mean, run_var)
    jax.block_until_ready((h_next, c_next))

    assert h_next.shape == (B, Chid, H, W) and c_next.shape == (B, Chid, H, W)

    # Tight check against a reference that mirrors the kernel's bf16 conv path.
    h_q, c_q = convlstm_cell_reference(
        x, h_cur, c_cur, w, b, gamma, beta, run_mean, run_var,
        bf16_conv_path=True)
    assert jnp.allclose(h_next, h_q, atol=2e-3, rtol=2e-3), \
        float(jnp.max(jnp.abs(h_next - h_q)))
    assert jnp.allclose(c_next, c_q, atol=2e-3, rtol=2e-3), \
        float(jnp.max(jnp.abs(c_next - c_q)))

    # Looser check against the exact f32 eval-mode module semantics.
    h_f, c_f = convlstm_cell_reference(
        x, h_cur, c_cur, w, b, gamma, beta, run_mean, run_var)
    assert jnp.allclose(h_next, h_f, atol=5e-2, rtol=5e-2)
    assert jnp.allclose(c_next, c_f, atol=5e-2, rtol=5e-2)

    print("KERNEL_OK")
</pallas_src>

<mosaic_0001>
module attributes {stable_mosaic.version = 11 : i64} {
  func.func @convlstm_cell_kernel(%arg0: i32, %arg1: memref<1x16x16x4xbf16, #tpu.memory_space<vmem>>, %arg2: memref<1x16x16x32xbf16, #tpu.memory_space<vmem>>, %arg3: memref<1x16x16x32xf32, #tpu.memory_space<vmem>>, %arg4: memref<3x108x128xbf16, #tpu.memory_space<vmem>>, %arg5: memref<1x128xf32, #tpu.memory_space<vmem>>, %arg6: memref<1x16x16x32xf32, #tpu.memory_space<vmem>>, %arg7: memref<1x16x16x32xf32, #tpu.memory_space<vmem>>, %arg8: memref<19x32x36xbf16, #tpu.memory_space<vmem>>) attributes {dimension_semantics = [#tpu.dimension_semantics<parallel>], iteration_bounds = array<i64: 2>, scalar_prefetch = 0 : i64, scratch_operands = 1 : i64, tpu.core_type = #tpu.core_type<tc>, window_params = [{transform_indices = @transform_0, window_bounds = array<i64: 1, 16, 16, 4>}, {transform_indices = @transform_1, window_bounds = array<i64: 1, 16, 16, 32>}, {transform_indices = @transform_2, window_bounds = array<i64: 1, 16, 16, 32>}, {pipeline_mode = #tpu.pipeline_mode<synchronous>, transform_indices = @transform_3, window_bounds = array<i64: 3, 108, 128>}, {pipeline_mode = #tpu.pipeline_mode<synchronous>, transform_indices = @transform_4, window_bounds = array<i64: 1, 128>}, {transform_indices = @transform_5, window_bounds = array<i64: 1, 16, 16, 32>}, {transform_indices = @transform_6, window_bounds = array<i64: 1, 16, 16, 32>}]} {
    %cst = arith.constant 0.000000e+00 : bf16
    %0 = vector.broadcast %cst : bf16 to vector<19x32x36xbf16>
    %c0 = arith.constant 0 : index
    %c0_0 = arith.constant 0 : index
    %c0_1 = arith.constant 0 : index
    %1 = vector.load %arg8[%c0, %c0_0, %c0_1] : memref<19x32x36xbf16, #tpu.memory_space<vmem>>, vector<19x32x36xbf16>
    tpu.vector_store %arg8[%c0, %c0_0, %c0_1], %0 {strides = array<i32>} : memref<19x32x36xbf16, #tpu.memory_space<vmem>>, vector<19x32x36xbf16>,
    %c0_2 = arith.constant 0 : index
    %c0_3 = arith.constant 0 : index
    %c0_4 = arith.constant 0 : index
    %c0_5 = arith.constant 0 : index
    %2 = vector.load %arg1[%c0_2, %c0_3, %c0_4, %c0_5] : memref<1x16x16x4xbf16, #tpu.memory_space<vmem>>, vector<1x16x16x4xbf16>
    %3 = vector.shape_cast %2 : vector<1x16x16x4xbf16> to vector<16x16x4xbf16>
    %c0_6 = arith.constant 0 : index
    %c0_7 = arith.constant 0 : index
    %c0_8 = arith.constant 0 : index
    %c0_9 = arith.constant 0 : index
    %4 = vector.load %arg2[%c0_6, %c0_7, %c0_8, %c0_9] : memref<1x16x16x32xbf16, #tpu.memory_space<vmem>>, vector<1x16x16x32xbf16>
    %5 = vector.shape_cast %4 : vector<1x16x16x32xbf16> to vector<16x16x32xbf16>
    %6 = tpu.concatenate %3, %5 in 2 : vector<16x16x4xbf16>, vector<16x16x32xbf16> -> vector<16x16x36xbf16>
    %c1 = arith.constant 1 : index
    %c16 = arith.constant 16 : index
    %c0_10 = arith.constant 0 : index
    %7 = vector.load %arg8[%c1, %c16, %c0_10] : memref<19x32x36xbf16, #tpu.memory_space<vmem>>, vector<16x16x36xbf16>
    tpu.vector_store %arg8[%c1, %c16, %c0_10], %6 {strides = array<i32>} : memref<19x32x36xbf16, #tpu.memory_space<vmem>>, vector<16x16x36xbf16>,
    %c0_11 = arith.constant 0 : index
    %c0_12 = arith.constant 0 : index
    %c0_13 = arith.constant 0 : index
    %8 = vector.load %arg8[%c0_11, %c0_12, %c0_13] : memref<19x32x36xbf16, #tpu.memory_space<vmem>>, vector<19x32x36xbf16>
    %9 = vector.shape_cast %8 : vector<19x32x36xbf16> to vector<608x36xbf16>
    %10 = vector.extract_strided_slice %9 {offsets = [0, 0], sizes = [514, 36], strides = [1, 1]} : vector<608x36xbf16> to vector<514x36xbf16>
    %11 = vector.extract_strided_slice %9 {offsets = [32, 0], sizes = [514, 36], strides = [1, 1]} : vector<608x36xbf16> to vector<514x36xbf16>
    %12 = vector.extract_strided_slice %9 {offsets = [64, 0], sizes = [514, 36], strides = [1, 1]} : vector<608x36xbf16> to vector<514x36xbf16>
    %13 = tpu.concatenate %10, %11, %12 in 1 : vector<514x36xbf16>, vector<514x36xbf16>, vector<514x36xbf16> -> vector<514x108xbf16>
    %14 = vector.extract_strided_slice %13 {offsets = [0, 0], sizes = [512, 108], strides = [1, 1]} : vector<514x108xbf16> to vector<512x108xbf16>
    %c0_14 = arith.constant 0 : index
    %c0_15 = arith.constant 0 : index
    %c0_16 = arith.constant 0 : index
    %15 = vector.load %arg4[%c0_14, %c0_15, %c0_16] : memref<3x108x128xbf16, #tpu.memory_space<vmem>>, vector<1x108x128xbf16>
    %16 = vector.shape_cast %15 : vector<1x108x128xbf16> to vector<108x128xbf16>
    %cst_17 = arith.constant dense<0.000000e+00> : vector<512x128xf32>
    %17 = tpu.matmul %14, %16, %cst_17 {dimension_numbers = #tpu.dot_dimension_numbers<[1], [0], [0], [1], [0, 0, 1, 1], [], []>} : vector<512x108xbf16>, vector<108x128xbf16>, vector<512x128xf32> -> vector<512x128xf32>
    %18 = vector.extract_strided_slice %13 {offsets = [1, 0], sizes = [512, 108], strides = [1, 1]} : vector<514x108xbf16> to vector<512x108xbf16>
    %c1_18 = arith.constant 1 : index
    %c0_19 = arith.constant 0 : index
    %c0_20 = arith.constant 0 : index
    %19 = vector.load %arg4[%c1_18, %c0_19, %c0_20] : memref<3x108x128xbf16, #tpu.memory_space<vmem>>, vector<1x108x128xbf16>
    %20 = vector.shape_cast %19 : vector<1x108x128xbf16> to vector<108x128xbf16>
    %cst_21 = arith.constant dense<0.000000e+00> : vector<512x128xf32>
    %21 = tpu.matmul %18, %20, %cst_21 {dimension_numbers = #tpu.dot_dimension_numbers<[1], [0], [0], [1], [0, 0, 1, 1], [], []>} : vector<512x108xbf16>, vector<108x128xbf16>, vector<512x128xf32> -> vector<512x128xf32>
    %22 = arith.addf %17, %21 : vector<512x128xf32>
    %23 = vector.extract_strided_slice %13 {offsets = [2, 0], sizes = [512, 108], strides = [1, 1]} : vector<514x108xbf16> to vector<512x108xbf16>
    %c2 = arith.constant 2 : index
    %c0_22 = arith.constant 0 : index
    %c0_23 = arith.constant 0 : index
    %24 = vector.load %arg4[%c2, %c0_22, %c0_23] : memref<3x108x128xbf16, #tpu.memory_space<vmem>>, vector<1x108x128xbf16>
    %25 = vector.shape_cast %24 : vector<1x108x128xbf16> to vector<108x128xbf16>
    %cst_24 = arith.constant dense<0.000000e+00> : vector<512x128xf32>
    %26 = tpu.matmul %23, %25, %cst_24 {dimension_numbers = #tpu.dot_dimension_numbers<[1], [0], [0], [1], [0, 0, 1, 1], [], []>} : vector<512x108xbf16>, vector<108x128xbf16>, vector<512x128xf32> -> vector<512x128xf32>
    %27 = arith.addf %22, %26 : vector<512x128xf32>
    %28 = vector.shape_cast %27 : vector<512x128xf32> to vector<16x32x128xf32>
    %29 = vector.extract_strided_slice %28 {offsets = [0, 15, 0], sizes = [16, 16, 128], strides = [1, 1, 1]} : vector<16x32x128xf32> to vector<16x16x128xf32>
    %c0_25 = arith.constant 0 : index
    %c0_26 = arith.constant 0 : index
    %30 = vector.load %arg5[%c0_25, %c0_26] : memref<1x128xf32, #tpu.memory_space<vmem>>, vector<1x128xf32>
    %31 = vector.shape_cast %30 : vector<1x128xf32> to vector<1x1x128xf32>
    %32 = vector.broadcast %31 : vector<1x1x128xf32> to vector<16x16x128xf32>
    %33 = arith.addf %29, %32 : vector<16x16x128xf32>
    %34 = tpu.iota {dimensions = array<i32: 2>} : vector<16x16x128xi32>
    %c96_i32 = arith.constant 96 : i32
    %35 = vector.broadcast %c96_i32 : i32 to vector<16x16x128xi32>
    %36 = arith.cmpi sge, %34, %35 : vector<16x16x128xi32>
    %37 = math.tanh %33 : vector<16x16x128xf32>
    %38 = arith.negf %33 : vector<16x16x128xf32>
    %39 = math.exp %38 : vector<16x16x128xf32>
    %cst_27 = arith.constant 1.000000e+00 : f32
    %40 = vector.broadcast %cst_27 : f32 to vector<16x16x128xf32>
    %41 = arith.addf %40, %39 : vector<16x16x128xf32>
    %42 = arith.divf %40, %41 : vector<16x16x128xf32>
    %43 = arith.select %36, %37, %42 : vector<16x16x128xi1>, vector<16x16x128xf32>
    %44 = vector.extract_strided_slice %43 {offsets = [0, 0, 0], sizes = [16, 16, 32], strides = [1, 1, 1]} : vector<16x16x128xf32> to vector<16x16x32xf32>
    %45 = vector.extract_strided_slice %43 {offsets = [0, 0, 32], sizes = [16, 16, 32], strides = [1, 1, 1]} : vector<16x16x128xf32> to vector<16x16x32xf32>
    %46 = vector.extract_strided_slice %43 {offsets = [0, 0, 64], sizes = [16, 16, 32], strides = [1, 1, 1]} : vector<16x16x128xf32> to vector<16x16x32xf32>
    %47 = vector.extract_strided_slice %43 {offsets = [0, 0, 96], sizes = [16, 16, 32], strides = [1, 1, 1]} : vector<16x16x128xf32> to vector<16x16x32xf32>
    %c0_28 = arith.constant 0 : index
    %c0_29 = arith.constant 0 : index
    %c0_30 = arith.constant 0 : index
    %c0_31 = arith.constant 0 : index
    %48 = vector.load %arg3[%c0_28, %c0_29, %c0_30, %c0_31] : memref<1x16x16x32xf32, #tpu.memory_space<vmem>>, vector<1x16x16x32xf32>
    %49 = vector.shape_cast %48 : vector<1x16x16x32xf32> to vector<16x16x32xf32>
    %50 = arith.mulf %45, %49 : vector<16x16x32xf32>
    %51 = arith.mulf %44, %47 : vector<16x16x32xf32>
    %52 = arith.addf %50, %51 : vector<16x16x32xf32>
    %53 = math.tanh %52 : vector<16x16x32xf32>
    %54 = arith.mulf %46, %53 : vector<16x16x32xf32>
    %c0_32 = arith.constant 0 : index
    %c0_33 = arith.constant 0 : index
    %c0_34 = arith.constant 0 : index
    %c0_35 = arith.constant 0 : index
    %55 = vector.load %arg7[%c0_32, %c0_33, %c0_34, %c0_35] : memref<1x16x16x32xf32, #tpu.memory_space<vmem>>, vector<1x16x16x32xf32>
    %56 = vector.shape_cast %55 : vector<1x16x16x32xf32> to vector<16x16x32xf32>
    %57 = vector.shape_cast %52 : vector<16x16x32xf32> to vector<1x16x16x32xf32>
    tpu.vector_store %arg7[%c0_32, %c0_33, %c0_34, %c0_35], %57 {strides = array<i32>} : memref<1x16x16x32xf32, #tpu.memory_space<vmem>>, vector<1x16x16x32xf32>,
    %c0_36 = arith.constant 0 : index
    %c0_37 = arith.constant 0 : index
    %c0_38 = arith.constant 0 : index
    %c0_39 = arith.constant 0 : index
    %58 = vector.load %arg6[%c0_36, %c0_37, %c0_38, %c0_39] : memref<1x16x16x32xf32, #tpu.memory_space<vmem>>, vector<1x16x16x32xf32>
    %59 = vector.shape_cast %58 : vector<1x16x16x32xf32> to vector<16x16x32xf32>
    %60 = vector.shape_cast %54 : vector<16x16x32xf32> to vector<1x16x16x32xf32>
    tpu.vector_store %arg6[%c0_36, %c0_37, %c0_38, %c0_39], %60 {strides = array<i32>} : memref<1x16x16x32xf32, #tpu.memory_space<vmem>>, vector<1x16x16x32xf32>,
    return
  }
  func.func @transform_0(%arg0: i32) -> (i32, i32, i32, i32) {
    %c0_i32 = arith.constant 0 : i32
    %c0_i32_0 = arith.constant 0 : i32
    %c0_i32_1 = arith.constant 0 : i32
    %c0_i32_2 = arith.constant 0 : i32
    return %arg0, %c0_i32, %c0_i32_0, %c0_i32_1 : i32, i32, i32, i32
  }
  func.func @transform_1(%arg0: i32) -> (i32, i32, i32, i32) {
    %c0_i32 = arith.constant 0 : i32
    %c0_i32_0 = arith.constant 0 : i32
    %c0_i32_1 = arith.constant 0 : i32
    %c0_i32_2 = arith.constant 0 : i32
    return %arg0, %c0_i32, %c0_i32_0, %c0_i32_1 : i32, i32, i32, i32
  }
  func.func @transform_2(%arg0: i32) -> (i32, i32, i32, i32) {
    %c0_i32 = arith.constant 0 : i32
    %c0_i32_0 = arith.constant 0 : i32
    %c0_i32_1 = arith.constant 0 : i32
    %c0_i32_2 = arith.constant 0 : i32
    return %arg0, %c0_i32, %c0_i32_0, %c0_i32_1 : i32, i32, i32, i32
  }
  func.func @transform_3(%arg0: i32) -> (i32, i32, i32) {
    %c0_i32 = arith.constant 0 : i32
    %c0_i32_0 = arith.constant 0 : i32
    %c0_i32_1 = arith.constant 0 : i32
    %c0_i32_2 = arith.constant 0 : i32
    return %c0_i32, %c0_i32_0, %c0_i32_1 : i32, i32, i32
  }
  func.func @transform_4(%arg0: i32) -> (i32, i32) {
    %c0_i32 = arith.constant 0 : i32
    %c0_i32_0 = arith.constant 0 : i32
    %c0_i32_1 = arith.constant 0 : i32
    return %c0_i32, %c0_i32_0 : i32, i32
  }
  func.func @transform_5(%arg0: i32) -> (i32, i32, i32, i32) {
    %c0_i32 = arith.constant 0 : i32
    %c0_i32_0 = arith.constant 0 : i32
    %c0_i32_1 = arith.constant 0 : i32
    %c0_i32_2 = arith.constant 0 : i32
    return %arg0, %c0_i32, %c0_i32_0, %c0_i32_1 : i32, i32, i32, i32
  }
  func.func @transform_6(%arg0: i32) -> (i32, i32, i32, i32) {
    %c0_i32 = arith.constant 0 : i32
    %c0_i32_0 = arith.constant 0 : i32
    %c0_i32_1 = arith.constant 0 : i32
    %c0_i32_2 = arith.constant 0 : i32
    return %arg0, %c0_i32, %c0_i32_0, %c0_i32_1 : i32, i32, i32, i32
  }
}

</mosaic_0001>

<llo_original>
// kernel: convlstm_cell_forward.1
$region0: #{convlstm_cell_forward.1}
  #allocation0 [shape = 'u32[]', space=smem, size = 0x4, offset = 0x4, fixed_abs, tag = 'smem constant byte address 0x4 - core index']
  #allocation1 [shape = 'u32[144,128]{1,0:T(1,128)}', space=vmem, size = 0x12000, scoped, tag = 'internal scratch']
  #allocation2 [shape = 'bf16[19,32,36]{2,1,0:T(16,128)(2,1)}', space=vmem, size = 0x26000, scoped, tag = 'scratch operand']
  %s0 = inlined_call_operand.vmem [shape: bf16[2,16,16,4], index: 0, kind: input, shape index: {}]
  %s1 = inlined_call_operand.vmem [shape: bf16[2,16,16,32], index: 1, kind: input, shape index: {}]
  %s2 = inlined_call_operand.vmem [shape: f32[2,16,16,32], index: 2, kind: input, shape index: {}, may-alias: {2,6}]
  %s3 = inlined_call_operand.vmem [shape: bf16[3,108,128], index: 3, kind: input, shape index: {}]
  %s4 = inlined_call_operand.vmem [shape: f32[1,128], index: 4, kind: input, shape index: {}]
  %s5 = inlined_call_operand.hbm [shape: f32[2,16,16,32], index: 5, kind: output, shape index: {0}]
  %s6 = inlined_call_operand.vmem [shape: f32[2,16,16,32], index: 6, kind: output, shape index: {1}, may-alias: {2,6}]
  %7 = xla_tuple %s5, %s6
  %s8 = sld [smem:[#allocation0]]
  $region61: #{convlstm_cell_forward.1} parent=0
    _
  %s10 = ssub.s32 1, %s8
  %s11 = scalar_select 0, %s10, %s8
  $region1: #{convlstm_cell_forward.1} parent=0
    #allocation3 [shape = 'u8[262144]{0}', space=vmem, size = 0x40000, scoped, tag = 'output window, operand 0']
    #allocation4 [shape = 's32[2]{0}', space=sflag, size = 0x8, scoped, tag = 'scoped memory for convlstm_cell_forward.1']
    %12 = vsyncpa [#allocation4], 0
    %s13 = scalar_lea.sflag [#allocation4], 1
    %14 = vsyncpa %s13, 0
    loop: start=0, step=1, limit=4
    $region2: #{convlstm_cell_forward.1} parent=1 // loop_pre_header
      _
    $region3: #{convlstm_cell_forward.1} parent=1 // loop_header
      %s16 = sphi 0, %s20
      %p17 = scmp.ge.s32.totalorder %s16, 4
      %s26 = sphi 0, %s28
      %s29 = sphi 0, %s26
      %s30 = sphi 0, %s29
      %s46 = sphi 0, %s30
      %s52 = sphi 0, %s54
      %s55 = sphi 0, %s52
      %s56 = sphi 0, %s55
      %s72 = sphi 0, %s56
      %s78 = sphi 0, %s80
      %s81 = sphi 0, %s78
      %s82 = sphi 0, %s81
      %s98 = sphi 0, %s82
      %s102 = sphi 0, %s102
      %s104 = sphi 0, %s102
      %s105 = sphi 0, %s104
      %s119 = sphi 0, %s105
      %s123 = sphi 0, %s123
      %s125 = sphi 0, %s123
      %s126 = sphi 0, %s125
      %s140 = sphi 0, %s126
      %s146 = sphi 0, %s148
      %s149 = sphi 0, %s146
      %s150 = sphi 0, %s149
      %s166 = sphi 0, %s150
      %s172 = sphi 0, %s174
      %s175 = sphi 0, %s172
      %s176 = sphi 0, %s175
      %s192 = sphi 0, %s176
    $region4: #{convlstm_cell_forward.1} parent=1 // loop_header_branch
      %19 = sbr.rel (%p17) target = $region8
    $region5: #{convlstm_cell_forward.1} parent=1 // loop_body
      %s21 = ssub.s32 %s16, 1
      %s22 = ssub.s32 %s16, 2
      %s23 = sadd.s32 %s16, 1
      %s24 = ssub.s32 %s16, %s23
      %p25 = scmp.eq.s32.totalorder %s24, 0
      %s27 = sadd.s32 %s26, 1
      %s28 = scalar_select %p25, %s26, %s27
      %p31 = pneg %p25
      %p32 = scmp.eq.s32.totalorder %s16, 1
      %p33 = por %p31, %p32
      %p34 = scmp.ne.s32.totalorder %s26, %s29
      %p35 = scmp.eq.s32.totalorder %s16, 0
      %p36 = por %p34, %p35
      %p37 = scmp.ne.s32.totalorder %s26, %s29
      %p38 = scmp.eq.s32.totalorder %s21, 1
      %p39 = por %p37, %p38
      %p40 = scmp.ne.s32.totalorder %s29, %s30
      %p41 = scmp.eq.s32.totalorder %s21, 0
      %p42 = por %p40, %p41
      %p43 = scmp.ne.s32.totalorder %s29, %s30
      %p44 = scmp.eq.s32.totalorder %s22, 1
      %p45 = por %p43, %p44
      %p47 = scmp.ne.s32.totalorder %s30, %s46
      %p48 = scmp.eq.s32.totalorder %s22, 0
      %p49 = por %p47, %p48
      %s50 = ssub.s32 %s16, %s23
      %p51 = scmp.eq.s32.totalorder %s50, 0
      %s53 = sadd.s32 %s52, 1
      %s54 = scalar_select %p51, %s52, %s53
      %p57 = pneg %p51
      %p58 = scmp.eq.s32.totalorder %s16, 1
      %p59 = por %p57, %p58
      %p60 = scmp.ne.s32.totalorder %s52, %s55
      %p61 = scmp.eq.s32.totalorder %s16, 0
      %p62 = por %p60, %p61
      %p63 = scmp.ne.s32.totalorder %s52, %s55
      %p64 = scmp.eq.s32.totalorder %s21, 1
      %p65 = por %p63, %p64
      %p66 = scmp.ne.s32.totalorder %s55, %s56
      %p67 = scmp.eq.s32.totalorder %s21, 0
      %p68 = por %p66, %p67
      %p69 = scmp.ne.s32.totalorder %s55, %s56
      %p70 = scmp.eq.s32.totalorder %s22, 1
      %p71 = por %p69, %p70
      %p73 = scmp.ne.s32.totalorder %s56, %s72
      %p74 = scmp.eq.s32.totalorder %s22, 0
      %p75 = por %p73, %p74
      %s76 = ssub.s32 %s16, %s23
      %p77 = scmp.eq.s32.totalorder %s76, 0
      %s79 = sadd.s32 %s78, 1
      %s80 = scalar_select %p77, %s78, %s79
      %p83 = pneg %p77
      %p84 = scmp.eq.s32.totalorder %s16, 1
      %p85 = por %p83, %p84
      %p86 = scmp.ne.s32.totalorder %s78, %s81
      %p87 = scmp.eq.s32.totalorder %s16, 0
      %p88 = por %p86, %p87
      %p89 = scmp.ne.s32.totalorder %s78, %s81
      %p90 = scmp.eq.s32.totalorder %s21, 1
      %p91 = por %p89, %p90
      %p92 = scmp.ne.s32.totalorder %s81, %s82
      %p93 = scmp.eq.s32.totalorder %s21, 0
      %p94 = por %p92, %p93
      %p95 = scmp.ne.s32.totalorder %s81, %s82
      %p96 = scmp.eq.s32.totalorder %s22, 1
      %p97 = por %p95, %p96
      %p99 = scmp.ne.s32.totalorder %s82, %s98
      %p100 = scmp.eq.s32.totalorder %s22, 0
      %p101 = por %p99, %p100
      %s103 = sadd.s32 %s102, 1
      %p106 = scmp.eq.s32.totalorder %s16, 1
      %p107 = scmp.ne.s32.totalorder %s102, %s104
      %p108 = scmp.eq.s32.totalorder %s16, 0
      %p109 = por %p107, %p108
      %p110 = scmp.ne.s32.totalorder %s102, %s104
      %p111 = scmp.eq.s32.totalorder %s21, 1
      %p112 = por %p110, %p111
      %p113 = scmp.ne.s32.totalorder %s104, %s105
      %p114 = scmp.eq.s32.totalorder %s21, 0
      %p115 = por %p113, %p114
      %p116 = scmp.ne.s32.totalorder %s104, %s105
      %p117 = scmp.eq.s32.totalorder %s22, 1
      %p118 = por %p116, %p117
      %p120 = scmp.ne.s32.totalorder %s105, %s119
      %p121 = scmp.eq.s32.totalorder %s22, 0
      %p122 = por %p120, %p121
      %s124 = sadd.s32 %s123, 1
      %p127 = scmp.eq.s32.totalorder %s16, 1
      %p128 = scmp.ne.s32.totalorder %s123, %s125
      %p129 = scmp.eq.s32.totalorder %s16, 0
      %p130 = por %p128, %p129
      %p131 = scmp.ne.s32.totalorder %s123, %s125
      %p132 = scmp.eq.s32.totalorder %s21, 1
      %p133 = por %p131, %p132
      %p134 = scmp.ne.s32.totalorder %s125, %s126
      %p135 = scmp.eq.s32.totalorder %s21, 0
      %p136 = por %p134, %p135
      %p137 = scmp.ne.s32.totalorder %s125, %s126
      %p138 = scmp.eq.s32.totalorder %s22, 1
      %p139 = por %p137, %p138
      %p141 = scmp.ne.s32.totalorder %s126, %s140
      %p142 = scmp.eq.s32.totalorder %s22, 0
      %p143 = por %p141, %p142
      %s144 = ssub.s32 %s16, %s23
      %p145 = scmp.eq.s32.totalorder %s144, 0
      %s147 = sadd.s32 %s146, 1
      %s148 = scalar_select %p145, %s146, %s147
      %p151 = pneg %p145
      %p152 = scmp.eq.s32.totalorder %s16, 1
      %p153 = por %p151, %p152
      %p154 = scmp.ne.s32.totalorder %s146, %s149
      %p155 = scmp.eq.s32.totalorder %s16, 0
      %p156 = por %p154, %p155
      %p157 = scmp.ne.s32.totalorder %s146, %s149
      %p158 = scmp.eq.s32.totalorder %s21, 1
      %p159 = por %p157, %p158
      %p160 = scmp.ne.s32.totalorder %s149, %s150
      %p161 = scmp.eq.s32.totalorder %s21, 0
      %p162 = por %p160, %p161
      %p163 = scmp.ne.s32.totalorder %s149, %s150
      %p164 = scmp.eq.s32.totalorder %s22, 1
      %p165 = por %p163, %p164
      %p167 = scmp.ne.s32.totalorder %s150, %s166
      %p168 = scmp.eq.s32.totalorder %s22, 0
      %p169 = por %p167, %p168
      %s170 = ssub.s32 %s16, %s23
      %p171 = scmp.eq.s32.totalorder %s170, 0
      %s173 = sadd.s32 %s172, 1
      %s174 = scalar_select %p171, %s172, %s173
      %p177 = pneg %p171
      %p178 = scmp.eq.s32.totalorder %s16, 1
      %p179 = por %p177, %p178
      %p180 = scmp.ne.s32.totalorder %s172, %s175
      %p181 = scmp.eq.s32.totalorder %s16, 0
      %p182 = por %p180, %p181
      %p183 = scmp.ne.s32.totalorder %s172, %s175
      %p184 = scmp.eq.s32.totalorder %s21, 1
      %p185 = por %p183, %p184
      %p186 = scmp.ne.s32.totalorder %s175, %s176
      %p187 = scmp.eq.s32.totalorder %s21, 0
      %p188 = por %p186, %p187
      %p189 = scmp.ne.s32.totalorder %s175, %s176
      %p190 = scmp.eq.s32.totalorder %s22, 1
      %p191 = por %p189, %p190
      %p193 = scmp.ne.s32.totalorder %s176, %s192
      %p194 = scmp.eq.s32.totalorder %s22, 0
      %p195 = por %p193, %p194
      %p196 = scmp.le.s32.totalorder 1, %s16
      %p197 = scmp.lt.s32.totalorder %s16, 3
      %p198 = pnand %p196, %p197
      %p199 = pneg %p198
      // Predicated region
      $region9: #{convlstm_cell_forward.1} parent=5 // pred_check
        _
      $region10: #{convlstm_cell_forward.1} parent=5 // pred_check_branch
        %201 = sbr.rel (%p198) target = $region12
      $region11: #{convlstm_cell_forward.1} parent=5 // pred_region
        %s202 = ssub.s32 %s16, 1
        // Predicated region
        $region13: #{convlstm_cell_forward.1} parent=11 // pred_check
          %p203 = pneg %p115
        $region14: #{convlstm_cell_forward.1} parent=11 // pred_check_branch
          %205 = sbr.rel (%p203) target = $region16
        $region15: #{convlstm_cell_forward.1} parent=11 // pred_region
          _
        $region16: #{convlstm_cell_forward.1} parent=11 // pred_fallthru
          _
        // Predicated region
        $region17: #{convlstm_cell_forward.1} parent=11 // pred_check
          %p206 = pneg %p136
        $region18: #{convlstm_cell_forward.1} parent=11 // pred_check_branch
          %208 = sbr.rel (%p206) target = $region20
        $region19: #{convlstm_cell_forward.1} parent=11 // pred_region
          _
        $region20: #{convlstm_cell_forward.1} parent=11 // pred_fallthru
          _
      $region12: #{convlstm_cell_forward.1} parent=5 // pred_fallthru
        _
      %p209 = scmp.lt.s32.totalorder %s16, 2
      // Predicated region
      $region21: #{convlstm_cell_forward.1} parent=5 // pred_check
        %p210 = pneg %p209
      $region22: #{convlstm_cell_forward.1} parent=5 // pred_check_branch
        %212 = sbr.rel (%p210) target = $region24
      $region23: #{convlstm_cell_forward.1} parent=5 // pred_region
        // Predicated region
        $region25: #{convlstm_cell_forward.1} parent=23 // pred_check
          %p213 = pneg %p36
        $region26: #{convlstm_cell_forward.1} parent=23 // pred_check_branch
          %215 = sbr.rel (%p213) target = $region28
        $region27: #{convlstm_cell_forward.1} parent=23 // pred_region
          %p216 = scmp.lt.s32.totalorder %s16, 1
          %s217 = scalar_select %p216, %s16, 1
          %s218 = smul.addr %s217, 32
          %s219 = smul.addr %s218, 4
          %s220 = scalar_lea.vmem %s0, %s219
        $region28: #{convlstm_cell_forward.1} parent=23 // pred_fallthru
          _
        // Predicated region
        $region29: #{convlstm_cell_forward.1} parent=23 // pred_check
          %p221 = pneg %p62
        $region30: #{convlstm_cell_forward.1} parent=23 // pred_check_branch
          %223 = sbr.rel (%p221) target = $region32
        $region31: #{convlstm_cell_forward.1} parent=23 // pred_region
          %p224 = scmp.lt.s32.totalorder %s16, 1
          %s225 = scalar_select %p224, %s16, 1
          %s226 = smul.addr %s225, 32
          %s227 = smul.addr %s226, 4
          %s228 = scalar_lea.vmem %s1, %s227
        $region32: #{convlstm_cell_forward.1} parent=23 // pred_fallthru
          _
        // Predicated region
        $region33: #{convlstm_cell_forward.1} parent=23 // pred_check
          %p229 = pneg %p88
        $region34: #{convlstm_cell_forward.1} parent=23 // pred_check_branch
          %231 = sbr.rel (%p229) target = $region36
        $region35: #{convlstm_cell_forward.1} parent=23 // pred_region
          %p232 = scmp.lt.s32.totalorder %s16, 1
          %s233 = scalar_select %p232, %s16, 1
          %s234 = smul.addr %s233, 32
          %s235 = smul.addr %s234, 8
          %s236 = scalar_lea.vmem %s2, %s235
        $region36: #{convlstm_cell_forward.1} parent=23 // pred_fallthru
          _
      $region24: #{convlstm_cell_forward.1} parent=5 // pred_fallthru
        _
      %p237 = scmp.le.s32.totalorder 1, %s16
      %p238 = scmp.lt.s32.totalorder %s16, 3
      %p239 = pnand %p237, %p238
      %p240 = pneg %p239
      // Predicated region
      $region37: #{convlstm_cell_forward.1} parent=5 // pred_check
        _
      $region38: #{convlstm_cell_forward.1} parent=5 // pred_check_branch
        %242 = sbr.rel (%p239) target = $region40
      $region39: #{convlstm_cell_forward.1} parent=5 // pred_region
        %s243 = ssub.s32 %s16, 1
        %p244 = scmp.lt.s32.totalorder %s21, 1
        %s245 = scalar_select %p244, %s21, 1
        %s246 = smul.addr %s245, 32
        %s247 = smul.addr %s246, 4
        %s248 = scalar_lea.vmem %s0, %s247
        %p249 = pneg %p42
        %p250 = pneg %p39
        %p251 = scmp.lt.s32.totalorder %s21, 1
        %s252 = scalar_select %p251, %s21, 1
        %s253 = smul.addr %s252, 32
        %s254 = smul.addr %s253, 4
        %s255 = scalar_lea.vmem %s1, %s254
        %p256 = pneg %p68
        %p257 = pneg %p65
        %p258 = scmp.lt.s32.totalorder %s21, 1
        %s259 = scalar_select %p258, %s21, 1
        %s260 = smul.addr %s259, 32
        %s261 = smul.addr %s260, 8
        %s262 = scalar_lea.vmem %s2, %s261
        %p263 = pneg %p94
        %p264 = pneg %p91
        %p265 = pneg %p115
        %p266 = pneg %p112
        %p267 = pneg %p136
        %p268 = pneg %p133
        %p269 = pneg %p162
        %p270 = pneg %p159
        %s271 = sand.u32 %s149, 1
        %s272 = scalar_lea.sflag [#allocation4], %s271
        %s273 = sand.u32 %s149, 1
        %s274 = smul.addr %s273, 256
        %s275 = scalar_lea.vmem [#allocation3], %s274
        %p276 = pneg %p188
        %p277 = pneg %p185
        %p278 = scmp.lt.s32.totalorder %s21, 1
        %s279 = scalar_select %p278, %s21, 1
        %s280 = smul.addr %s279, 32
        %s281 = smul.addr %s280, 8
        %s282 = scalar_lea.vmem %s6, %s281
        %p283 = scmp.lt.s32.totalorder %s21, 1
        %s284 = scalar_select %p283, %s21, 1
        %s285 = smul.addr %s284, 32
        %s286 = smul.addr %s285, 4
        %s287 = scalar_lea.vmem %s0, %s286
        %p288 = scmp.lt.s32.totalorder %s21, 1
        %s289 = scalar_select %p288, %s21, 1
        %s290 = smul.addr %s289, 32
        %s291 = smul.addr %s290, 4
        %s292 = scalar_lea.vmem %s1, %s291
        %p293 = scmp.lt.s32.totalorder %s21, 1
        %s294 = scalar_select %p293, %s21, 1
        %s295 = smul.addr %s294, 32
        %s296 = smul.addr %s295, 8
        %s297 = scalar_lea.vmem %s2, %s296
        %p298 = scmp.lt.s32.totalorder %s21, 1
        %s299 = scalar_select %p298, %s21, 1
        %s300 = smul.addr %s299, 32
        %s301 = smul.addr %s300, 8
        %s302 = scalar_lea.vmem %s6, %s301
        %vm304 = vcmask 293888
        %305 = vst.msk [vmem:[#allocation2] sm:$0xff] %vm304, 0
        %306 = vst.msk [vmem:[#allocation2 + $0x8] sm:$0xff] %vm304, 0
        %307 = vst.msk [vmem:[#allocation2 + $0x10] sm:$0xff] %vm304, 0
        %308 = vst.msk [vmem:[#allocation2 + $0x18] sm:$0xff] %vm304, 0
        %309 = vst.msk [vmem:[#allocation2 + $0x20] sm:$0xff] %vm304, 0
        %310 = vst.msk [vmem:[#allocation2 + $0x28] sm:$0xff] %vm304, 0
        %311 = vst.msk [vmem:[#allocation2 + $0x30] sm:$0xff] %vm304, 0
        %312 = vst.msk [vmem:[#allocation2 + $0x38] sm:$0xff] %vm304, 0
        %313 = vst.msk [vmem:[#allocation2 + $0x40] sm:$0xff] %vm304, 0
        %314 = vst.msk [vmem:[#allocation2 + $0x48] sm:$0xff] %vm304, 0
        %315 = vst.msk [vmem:[#allocation2 + $0x50] sm:$0xff] %vm304, 0
        %316 = vst.msk [vmem:[#allocation2 + $0x58] sm:$0xff] %vm304, 0
        %317 = vst.msk [vmem:[#allocation2 + $0x60] sm:$0xff] %vm304, 0
        %318 = vst.msk [vmem:[#allocation2 + $0x68] sm:$0xff] %vm304, 0
        %319 = vst.msk [vmem:[#allocation2 + $0x70] sm:$0xff] %vm304, 0
        %320 = vst.msk [vmem:[#allocation2 + $0x78] sm:$0xff] %vm304, 0
        %321 = vst.msk [vmem:[#allocation2 + $0x80] sm:$0xff] %vm304, 0
        %322 = vst.msk [vmem:[#allocation2 + $0x88] sm:$0xff] %vm304, 0
        %323 = vst.msk [vmem:[#allocation2 + $0x90] sm:$0xff] %vm304, 0
        %324 = vst.msk [vmem:[#allocation2 + $0x98] sm:$0xff] %vm304, 0
        %325 = vst.msk [vmem:[#allocation2 + $0xa0] sm:$0xff] %vm304, 0
        %326 = vst.msk [vmem:[#allocation2 + $0xa8] sm:$0xff] %vm304, 0
        %327 = vst.msk [vmem:[#allocation2 + $0xb0] sm:$0xff] %vm304, 0
        %328 = vst.msk [vmem:[#allocation2 + $0xb8] sm:$0xff] %vm304, 0
        %329 = vst.msk [vmem:[#allocation2 + $0xc0] sm:$0xff] %vm304, 0
        %330 = vst.msk [vmem:[#allocation2 + $0xc8] sm:$0xff] %vm304, 0
        %331 = vst.msk [vmem:[#allocation2 + $0xd0] sm:$0xff] %vm304, 0
        %332 = vst.msk [vmem:[#allocation2 + $0xd8] sm:$0xff] %vm304, 0
        %333 = vst.msk [vmem:[#allocation2 + $0xe0] sm:$0xff] %vm304, 0
        %334 = vst.msk [vmem:[#allocation2 + $0xe8] sm:$0xff] %vm304, 0
        %335 = vst.msk [vmem:[#allocation2 + $0xf0] sm:$0xff] %vm304, 0
        %336 = vst.msk [vmem:[#allocation2 + $0xf8] sm:$0xff] %vm304, 0
        %337 = vst.msk [vmem:[#allocation2 + $0x100] sm:$0xff] %vm304, 0
        %338 = vst.msk [vmem:[#allocation2 + $0x108] sm:$0xff] %vm304, 0
        %339 = vst.msk [vmem:[#allocation2 + $0x110] sm:$0xff] %vm304, 0
        %340 = vst.msk [vmem:[#allocation2 + $0x118] sm:$0xff] %vm304, 0
        %341 = vst.msk [vmem:[#allocation2 + $0x120] sm:$0xff] %vm304, 0
        %342 = vst.msk [vmem:[#allocation2 + $0x128] sm:$0xff] %vm304, 0
        %v343 = vld [vmem:[%s287] sm:$0xf]
        %v344 = vld [vmem:[%s287 + $0x4] sm:$0xf]
        %v345 = vld [vmem:[%s287 + $0x8] sm:$0xf]
        %v346 = vld [vmem:[%s287 + $0xc] sm:$0xf]
        %v347 = vld [vmem:[%s287 + $0x10] sm:$0xf]
        %v348 = vld [vmem:[%s287 + $0x14] sm:$0xf]
        %v349 = vld [vmem:[%s287 + $0x18] sm:$0xf]
        %v350 = vld [vmem:[%s287 + $0x1c] sm:$0xf]
        %v351 = vld [vmem:[%s287 + $0x20] sm:$0xf]
        %v352 = vld [vmem:[%s287 + $0x24] sm:$0xf]
        %v353 = vld [vmem:[%s287 + $0x28] sm:$0xf]
        %v354 = vld [vmem:[%s287 + $0x2c] sm:$0xf]
        %v355 = vld [vmem:[%s287 + $0x30] sm:$0xf]
        %v356 = vld [vmem:[%s287 + $0x34] sm:$0xf]
        %v357 = vld [vmem:[%s287 + $0x38] sm:$0xf]
        %v358 = vld [vmem:[%s287 + $0x3c] sm:$0xf]
        %v359 = vld [vmem:[%s287 + $0x40] sm:$0xf]
        %v360 = vld [vmem:[%s287 + $0x44] sm:$0xf]
        %v361 = vld [vmem:[%s287 + $0x48] sm:$0xf]
        %v362 = vld [vmem:[%s287 + $0x4c] sm:$0xf]
        %v363 = vld [vmem:[%s287 + $0x50] sm:$0xf]
        %v364 = vld [vmem:[%s287 + $0x54] sm:$0xf]
        %v365 = vld [vmem:[%s287 + $0x58] sm:$0xf]
        %v366 = vld [vmem:[%s287 + $0x5c] sm:$0xf]
        %v367 = vld [vmem:[%s287 + $0x60] sm:$0xf]
        %v368 = vld [vmem:[%s287 + $0x64] sm:$0xf]
        %v369 = vld [vmem:[%s287 + $0x68] sm:$0xf]
        %v370 = vld [vmem:[%s287 + $0x6c] sm:$0xf]
        %v371 = vld [vmem:[%s287 + $0x70] sm:$0xf]
        %v372 = vld [vmem:[%s287 + $0x74] sm:$0xf]
        %v373 = vld [vmem:[%s287 + $0x78] sm:$0xf]
        %v374 = vld [vmem:[%s287 + $0x7c] sm:$0xf]
        %v375 = vld [vmem:[%s292] sm:$0xf]
        %v376 = vld [vmem:[%s292 + $0x4] sm:$0xf]
        %v377 = vld [vmem:[%s292 + $0x8] sm:$0xf]
        %v378 = vld [vmem:[%s292 + $0xc] sm:$0xf]
        %v379 = vld [vmem:[%s292 + $0x10] sm:$0xf]
        %v380 = vld [vmem:[%s292 + $0x14] sm:$0xf]
        %v381 = vld [vmem:[%s292 + $0x18] sm:$0xf]
        %v382 = vld [vmem:[%s292 + $0x1c] sm:$0xf]
        %v383 = vld [vmem:[%s292 + $0x20] sm:$0xf]
        %v384 = vld [vmem:[%s292 + $0x24] sm:$0xf]
        %v385 = vld [vmem:[%s292 + $0x28] sm:$0xf]
        %v386 = vld [vmem:[%s292 + $0x2c] sm:$0xf]
        %v387 = vld [vmem:[%s292 + $0x30] sm:$0xf]
        %v388 = vld [vmem:[%s292 + $0x34] sm:$0xf]
        %v389 = vld [vmem:[%s292 + $0x38] sm:$0xf]
        %v390 = vld [vmem:[%s292 + $0x3c] sm:$0xf]
        %v391 = vld [vmem:[%s292 + $0x40] sm:$0xf]
        %v392 = vld [vmem:[%s292 + $0x44] sm:$0xf]
        %v393 = vld [vmem:[%s292 + $0x48] sm:$0xf]
        %v394 = vld [vmem:[%s292 + $0x4c] sm:$0xf]
        %v395 = vld [vmem:[%s292 + $0x50] sm:$0xf]
        %v396 = vld [vmem:[%s292 + $0x54] sm:$0xf]
        %v397 = vld [vmem:[%s292 + $0x58] sm:$0xf]
        %v398 = vld [vmem:[%s292 + $0x5c] sm:$0xf]
        %v399 = vld [vmem:[%s292 + $0x60] sm:$0xf]
        %v400 = vld [vmem:[%s292 + $0x64] sm:$0xf]
        %v401 = vld [vmem:[%s292 + $0x68] sm:$0xf]
        %v402 = vld [vmem:[%s292 + $0x6c] sm:$0xf]
        %v403 = vld [vmem:[%s292 + $0x70] sm:$0xf]
        %v404 = vld [vmem:[%s292 + $0x74] sm:$0xf]
        %v405 = vld [vmem:[%s292 + $0x78] sm:$0xf]
        %v406 = vld [vmem:[%s292 + $0x7c] sm:$0xf]
        %v439 = vunpack.c.l.b16 %v343
        %v440 = vunpack.c.l.b16 %v344
        %v441 = vunpack.c.l.b16 %v345
        %v442 = vunpack.c.l.b16 %v346
        %v443 = vunpack.c.l.b16 %v347
        %v444 = vunpack.c.l.b16 %v348
        %v445 = vunpack.c.l.b16 %v349
        %v446 = vunpack.c.l.b16 %v350
        %v447 = vunpack.c.l.b16 %v351
        %v448 = vunpack.c.l.b16 %v352
        %v449 = vunpack.c.l.b16 %v353
        %v450 = vunpack.c.l.b16 %v354
        %v451 = vunpack.c.l.b16 %v355
        %v452 = vunpack.c.l.b16 %v356
        %v453 = vunpack.c.l.b16 %v357
        %v454 = vunpack.c.l.b16 %v358
        %v455 = vunpack.c.l.b16 %v359
        %v456 = vunpack.c.l.b16 %v360
        %v457 = vunpack.c.l.b16 %v361
        %v458 = vunpack.c.l.b16 %v362
        %v459 = vunpack.c.l.b16 %v363
        %v460 = vunpack.c.l.b16 %v364
        %v461 = vunpack.c.l.b16 %v365
        %v462 = vunpack.c.l.b16 %v366
        %v463 = vunpack.c.l.b16 %v367
        %v464 = vunpack.c.l.b16 %v368
        %v465 = vunpack.c.l.b16 %v369
        %v466 = vunpack.c.l.b16 %v370
        %v467 = vunpack.c.l.b16 %v371
        %v468 = vunpack.c.l.b16 %v372
        %v469 = vunpack.c.l.b16 %v373
        %v470 = vunpack.c.l.b16 %v374
        %v471 = vpack.c.b16 %v440, %v439
        %v472 = vpack.c.b16 %v442, %v441
        %v473 = vpack.c.b16 %v444, %v443
        %v474 = vpack.c.b16 %v446, %v445
        %v475 = vpack.c.b16 %v448, %v447
        %v476 = vpack.c.b16 %v450, %v449
        %v477 = vpack.c.b16 %v452, %v451
        %v478 = vpack.c.b16 %v454, %v453
        %v479 = vpack.c.b16 %v456, %v455
        %v480 = vpack.c.b16 %v458, %v457
        %v481 = vpack.c.b16 %v460, %v459
        %v482 = vpack.c.b16 %v462, %v461
        %v483 = vpack.c.b16 %v464, %v463
        %v484 = vpack.c.b16 %v466, %v465
        %v485 = vpack.c.b16 %v468, %v467
        %v486 = vpack.c.b16 %v470, %v469
        %v519 = vunpack.c.l.b16 %v375
        %v520 = vunpack.c.l.b16 %v376
        %v521 = vunpack.c.l.b16 %v377
        %v522 = vunpack.c.l.b16 %v378
        %v523 = vunpack.c.l.b16 %v379
        %v524 = vunpack.c.l.b16 %v380
        %v525 = vunpack.c.l.b16 %v381
        %v526 = vunpack.c.l.b16 %v382
        %v527 = vunpack.c.l.b16 %v383
        %v528 = vunpack.c.l.b16 %v384
        %v529 = vunpack.c.l.b16 %v385
        %v530 = vunpack.c.l.b16 %v386
        %v531 = vunpack.c.l.b16 %v387
        %v532 = vunpack.c.l.b16 %v388
        %v533 = vunpack.c.l.b16 %v389
        %v534 = vunpack.c.l.b16 %v390
        %v535 = vunpack.c.l.b16 %v391
        %v536 = vunpack.c.l.b16 %v392
        %v537 = vunpack.c.l.b16 %v393
        %v538 = vunpack.c.l.b16 %v394
        %v539 = vunpack.c.l.b16 %v395
        %v540 = vunpack.c.l.b16 %v396
        %v541 = vunpack.c.l.b16 %v397
        %v542 = vunpack.c.l.b16 %v398
        %v543 = vunpack.c.l.b16 %v399
        %v544 = vunpack.c.l.b16 %v400
        %v545 = vunpack.c.l.b16 %v401
        %v546 = vunpack.c.l.b16 %v402
        %v547 = vunpack.c.l.b16 %v403
        %v548 = vunpack.c.l.b16 %v404
        %v549 = vunpack.c.l.b16 %v405
        %v550 = vunpack.c.l.b16 %v406
        %v551 = vpack.c.b16 %v520, %v519
        %v552 = vpack.c.b16 %v522, %v521
        %v553 = vpack.c.b16 %v524, %v523
        %v554 = vpack.c.b16 %v526, %v525
        %v555 = vpack.c.b16 %v528, %v527
        %v556 = vpack.c.b16 %v530, %v529
        %v557 = vpack.c.b16 %v532, %v531
        %v558 = vpack.c.b16 %v534, %v533
        %v559 = vpack.c.b16 %v536, %v535
        %v560 = vpack.c.b16 %v538, %v537
        %v561 = vpack.c.b16 %v540, %v539
        %v562 = vpack.c.b16 %v542, %v541
        %v563 = vpack.c.b16 %v544, %v543
        %v564 = vpack.c.b16 %v546, %v545
        %v565 = vpack.c.b16 %v548, %v547
        %v566 = vpack.c.b16 %v550, %v549
        %567 = vrot.lane.b32.xlu0 %v551, 4
        %v568 = vpop.permute.xlu0 %567
        %569 = vrot.lane.b32.xlu0 %v552, 4
        %v570 = vpop.permute.xlu0 %569
        %571 = vrot.lane.b32.xlu0 %v553, 4
        %v572 = vpop.permute.xlu0 %571
        %573 = vrot.lane.b32.xlu0 %v554, 4
        %v574 = vpop.permute.xlu0 %573
        %575 = vrot.lane.b32.xlu0 %v555, 4
        %v576 = vpop.permute.xlu0 %575
        %577 = vrot.lane.b32.xlu0 %v556, 4
        %v578 = vpop.permute.xlu0 %577
        %579 = vrot.lane.b32.xlu0 %v557, 4
        %v580 = vpop.permute.xlu0 %579
        %581 = vrot.lane.b32.xlu0 %v558, 4
        %v582 = vpop.permute.xlu0 %581
        %583 = vrot.lane.b32.xlu0 %v559, 4
        %v584 = vpop.permute.xlu0 %583
        %585 = vrot.lane.b32.xlu0 %v560, 4
        %v586 = vpop.permute.xlu0 %585
        %587 = vrot.lane.b32.xlu0 %v561, 4
        %v588 = vpop.permute.xlu0 %587
        %589 = vrot.lane.b32.xlu0 %v562, 4
        %v590 = vpop.permute.xlu0 %589
        %591 = vrot.lane.b32.xlu0 %v563, 4
        %v592 = vpop.permute.xlu0 %591
        %593 = vrot.lane.b32.xlu0 %v564, 4
        %v594 = vpop.permute.xlu0 %593
        %595 = vrot.lane.b32.xlu0 %v565, 4
        %v596 = vpop.permute.xlu0 %595
        %597 = vrot.lane.b32.xlu0 %v566, 4
        %v598 = vpop.permute.xlu0 %597
        %vm599 = vcmask 31744
        %v602 = vsel %vm599, %v471, %v568
        %v606 = vsel %vm599, %v472, %v570
        %v610 = vsel %vm599, %v473, %v572
        %v614 = vsel %vm599, %v474, %v574
        %v618 = vsel %vm599, %v475, %v576
        %v622 = vsel %vm599, %v476, %v578
        %v626 = vsel %vm599, %v477, %v580
        %v630 = vsel %vm599, %v478, %v582
        %v634 = vsel %vm599, %v479, %v584
        %v638 = vsel %vm599, %v480, %v586
        %v642 = vsel %vm599, %v481, %v588
        %v646 = vsel %vm599, %v482, %v590
        %v650 = vsel %vm599, %v483, %v592
        %v654 = vsel %vm599, %v484, %v594
        %v658 = vsel %vm599, %v485, %v596
        %v662 = vsel %vm599, %v486, %v598
        %s664 = scalar_lea.vmem [#allocation2], 16
        %665 = vst.msk [vmem:[%s664 + $0x8] sm:$0xff] %vm304, %v602
        %666 = vst.msk [vmem:[%s664 + $0x18] sm:$0xff] %vm304, %v606
        %667 = vst.msk [vmem:[%s664 + $0x28] sm:$0xff] %vm304, %v610
        %668 = vst.msk [vmem:[%s664 + $0x38] sm:$0xff] %vm304, %v614
        %669 = vst.msk [vmem:[%s664 + $0x48] sm:$0xff] %vm304, %v618
        %670 = vst.msk [vmem:[%s664 + $0x58] sm:$0xff] %vm304, %v622
        %671 = vst.msk [vmem:[%s664 + $0x68] sm:$0xff] %vm304, %v626
        %672 = vst.msk [vmem:[%s664 + $0x78] sm:$0xff] %vm304, %v630
        %673 = vst.msk [vmem:[%s664 + $0x88] sm:$0xff] %vm304, %v634
        %674 = vst.msk [vmem:[%s664 + $0x98] sm:$0xff] %vm304, %v638
        %675 = vst.msk [vmem:[%s664 + $0xa8] sm:$0xff] %vm304, %v642
        %676 = vst.msk [vmem:[%s664 + $0xb8] sm:$0xff] %vm304, %v646
        %677 = vst.msk [vmem:[%s664 + $0xc8] sm:$0xff] %vm304, %v650
        %678 = vst.msk [vmem:[%s664 + $0xd8] sm:$0xff] %vm304, %v654
        %679 = vst.msk [vmem:[%s664 + $0xe8] sm:$0xff] %vm304, %v658
        %680 = vst.msk [vmem:[%s664 + $0xf8] sm:$0xff] %vm304, %v662
        %v681 = vld [vmem:[#allocation2] sm:$0xff]
        %v682 = vld [vmem:[#allocation2 + $0x8] sm:$0xff]
        %v683 = vld [vmem:[#allocation2 + $0x10] sm:$0xff]
        %v684 = vld [vmem:[#allocation2 + $0x18] sm:$0xff]
        %v685 = vld [vmem:[#allocation2 + $0x20] sm:$0xff]
        %v686 = vld [vmem:[#allocation2 + $0x28] sm:$0xff]
        %v687 = vld [vmem:[#allocation2 + $0x30] sm:$0xff]
        %v688 = vld [vmem:[#allocation2 + $0x38] sm:$0xff]
        %v689 = vld [vmem:[#allocation2 + $0x40] sm:$0xff]
        %v690 = vld [vmem:[#allocation2 + $0x48] sm:$0xff]
        %v691 = vld [vmem:[#allocation2 + $0x50] sm:$0xff]
        %v692 = vld [vmem:[#allocation2 + $0x58] sm:$0xff]
        %v693 = vld [vmem:[#allocation2 + $0x60] sm:$0xff]
        %v694 = vld [vmem:[#allocation2 + $0x68] sm:$0xff]
        %v695 = vld [vmem:[#allocation2 + $0x70] sm:$0xff]
        %v696 = vld [vmem:[#allocation2 + $0x78] sm:$0xff]
        %v697 = vld [vmem:[#allocation2 + $0x80] sm:$0xff]
        %v698 = vld [vmem:[#allocation2 + $0x88] sm:$0xff]
        %v699 = vld [vmem:[#allocation2 + $0x90] sm:$0xff]
        %v700 = vld [vmem:[#allocation2 + $0x98] sm:$0xff]
        %v701 = vld [vmem:[#allocation2 + $0xa0] sm:$0xff]
        %v702 = vld [vmem:[#allocation2 + $0xa8] sm:$0xff]
        %v703 = vld [vmem:[#allocation2 + $0xb0] sm:$0xff]
        %v704 = vld [vmem:[#allocation2 + $0xb8] sm:$0xff]
        %v705 = vld [vmem:[#allocation2 + $0xc0] sm:$0xff]
        %v706 = vld [vmem:[#allocation2 + $0xc8] sm:$0xff]
        %v707 = vld [vmem:[#allocation2 + $0xd0] sm:$0xff]
        %v708 = vld [vmem:[#allocation2 + $0xd8] sm:$0xff]
        %v709 = vld [vmem:[#allocation2 + $0xe0] sm:$0xff]
        %v710 = vld [vmem:[#allocation2 + $0xe8] sm:$0xff]
        %v711 = vld [vmem:[#allocation2 + $0xf0] sm:$0xff]
        %v712 = vld [vmem:[#allocation2 + $0xf8] sm:$0xff]
        %v713 = vld [vmem:[#allocation2 + $0x100] sm:$0xff]
        %v714 = vld [vmem:[#allocation2 + $0x108] sm:$0xff]
        %v715 = vld [vmem:[#allocation2 + $0x110] sm:$0xff]
        %v716 = vld [vmem:[#allocation2 + $0x118] sm:$0xff]
        %v717 = vld [vmem:[#allocation2 + $0x120] sm:$0xff]
        %751 = vrot.lane.b32.xlu0 %v683, 36
        %v752 = vpop.permute.xlu0 %751
        %753 = vrot.lane.b32.xlu0 %v684, 36
        %v754 = vpop.permute.xlu0 %753
        %755 = vrot.lane.b32.xlu0 %v685, 36
        %v756 = vpop.permute.xlu0 %755
        %757 = vrot.lane.b32.xlu0 %v686, 36
        %v758 = vpop.permute.xlu0 %757
        %759 = vrot.lane.b32.xlu0 %v687, 36
        %v760 = vpop.permute.xlu0 %759
        %761 = vrot.lane.b32.xlu0 %v688, 36
        %v762 = vpop.permute.xlu0 %761
        %763 = vrot.lane.b32.xlu0 %v689, 36
        %v764 = vpop.permute.xlu0 %763
        %765 = vrot.lane.b32.xlu0 %v690, 36
        %v766 = vpop.permute.xlu0 %765
        %767 = vrot.lane.b32.xlu0 %v691, 36
        %v768 = vpop.permute.xlu0 %767
        %769 = vrot.lane.b32.xlu0 %v692, 36
        %v770 = vpop.permute.xlu0 %769
        %771 = vrot.lane.b32.xlu0 %v693, 36
        %v772 = vpop.permute.xlu0 %771
        %773 = vrot.lane.b32.xlu0 %v694, 36
        %v774 = vpop.permute.xlu0 %773
        %775 = vrot.lane.b32.xlu0 %v695, 36
        %v776 = vpop.permute.xlu0 %775
        %777 = vrot.lane.b32.xlu0 %v696, 36
        %v778 = vpop.permute.xlu0 %777
        %779 = vrot.lane.b32.xlu0 %v697, 36
        %v780 = vpop.permute.xlu0 %779
        %781 = vrot.lane.b32.xlu0 %v698, 36
        %v782 = vpop.permute.xlu0 %781
        %783 = vrot.lane.b32.xlu0 %v699, 36
        %v784 = vpop.permute.xlu0 %783
        %785 = vrot.lane.b32.xlu0 %v700, 36
        %v786 = vpop.permute.xlu0 %785
        %787 = vrot.lane.b32.xlu0 %v701, 36
        %v788 = vpop.permute.xlu0 %787
        %789 = vrot.lane.b32.xlu0 %v702, 36
        %v790 = vpop.permute.xlu0 %789
        %791 = vrot.lane.b32.xlu0 %v703, 36
        %v792 = vpop.permute.xlu0 %791
        %793 = vrot.lane.b32.xlu0 %v704, 36
        %v794 = vpop.permute.xlu0 %793
        %795 = vrot.lane.b32.xlu0 %v705, 36
        %v796 = vpop.permute.xlu0 %795
        %797 = vrot.lane.b32.xlu0 %v706, 36
        %v798 = vpop.permute.xlu0 %797
        %799 = vrot.lane.b32.xlu0 %v707, 36
        %v800 = vpop.permute.xlu0 %799
        %801 = vrot.lane.b32.xlu0 %v708, 36
        %v802 = vpop.permute.xlu0 %801
        %803 = vrot.lane.b32.xlu0 %v709, 36
        %v804 = vpop.permute.xlu0 %803
        %805 = vrot.lane.b32.xlu0 %v710, 36
        %v806 = vpop.permute.xlu0 %805
        %807 = vrot.lane.b32.xlu0 %v711, 36
        %v808 = vpop.permute.xlu0 %807
        %809 = vrot.lane.b32.xlu0 %v712, 36
        %v810 = vpop.permute.xlu0 %809
        %811 = vrot.lane.b32.xlu0 %v713, 36
        %v812 = vpop.permute.xlu0 %811
        %813 = vrot.lane.b32.xlu0 %v714, 36
        %v814 = vpop.permute.xlu0 %813
        %815 = vrot.lane.b32.xlu0 %v715, 36
        %v816 = vpop.permute.xlu0 %815
        %819 = vrot.lane.b32.xlu0 %v685, 72
        %v820 = vpop.permute.xlu0 %819
        %821 = vrot.lane.b32.xlu0 %v686, 72
        %v822 = vpop.permute.xlu0 %821
        %823 = vrot.lane.b32.xlu0 %v687, 72
        %v824 = vpop.permute.xlu0 %823
        %825 = vrot.lane.b32.xlu0 %v688, 72
        %v826 = vpop.permute.xlu0 %825
        %827 = vrot.lane.b32.xlu0 %v689, 72
        %v828 = vpop.permute.xlu0 %827
        %829 = vrot.lane.b32.xlu0 %v690, 72
        %v830 = vpop.permute.xlu0 %829
        %831 = vrot.lane.b32.xlu0 %v691, 72
        %v832 = vpop.permute.xlu0 %831
        %833 = vrot.lane.b32.xlu0 %v692, 72
        %v834 = vpop.permute.xlu0 %833
        %835 = vrot.lane.b32.xlu0 %v693, 72
        %v836 = vpop.permute.xlu0 %835
        %837 = vrot.lane.b32.xlu0 %v694, 72
        %v838 = vpop.permute.xlu0 %837
        %839 = vrot.lane.b32.xlu0 %v695, 72
        %v840 = vpop.permute.xlu0 %839
        %841 = vrot.lane.b32.xlu0 %v696, 72
        %v842 = vpop.permute.xlu0 %841
        %843 = vrot.lane.b32.xlu0 %v697, 72
        %v844 = vpop.permute.xlu0 %843
        %845 = vrot.lane.b32.xlu0 %v698, 72
        %v846 = vpop.permute.xlu0 %845
        %847 = vrot.lane.b32.xlu0 %v699, 72
        %v848 = vpop.permute.xlu0 %847
        %849 = vrot.lane.b32.xlu0 %v700, 72
        %v850 = vpop.permute.xlu0 %849
        %851 = vrot.lane.b32.xlu0 %v701, 72
        %v852 = vpop.permute.xlu0 %851
        %853 = vrot.lane.b32.xlu0 %v702, 72
        %v854 = vpop.permute.xlu0 %853
        %855 = vrot.lane.b32.xlu0 %v703, 72
        %v856 = vpop.permute.xlu0 %855
        %857 = vrot.lane.b32.xlu0 %v704, 72
        %v858 = vpop.permute.xlu0 %857
        %859 = vrot.lane.b32.xlu0 %v705, 72
        %v860 = vpop.permute.xlu0 %859
        %861 = vrot.lane.b32.xlu0 %v706, 72
        %v862 = vpop.permute.xlu0 %861
        %863 = vrot.lane.b32.xlu0 %v707, 72
        %v864 = vpop.permute.xlu0 %863
        %865 = vrot.lane.b32.xlu0 %v708, 72
        %v866 = vpop.permute.xlu0 %865
        %867 = vrot.lane.b32.xlu0 %v709, 72
        %v868 = vpop.permute.xlu0 %867
        %869 = vrot.lane.b32.xlu0 %v710, 72
        %v870 = vpop.permute.xlu0 %869
        %871 = vrot.lane.b32.xlu0 %v711, 72
        %v872 = vpop.permute.xlu0 %871
        %873 = vrot.lane.b32.xlu0 %v712, 72
        %v874 = vpop.permute.xlu0 %873
        %875 = vrot.lane.b32.xlu0 %v713, 72
        %v876 = vpop.permute.xlu0 %875
        %877 = vrot.lane.b32.xlu0 %v714, 72
        %v878 = vpop.permute.xlu0 %877
        %879 = vrot.lane.b32.xlu0 %v715, 72
        %v880 = vpop.permute.xlu0 %879
        %881 = vrot.lane.b32.xlu0 %v716, 72
        %v882 = vpop.permute.xlu0 %881
        %883 = vrot.lane.b32.xlu0 %v717, 72
        %v884 = vpop.permute.xlu0 %883
        %v887 = vsel %vm304, %v681, %v752
        %v890 = vsel %vm304, %v682, %v754
        %v893 = vsel %vm304, %v683, %v756
        %v896 = vsel %vm304, %v684, %v758
        %v899 = vsel %vm304, %v685, %v760
        %v902 = vsel %vm304, %v686, %v762
        %v905 = vsel %vm304, %v687, %v764
        %v908 = vsel %vm304, %v688, %v766
        %v911 = vsel %vm304, %v689, %v768
        %v914 = vsel %vm304, %v690, %v770
        %v917 = vsel %vm304, %v691, %v772
        %v920 = vsel %vm304, %v692, %v774
        %v923 = vsel %vm304, %v693, %v776
        %v926 = vsel %vm304, %v694, %v778
        %v929 = vsel %vm304, %v695, %v780
        %v932 = vsel %vm304, %v696, %v782
        %v935 = vsel %vm304, %v697, %v784
        %v938 = vsel %vm304, %v698, %v786
        %v941 = vsel %vm304, %v699, %v788
        %v944 = vsel %vm304, %v700, %v790
        %v947 = vsel %vm304, %v701, %v792
        %v950 = vsel %vm304, %v702, %v794
        %v953 = vsel %vm304, %v703, %v796
        %v956 = vsel %vm304, %v704, %v798
        %v959 = vsel %vm304, %v705, %v800
        %v962 = vsel %vm304, %v706, %v802
        %v965 = vsel %vm304, %v707, %v804
        %v968 = vsel %vm304, %v708, %v806
        %v971 = vsel %vm304, %v709, %v808
        %v974 = vsel %vm304, %v710, %v810
        %v977 = vsel %vm304, %v711, %v812
        %v980 = vsel %vm304, %v712, %v814
        %v983 = vsel %vm304, %v713, %v816
        %vm984 = vcmask 588800
        %v986 = vsel %vm984, %v887, %v820
        %v988 = vsel %vm984, %v890, %v822
        %v990 = vsel %vm984, %v893, %v824
        %v992 = vsel %vm984, %v896, %v826
        %v994 = vsel %vm984, %v899, %v828
        %v996 = vsel %vm984, %v902, %v830
        %v998 = vsel %vm984, %v905, %v832
        %v1000 = vsel %vm984, %v908, %v834
        %v1002 = vsel %vm984, %v911, %v836
        %v1004 = vsel %vm984, %v914, %v838
        %v1006 = vsel %vm984, %v917, %v840
        %v1008 = vsel %vm984, %v920, %v842
        %v1010 = vsel %vm984, %v923, %v844
        %v1012 = vsel %vm984, %v926, %v846
        %v1014 = vsel %vm984, %v929, %v848
        %v1016 = vsel %vm984, %v932, %v850
        %v1018 = vsel %vm984, %v935, %v852
        %v1020 = vsel %vm984, %v938, %v854
        %v1022 = vsel %vm984, %v941, %v856
        %v1024 = vsel %vm984, %v944, %v858
        %v1026 = vsel %vm984, %v947, %v860
        %v1028 = vsel %vm984, %v950, %v862
        %v1030 = vsel %vm984, %v953, %v864
        %v1032 = vsel %vm984, %v956, %v866
        %v1034 = vsel %vm984, %v959, %v868
        %v1036 = vsel %vm984, %v962, %v870
        %v1038 = vsel %vm984, %v965, %v872
        %v1040 = vsel %vm984, %v968, %v874
        %v1042 = vsel %vm984, %v971, %v876
        %v1044 = vsel %vm984, %v974, %v878
        %v1046 = vsel %vm984, %v977, %v880
        %v1048 = vsel %vm984, %v980, %v882
        %v1050 = vsel %vm984, %v983, %v884
        %v1051 = vld [vmem:[%s3] sm:$0xf]
        %v1052 = vld [vmem:[%s3 + $0x4] sm:$0xf]
        %v1053 = vld [vmem:[%s3 + $0x8] sm:$0xf]
        %v1054 = vld [vmem:[%s3 + $0xc] sm:$0xf]
        %v1055 = vld [vmem:[%s3 + $0x10] sm:$0xf]
        %v1056 = vld [vmem:[%s3 + $0x14] sm:$0xf]
        %v1057 = vld [vmem:[%s3 + $0x18] sm:$0xf]
        %v1058 = vld [vmem:[%s3 + $0x1c] sm:$0xf]
        %v1059 = vld [vmem:[%s3 + $0x20] sm:$0xf]
        %v1060 = vld [vmem:[%s3 + $0x24] sm:$0xf]
        %v1061 = vld [vmem:[%s3 + $0x28] sm:$0xf]
        %v1062 = vld [vmem:[%s3 + $0x2c] sm:$0xf]
        %v1063 = vld [vmem:[%s3 + $0x30] sm:$0xf]
        %v1064 = vld [vmem:[%s3 + $0x34] sm:$0x3]
        %s1065 = scalar_lea.vmem %s3, 56
        %v1066 = vld [vmem:[%s1065] sm:$0xf]
        %v1067 = vld [vmem:[%s1065 + $0x4] sm:$0xf]
        %v1068 = vld [vmem:[%s1065 + $0x8] sm:$0xf]
        %v1069 = vld [vmem:[%s1065 + $0xc] sm:$0xf]
        %v1070 = vld [vmem:[%s1065 + $0x10] sm:$0xf]
        %v1071 = vld [vmem:[%s1065 + $0x14] sm:$0xf]
        %v1072 = vld [vmem:[%s1065 + $0x18] sm:$0xf]
        %v1073 = vld [vmem:[%s1065 + $0x1c] sm:$0xf]
        %v1074 = vld [vmem:[%s1065 + $0x20] sm:$0xf]
        %v1075 = vld [vmem:[%s1065 + $0x24] sm:$0xf]
        %v1076 = vld [vmem:[%s1065 + $0x28] sm:$0xf]
        %v1077 = vld [vmem:[%s1065 + $0x2c] sm:$0xf]
        %v1078 = vld [vmem:[%s1065 + $0x30] sm:$0xf]
        %v1079 = vld [vmem:[%s1065 + $0x34] sm:$0x3]
        %vm1080 = vsmask.f32 7424
        %v1081 = vshrl.u32 %v986, 16
        %v1083 = vshll.u32 %v986, 16
        %v1085 = vrot.slane %v1083, 1
        %v1086 = vor.u32 %v1081, %v1085
        %v1087 = vshll.u32 %v988, 16
        %v1089 = vrot.slane %v1087, 1
        %v1090 = vsel %vm1080, %v1086, %v1089
        %v1091 = vshrl.u32 %v988, 16
        %v1093 = vor.u32 %v1091, %v1089
        %v1094 = vshll.u32 %v990, 16
        %v1096 = vrot.slane %v1094, 1
        %v1097 = vsel %vm1080, %v1093, %v1096
        %v1098 = vshrl.u32 %v990, 16
        %v1100 = vor.u32 %v1098, %v1096
        %v1101 = vshll.u32 %v992, 16
        %v1103 = vrot.slane %v1101, 1
        %v1104 = vsel %vm1080, %v1100, %v1103
        %v1105 = vshrl.u32 %v992, 16
        %v1107 = vor.u32 %v1105, %v1103
        %v1108 = vshll.u32 %v994, 16
        %v1110 = vrot.slane %v1108, 1
        %v1111 = vsel %vm1080, %v1107, %v1110
        %v1112 = vshrl.u32 %v994, 16
        %v1114 = vor.u32 %v1112, %v1110
        %v1115 = vshll.u32 %v996, 16
        %v1117 = vrot.slane %v1115, 1
        %v1118 = vsel %vm1080, %v1114, %v1117
        %v1119 = vshrl.u32 %v996, 16
        %v1121 = vor.u32 %v1119, %v1117
        %v1122 = vshll.u32 %v998, 16
        %v1124 = vrot.slane %v1122, 1
        %v1125 = vsel %vm1080, %v1121, %v1124
        %v1126 = vshrl.u32 %v998, 16
        %v1128 = vor.u32 %v1126, %v1124
        %v1129 = vshll.u32 %v1000, 16
        %v1131 = vrot.slane %v1129, 1
        %v1132 = vsel %vm1080, %v1128, %v1131
        %v1133 = vshrl.u32 %v1000, 16
        %v1135 = vor.u32 %v1133, %v1131
        %v1136 = vshll.u32 %v1002, 16
        %v1138 = vrot.slane %v1136, 1
        %v1139 = vsel %vm1080, %v1135, %v1138
        %v1140 = vshrl.u32 %v1002, 16
        %v1142 = vor.u32 %v1140, %v1138
        %v1143 = vshll.u32 %v1004, 16
        %v1145 = vrot.slane %v1143, 1
        %v1146 = vsel %vm1080, %v1142, %v1145
        %v1147 = vshrl.u32 %v1004, 16
        %v1149 = vor.u32 %v1147, %v1145
        %v1150 = vshll.u32 %v1006, 16
        %v1152 = vrot.slane %v1150, 1
        %v1153 = vsel %vm1080, %v1149, %v1152
        %v1154 = vshrl.u32 %v1006, 16
        %v1156 = vor.u32 %v1154, %v1152
        %v1157 = vshll.u32 %v1008, 16
        %v1159 = vrot.slane %v1157, 1
        %v1160 = vsel %vm1080, %v1156, %v1159
        %v1161 = vshrl.u32 %v1008, 16
        %v1163 = vor.u32 %v1161, %v1159
        %v1164 = vshll.u32 %v1010, 16
        %v1166 = vrot.slane %v1164, 1
        %v1167 = vsel %vm1080, %v1163, %v1166
        %v1168 = vshrl.u32 %v1010, 16
        %v1170 = vor.u32 %v1168, %v1166
        %v1171 = vshll.u32 %v1012, 16
        %v1173 = vrot.slane %v1171, 1
        %v1174 = vsel %vm1080, %v1170, %v1173
        %v1175 = vshrl.u32 %v1012, 16
        %v1177 = vor.u32 %v1175, %v1173
        %v1178 = vshll.u32 %v1014, 16
        %v1180 = vrot.slane %v1178, 1
        %v1181 = vsel %vm1080, %v1177, %v1180
        %v1182 = vshrl.u32 %v1014, 16
        %v1184 = vor.u32 %v1182, %v1180
        %v1185 = vshll.u32 %v1016, 16
        %v1187 = vrot.slane %v1185, 1
        %v1188 = vsel %vm1080, %v1184, %v1187
        %v1189 = vshrl.u32 %v1016, 16
        %v1191 = vor.u32 %v1189, %v1187
        %v1192 = vshll.u32 %v1018, 16
        %v1194 = vrot.slane %v1192, 1
        %v1195 = vsel %vm1080, %v1191, %v1194
        %v1196 = vshrl.u32 %v1018, 16
        %v1198 = vor.u32 %v1196, %v1194
        %v1199 = vshll.u32 %v1020, 16
        %v1201 = vrot.slane %v1199, 1
        %v1202 = vsel %vm1080, %v1198, %v1201
        %v1203 = vshrl.u32 %v1020, 16
        %v1205 = vor.u32 %v1203, %v1201
        %v1206 = vshll.u32 %v1022, 16
        %v1208 = vrot.slane %v1206, 1
        %v1209 = vsel %vm1080, %v1205, %v1208
        %v1210 = vshrl.u32 %v1022, 16
        %v1212 = vor.u32 %v1210, %v1208
        %v1213 = vshll.u32 %v1024, 16
        %v1215 = vrot.slane %v1213, 1
        %v1216 = vsel %vm1080, %v1212, %v1215
        %v1217 = vshrl.u32 %v1024, 16
        %v1219 = vor.u32 %v1217, %v1215
        %v1220 = vshll.u32 %v1026, 16
        %v1222 = vrot.slane %v1220, 1
        %v1223 = vsel %vm1080, %v1219, %v1222
        %v1224 = vshrl.u32 %v1026, 16
        %v1226 = vor.u32 %v1224, %v1222
        %v1227 = vshll.u32 %v1028, 16
        %v1229 = vrot.slane %v1227, 1
        %v1230 = vsel %vm1080, %v1226, %v1229
        %v1231 = vshrl.u32 %v1028, 16
        %v1233 = vor.u32 %v1231, %v1229
        %v1234 = vshll.u32 %v1030, 16
        %v1236 = vrot.slane %v1234, 1
        %v1237 = vsel %vm1080, %v1233, %v1236
        %v1238 = vshrl.u32 %v1030, 16
        %v1240 = vor.u32 %v1238, %v1236
        %v1241 = vshll.u32 %v1032, 16
        %v1243 = vrot.slane %v1241, 1
        %v1244 = vsel %vm1080, %v1240, %v1243
        %v1245 = vshrl.u32 %v1032, 16
        %v1247 = vor.u32 %v1245, %v1243
        %v1248 = vshll.u32 %v1034, 16
        %v1250 = vrot.slane %v1248, 1
        %v1251 = vsel %vm1080, %v1247, %v1250
        %v1252 = vshrl.u32 %v1034, 16
        %v1254 = vor.u32 %v1252, %v1250
        %v1255 = vshll.u32 %v1036, 16
        %v1257 = vrot.slane %v1255, 1
        %v1258 = vsel %vm1080, %v1254, %v1257
        %v1259 = vshrl.u32 %v1036, 16
        %v1261 = vor.u32 %v1259, %v1257
        %v1262 = vshll.u32 %v1038, 16
        %v1264 = vrot.slane %v1262, 1
        %v1265 = vsel %vm1080, %v1261, %v1264
        %v1266 = vshrl.u32 %v1038, 16
        %v1268 = vor.u32 %v1266, %v1264
        %v1269 = vshll.u32 %v1040, 16
        %v1271 = vrot.slane %v1269, 1
        %v1272 = vsel %vm1080, %v1268, %v1271
        %v1273 = vshrl.u32 %v1040, 16
        %v1275 = vor.u32 %v1273, %v1271
        %v1276 = vshll.u32 %v1042, 16
        %v1278 = vrot.slane %v1276, 1
        %v1279 = vsel %vm1080, %v1275, %v1278
        %v1280 = vshrl.u32 %v1042, 16
        %v1282 = vor.u32 %v1280, %v1278
        %v1283 = vshll.u32 %v1044, 16
        %v1285 = vrot.slane %v1283, 1
        %v1286 = vsel %vm1080, %v1282, %v1285
        %v1287 = vshrl.u32 %v1044, 16
        %v1289 = vor.u32 %v1287, %v1285
        %v1290 = vshll.u32 %v1046, 16
        %v1292 = vrot.slane %v1290, 1
        %v1293 = vsel %vm1080, %v1289, %v1292
        %v1294 = vshrl.u32 %v1046, 16
        %v1296 = vor.u32 %v1294, %v1292
        %v1297 = vshll.u32 %v1048, 16
        %v1299 = vrot.slane %v1297, 1
        %v1300 = vsel %vm1080, %v1296, %v1299
        %v1301 = vshrl.u32 %v1048, 16
        %v1303 = vor.u32 %v1301, %v1299
        %v1304 = vshll.u32 %v1050, 16
        %v1306 = vrot.slane %v1304, 1
        %v1307 = vsel %vm1080, %v1303, %v1306
        %v1322 = vunpack.c.l.b16 %v1066
        %v1323 = vunpack.c.l.b16 %v1067
        %v1324 = vunpack.c.l.b16 %v1068
        %v1325 = vunpack.c.l.b16 %v1069
        %v1326 = vunpack.c.l.b16 %v1070
        %v1327 = vunpack.c.l.b16 %v1071
        %v1328 = vunpack.c.l.b16 %v1072
        %v1329 = vunpack.c.l.b16 %v1073
        %v1330 = vunpack.c.l.b16 %v1074
        %v1331 = vunpack.c.l.b16 %v1075
        %v1332 = vunpack.c.l.b16 %v1076
        %v1333 = vunpack.c.l.b16 %v1077
        %v1334 = vunpack.c.l.b16 %v1078
        %v1335 = vunpack.c.l.b16 %v1079
        %v1336 = vpack.c.b16 %v1323, %v1322
        %v1337 = vpack.c.b16 %v1325, %v1324
        %v1338 = vpack.c.b16 %v1327, %v1326
        %v1339 = vpack.c.b16 %v1329, %v1328
        %v1340 = vpack.c.b16 %v1331, %v1330
        %v1341 = vpack.c.b16 %v1333, %v1332
        %v1342 = vpack.c.b16 %v1335, %v1334
        %vm1349 = vcmask 883712
        %v1351 = vsel %vm1349, %v1090, 0
        %v1354 = vsel %vm1349, %v1097, 0
        %v1357 = vsel %vm1349, %v1104, 0
        %v1360 = vsel %vm1349, %v1111, 0
        %v1363 = vsel %vm1349, %v1118, 0
        %v1366 = vsel %vm1349, %v1125, 0
        %v1369 = vsel %vm1349, %v1132, 0
        %v1372 = vsel %vm1349, %v1139, 0
        %v1375 = vsel %vm1349, %v1146, 0
        %v1378 = vsel %vm1349, %v1153, 0
        %v1381 = vsel %vm1349, %v1160, 0
        %v1384 = vsel %vm1349, %v1167, 0
        %v1387 = vsel %vm1349, %v1174, 0
        %v1390 = vsel %vm1349, %v1181, 0
        %v1393 = vsel %vm1349, %v1188, 0
        %v1396 = vsel %vm1349, %v1195, 0
        %v1399 = vsel %vm1349, %v1202, 0
        %v1402 = vsel %vm1349, %v1209, 0
        %v1405 = vsel %vm1349, %v1216, 0
        %v1408 = vsel %vm1349, %v1223, 0
        %v1411 = vsel %vm1349, %v1230, 0
        %v1414 = vsel %vm1349, %v1237, 0
        %v1417 = vsel %vm1349, %v1244, 0
        %v1420 = vsel %vm1349, %v1251, 0
        %v1423 = vsel %vm1349, %v1258, 0
        %v1426 = vsel %vm1349, %v1265, 0
        %v1429 = vsel %vm1349, %v1272, 0
        %v1432 = vsel %vm1349, %v1279, 0
        %v1435 = vsel %vm1349, %v1286, 0
        %v1438 = vsel %vm1349, %v1293, 0
        %v1441 = vsel %vm1349, %v1300, 0
        %v1444 = vsel %vm1349, %v1307, 0
        %vm1446 = vcmask 1045504
        %v1448 = vsel %vm1446, %v1342, 0
        %1450 = vmatprep.subr.bf16.mxu0 0
        %1451 = vmatpush1.bf16.msra.mxu0 %v1336
        %1452 = vmatprep.subr.bf16.mxu0 0
        %1453 = vmatpush1.bf16.msra.mxu0 %v1337
        %1454 = vmatprep.subr.bf16.mxu0 0
        %1455 = vmatpush1.bf16.msra.mxu0 %v1338
        %1456 = vmatprep.subr.bf16.mxu0 0
        %1457 = vmatpush1.bf16.msra.mxu0 %v1339
        %1458 = vmatprep.subr.bf16.mxu0 0
        %1459 = vmatpush1.bf16.msra.mxu0 %v1340
        %1460 = vmatprep.subr.bf16.mxu0 0
        %1461 = vmatpush1.bf16.msra.mxu0 %v1341
        %1462 = vmatprep.subr.bf16.mxu0 0
        %1463 = vmatpush1.bf16.msra.mxu0 %v1448
        %1464 = vmatprep.subr.bf16.mxu0 0
        %1465 = vmatpush1.bf16.msra.mxu0 0
        %1466 = vmatprep.subr.bf16.mxu0 0
        %1467 = vmatpush1.bf16.msra.mxu0 0
        %1468 = vmatprep.subr.bf16.mxu0 0
        %1469 = vmatpush1.bf16.msra.mxu0 0
        %1470 = vmatprep.subr.bf16.mxu0 0
        %1471 = vmatpush1.bf16.msra.mxu0 0
        %1472 = vmatprep.subr.bf16.mxu0 0
        %1473 = vmatpush1.bf16.msra.mxu0 0
        %1474 = vmatprep.subr.bf16.mxu0 0
        %1475 = vmatpush1.bf16.msra.mxu0 0
        %1476 = vmatprep.subr.bf16.mxu0 0
        %1477 = vmatpush1.bf16.msra.mxu0 0
        %1478 = vmatprep.subr.bf16.mxu0 0
        %1479 = vmatpush1.bf16.msra.mxu0 0
        %1480 = vmatprep.subr.bf16.mxu0 0
        %1481 = vmatpush1.bf16.msra.mxu0 0
        %1482 = vmatprep.mubr.bf16.mxu0 0
        %1483 = vmatmul.mubr.bf16.gmra.mrb[0].mxu0 %v1351
        %v1484 = vpop.f32.mrb[0].mxu0
        %v1485 = vpop.f32.mrb[0].mxu0
        %v1486 = vpop.f32.mrb[0].mxu0
        %v1487 = vadd.f32 0.0, %v1486
        %v1488 = vpop.f32.mrb[0].mxu0
        %1489 = vmatprep.mubr.bf16.mxu0 0
        %1490 = vmatmul.mubr.bf16.gmra.mrb[0].mxu0 %v1354
        %v1491 = vpop.f32.mrb[0].mxu0
        %v1492 = vadd.f32 0.0, %v1491
        %v1493 = vpop.f32.mrb[0].mxu0
        %v1494 = vpop.f32.mrb[0].mxu0
        %v1495 = vadd.f32 0.0, %v1494
        %v1496 = vpop.f32.mrb[0].mxu0
        %1497 = vmatprep.mubr.bf16.mxu0 0
        %1498 = vmatmul.mubr.bf16.gmra.mrb[0].mxu0 %v1357
        %v1499 = vpop.f32.mrb[0].mxu0
        %v1500 = vpop.f32.mrb[0].mxu0
        %v1501 = vpop.f32.mrb[0].mxu0
        %v1502 = vadd.f32 0.0, %v1501
        %v1503 = vpop.f32.mrb[0].mxu0
        %1504 = vmatprep.mubr.bf16.mxu0 0
        %1505 = vmatmul.mubr.bf16.gmra.mrb[0].mxu0 %v1360
        %v1506 = vpop.f32.mrb[0].mxu0
        %v1507 = vadd.f32 0.0, %v1506
        %v1508 = vpop.f32.mrb[0].mxu0
        %v1509 = vpop.f32.mrb[0].mxu0
        %v1510 = vadd.f32 0.0, %v1509
        %v1511 = vpop.f32.mrb[0].mxu0
        %1512 = vmatprep.mubr.bf16.mxu0 0
        %1513 = vmatmul.mubr.bf16.gmra.mrb[0].mxu0 %v1363
        %v1514 = vpop.f32.mrb[0].mxu0
        %v1515 = vpop.f32.mrb[0].mxu0
        %v1516 = vpop.f32.mrb[0].mxu0
        %v1517 = vadd.f32 0.0, %v1516
        %v1518 = vpop.f32.mrb[0].mxu0
        %1519 = vmatprep.mubr.bf16.mxu0 0
        %1520 = vmatmul.mubr.bf16.gmra.mrb[0].mxu0 %v1366
        %v1521 = vpop.f32.mrb[0].mxu0
        %v1522 = vadd.f32 0.0, %v1521
        %v1523 = vpop.f32.mrb[0].mxu0
        %v1524 = vpop.f32.mrb[0].mxu0
        %v1525 = vadd.f32 0.0, %v1524
        %v1526 = vpop.f32.mrb[0].mxu0
        %1527 = vmatprep.mubr.bf16.mxu0 0
        %1528 = vmatmul.mubr.bf16.gmra.mrb[0].mxu0 %v1369
        %v1529 = vpop.f32.mrb[0].mxu0
        %v1530 = vpop.f32.mrb[0].mxu0
        %v1531 = vpop.f32.mrb[0].mxu0
        %v1532 = vadd.f32 0.0, %v1531
        %v1533 = vpop.f32.mrb[0].mxu0
        %1534 = vmatprep.mubr.bf16.mxu0 0
        %1535 = vmatmul.mubr.bf16.gmra.mrb[0].mxu0 %v1372
        %v1536 = vpop.f32.mrb[0].mxu0
        %v1537 = vadd.f32 0.0, %v1536
        %v1538 = vpop.f32.mrb[0].mxu0
        %v1539 = vpop.f32.mrb[0].mxu0
        %v1540 = vadd.f32 0.0, %v1539
        %v1541 = vpop.f32.mrb[0].mxu0
        %1542 = vmatprep.mubr.bf16.mxu0 0
        %1543 = vmatmul.mubr.bf16.gmra.mrb[0].mxu0 %v1375
        %v1544 = vpop.f32.mrb[0].mxu0
        %v1545 = vpop.f32.mrb[0].mxu0
        %v1546 = vpop.f32.mrb[0].mxu0
        %v1547 = vadd.f32 0.0, %v1546
        %v1548 = vpop.f32.mrb[0].mxu0
        %1549 = vmatprep.mubr.bf16.mxu0 0
        %1550 = vmatmul.mubr.bf16.gmra.mrb[0].mxu0 %v1378
        %v1551 = vpop.f32.mrb[0].mxu0
        %v1552 = vadd.f32 0.0, %v1551
        %v1553 = vpop.f32.mrb[0].mxu0
        %v1554 = vpop.f32.mrb[0].mxu0
        %v1555 = vadd.f32 0.0, %v1554
        %v1556 = vpop.f32.mrb[0].mxu0
        %1557 = vmatprep.mubr.bf16.mxu0 0
        %1558 = vmatmul.mubr.bf16.gmra.mrb[0].mxu0 %v1381
        %v1559 = vpop.f32.mrb[0].mxu0
        %v1560 = vpop.f32.mrb[0].mxu0
        %v1561 = vpop.f32.mrb[0].mxu0
        %v1562 = vadd.f32 0.0, %v1561
        %v1563 = vpop.f32.mrb[0].mxu0
        %1564 = vmatprep.mubr.bf16.mxu0 0
        %1565 = vmatmul.mubr.bf16.gmra.mrb[0].mxu0 %v1384
        %v1566 = vpop.f32.mrb[0].mxu0
        %v1567 = vadd.f32 0.0, %v1566
        %v1568 = vpop.f32.mrb[0].mxu0
        %v1569 = vpop.f32.mrb[0].mxu0
        %v1570 = vadd.f32 0.0, %v1569
        %v1571 = vpop.f32.mrb[0].mxu0
        %1572 = vmatprep.mubr.bf16.mxu0 0
        %1573 = vmatmul.mubr.bf16.gmra.mrb[0].mxu0 %v1387
        %v1574 = vpop.f32.mrb[0].mxu0
        %v1575 = vpop.f32.mrb[0].mxu0
        %v1576 = vpop.f32.mrb[0].mxu0
        %v1577 = vadd.f32 0.0, %v1576
        %v1578 = vpop.f32.mrb[0].mxu0
        %1579 = vmatprep.mubr.bf16.mxu0 0
        %1580 = vmatmul.mubr.bf16.gmra.mrb[0].mxu0 %v1390
        %v1581 = vpop.f32.mrb[0].mxu0
        %v1582 = vadd.f32 0.0, %v1581
        %v1583 = vpop.f32.mrb[0].mxu0
        %v1584 = vpop.f32.mrb[0].mxu0
        %v1585 = vadd.f32 0.0, %v1584
        %v1586 = vpop.f32.mrb[0].mxu0
        %1587 = vmatprep.mubr.bf16.mxu0 0
        %1588 = vmatmul.mubr.bf16.gmra.mrb[0].mxu0 %v1393
        %v1589 = vpop.f32.mrb[0].mxu0
        %v1590 = vpop.f32.mrb[0].mxu0
        %v1591 = vpop.f32.mrb[0].mxu0
        %v1592 = vadd.f32 0.0, %v1591
        %v1593 = vpop.f32.mrb[0].mxu0
        %1594 = vmatprep.mubr.bf16.mxu0 0
        %1595 = vmatmul.mubr.bf16.gmra.mrb[0].mxu0 %v1396
        %v1596 = vpop.f32.mrb[0].mxu0
        %v1597 = vadd.f32 0.0, %v1596
        %v1598 = vpop.f32.mrb[0].mxu0
        %v1599 = vpop.f32.mrb[0].mxu0
        %v1600 = vadd.f32 0.0, %v1599
        %v1601 = vpop.f32.mrb[0].mxu0
        %1602 = vmatprep.mubr.bf16.mxu0 0
        %1603 = vmatmul.mubr.bf16.gmra.mrb[0].mxu0 %v1399
        %v1604 = vpop.f32.mrb[0].mxu0
        %v1605 = vpop.f32.mrb[0].mxu0
        %v1606 = vpop.f32.mrb[0].mxu0
        %v1607 = vadd.f32 0.0, %v1606
        %v1608 = vpop.f32.mrb[0].mxu0
        %1609 = vmatprep.mubr.bf16.mxu0 0
        %1610 = vmatmul.mubr.bf16.gmra.mrb[0].mxu0 %v1402
        %v1611 = vpop.f32.mrb[0].mxu0
        %v1612 = vadd.f32 0.0, %v1611
        %v1613 = vpop.f32.mrb[0].mxu0
        %v1614 = vpop.f32.mrb[0].mxu0
        %v1615 = vadd.f32 0.0, %v1614
        %v1616 = vpop.f32.mrb[0].mxu0
        %1617 = vmatprep.mubr.bf16.mxu0 0
        %1618 = vmatmul.mubr.bf16.gmra.mrb[0].mxu0 %v1405
        %v1619 = vpop.f32.mrb[0].mxu0
        %v1620 = vpop.f32.mrb[0].mxu0
        %v1621 = vpop.f32.mrb[0].mxu0
        %v1622 = vadd.f32 0.0, %v1621
        %v1623 = vpop.f32.mrb[0].mxu0
        %1624 = vmatprep.mubr.bf16.mxu0 0
        %1625 = vmatmul.mubr.bf16.gmra.mrb[0].mxu0 %v1408
        %v1626 = vpop.f32.mrb[0].mxu0
        %v1627 = vadd.f32 0.0, %v1626
        %v1628 = vpop.f32.mrb[0].mxu0
        %v1629 = vpop.f32.mrb[0].mxu0
        %v1630 = vadd.f32 0.0, %v1629
        %v1631 = vpop.f32.mrb[0].mxu0
        %1632 = vmatprep.mubr.bf16.mxu0 0
        %1633 = vmatmul.mubr.bf16.gmra.mrb[0].mxu0 %v1411
        %v1634 = vpop.f32.mrb[0].mxu0
        %v1635 = vpop.f32.mrb[0].mxu0
        %v1636 = vpop.f32.mrb[0].mxu0
        %v1637 = vadd.f32 0.0, %v1636
        %v1638 = vpop.f32.mrb[0].mxu0
        %1639 = vmatprep.mubr.bf16.mxu0 0
        %1640 = vmatmul.mubr.bf16.gmra.mrb[0].mxu0 %v1414
        %v1641 = vpop.f32.mrb[0].mxu0
        %v1642 = vadd.f32 0.0, %v1641
        %v1643 = vpop.f32.mrb[0].mxu0
        %v1644 = vpop.f32.mrb[0].mxu0
        %v1645 = vadd.f32 0.0, %v1644
        %v1646 = vpop.f32.mrb[0].mxu0
        %1647 = vmatprep.mubr.bf16.mxu0 0
        %1648 = vmatmul.mubr.bf16.gmra.mrb[0].mxu0 %v1417
        %v1649 = vpop.f32.mrb[0].mxu0
        %v1650 = vpop.f32.mrb[0].mxu0
        %v1651 = vpop.f32.mrb[0].mxu0
        %v1652 = vadd.f32 0.0, %v1651
        %v1653 = vpop.f32.mrb[0].mxu0
        %1654 = vmatprep.mubr.bf16.mxu0 0
        %1655 = vmatmul.mubr.bf16.gmra.mrb[0].mxu0 %v1420
        %v1656 = vpop.f32.mrb[0].mxu0
        %v1657 = vadd.f32 0.0, %v1656
        %v1658 = vpop.f32.mrb[0].mxu0
        %v1659 = vpop.f32.mrb[0].mxu0
        %v1660 = vadd.f32 0.0, %v1659
        %v1661 = vpop.f32.mrb[0].mxu0
        %1662 = vmatprep.mubr.bf16.mxu0 0
        %1663 = vmatmul.mubr.bf16.gmra.mrb[0].mxu0 %v1423
        %v1664 = vpop.f32.mrb[0].mxu0
        %v1665 = vpop.f32.mrb[0].mxu0
        %v1666 = vpop.f32.mrb[0].mxu0
        %v1667 = vadd.f32 0.0, %v1666
        %v1668 = vpop.f32.mrb[0].mxu0
        %1669 = vmatprep.mubr.bf16.mxu0 0
        %1670 = vmatmul.mubr.bf16.gmra.mrb[0].mxu0 %v1426
        %v1671 = vpop.f32.mrb[0].mxu0
        %v1672 = vadd.f32 0.0, %v1671
        %v1673 = vpop.f32.mrb[0].mxu0
        %v1674 = vpop.f32.mrb[0].mxu0
        %v1675 = vadd.f32 0.0, %v1674
        %v1676 = vpop.f32.mrb[0].mxu0
        %1677 = vmatprep.mubr.bf16.mxu0 0
        %1678 = vmatmul.mubr.bf16.gmra.mrb[0].mxu0 %v1429
        %v1679 = vpop.f32.mrb[0].mxu0
        %v1680 = vpop.f32.mrb[0].mxu0
        %v1681 = vpop.f32.mrb[0].mxu0
        %v1682 = vadd.f32 0.0, %v1681
        %v1683 = vpop.f32.mrb[0].mxu0
        %1684 = vmatprep.mubr.bf16.mxu0 0
        %1685 = vmatmul.mubr.bf16.gmra.mrb[0].mxu0 %v1432
        %v1686 = vpop.f32.mrb[0].mxu0
        %v1687 = vadd.f32 0.0, %v1686
        %v1688 = vpop.f32.mrb[0].mxu0
        %v1689 = vpop.f32.mrb[0].mxu0
        %v1690 = vadd.f32 0.0, %v1689
        %v1691 = vpop.f32.mrb[0].mxu0
        %1692 = vmatprep.mubr.bf16.mxu0 0
        %1693 = vmatmul.mubr.bf16.gmra.mrb[0].mxu0 %v1435
        %v1694 = vpop.f32.mrb[0].mxu0
        %v1695 = vpop.f32.mrb[0].mxu0
        %v1696 = vpop.f32.mrb[0].mxu0
        %v1697 = vadd.f32 0.0, %v1696
        %v1698 = vpop.f32.mrb[0].mxu0
        %1699 = vmatprep.mubr.bf16.mxu0 0
        %1700 = vmatmul.mubr.bf16.gmra.mrb[0].mxu0 %v1438
        %v1701 = vpop.f32.mrb[0].mxu0
        %v1702 = vadd.f32 0.0, %v1701
        %v1703 = vpop.f32.mrb[0].mxu0
        %v1704 = vpop.f32.mrb[0].mxu0
        %v1705 = vadd.f32 0.0, %v1704
        %v1706 = vpop.f32.mrb[0].mxu0
        %1707 = vmatprep.mubr.bf16.mxu0 0
        %1708 = vmatmul.mubr.bf16.gmra.mrb[0].mxu0 %v1441
        %v1709 = vpop.f32.mrb[0].mxu0
        %v1710 = vpop.f32.mrb[0].mxu0
        %v1711 = vpop.f32.mrb[0].mxu0
        %v1712 = vadd.f32 0.0, %v1711
        %v1713 = vpop.f32.mrb[0].mxu0
        %1714 = vmatprep.mubr.bf16.mxu0 0
        %1715 = vmatmul.mubr.bf16.gmra.mrb[0].mxu0 %v1444
        %v1716 = vpop.f32.mrb[0].mxu0
        %v1717 = vadd.f32 0.0, %v1716
        %v1718 = vpop.f32.mrb[0].mxu0
        %v1719 = vpop.f32.mrb[0].mxu0
        %v1720 = vadd.f32 0.0, %v1719
        %v1721 = vpop.f32.mrb[0].mxu0
        %1722 = vdwg.mxu0
        %v1737 = vunpack.c.l.b16 %v1051
        %v1738 = vunpack.c.l.b16 %v1052
        %v1739 = vunpack.c.l.b16 %v1053
        %v1740 = vunpack.c.l.b16 %v1054
        %v1741 = vunpack.c.l.b16 %v1055
        %v1742 = vunpack.c.l.b16 %v1056
        %v1743 = vunpack.c.l.b16 %v1057
        %v1744 = vunpack.c.l.b16 %v1058
        %v1745 = vunpack.c.l.b16 %v1059
        %v1746 = vunpack.c.l.b16 %v1060
        %v1747 = vunpack.c.l.b16 %v1061
        %v1748 = vunpack.c.l.b16 %v1062
        %v1749 = vunpack.c.l.b16 %v1063
        %v1750 = vunpack.c.l.b16 %v1064
        %v1751 = vpack.c.b16 %v1738, %v1737
        %v1752 = vpack.c.b16 %v1740, %v1739
        %v1753 = vpack.c.b16 %v1742, %v1741
        %v1754 = vpack.c.b16 %v1744, %v1743
        %v1755 = vpack.c.b16 %v1746, %v1745
        %v1756 = vpack.c.b16 %v1748, %v1747
        %v1757 = vpack.c.b16 %v1750, %v1749
        %v1764 = vsel %vm1349, %v986, 0
        %v1766 = vsel %vm1349, %v988, 0
        %v1768 = vsel %vm1349, %v990, 0
        %v1770 = vsel %vm1349, %v992, 0
        %v1772 = vsel %vm1349, %v994, 0
        %v1774 = vsel %vm1349, %v996, 0
        %v1776 = vsel %vm1349, %v998, 0
        %v1778 = vsel %vm1349, %v1000, 0
        %v1780 = vsel %vm1349, %v1002, 0
        %v1782 = vsel %vm1349, %v1004, 0
        %v1784 = vsel %vm1349, %v1006, 0
        %v1786 = vsel %vm1349, %v1008, 0
        %v1788 = vsel %vm1349, %v1010, 0
        %v1790 = vsel %vm1349, %v1012, 0
        %v1792 = vsel %vm1349, %v1014, 0
        %v1794 = vsel %vm1349, %v1016, 0
        %v1796 = vsel %vm1349, %v1018, 0
        %v1798 = vsel %vm1349, %v1020, 0
        %v1800 = vsel %vm1349, %v1022, 0
        %v1802 = vsel %vm1349, %v1024, 0
        %v1804 = vsel %vm1349, %v1026, 0
        %v1806 = vsel %vm1349, %v1028, 0
        %v1808 = vsel %vm1349, %v1030, 0
        %v1810 = vsel %vm1349, %v1032, 0
        %v1812 = vsel %vm1349, %v1034, 0
        %v1814 = vsel %vm1349, %v1036, 0
        %v1816 = vsel %vm1349, %v1038, 0
        %v1818 = vsel %vm1349, %v1040, 0
        %v1820 = vsel %vm1349, %v1042, 0
        %v1822 = vsel %vm1349, %v1044, 0
        %v1824 = vsel %vm1349, %v1046, 0
        %v1826 = vsel %vm1349, %v1048, 0
        %v1829 = vsel %vm1446, %v1757, 0
        %1831 = vmatprep.subr.bf16.mxu0 0
        %1832 = vmatpush1.bf16.msra.mxu0 %v1751
        %1833 = vmatprep.subr.bf16.mxu0 0
        %1834 = vmatpush1.bf16.msra.mxu0 %v1752
        %1835 = vmatprep.subr.bf16.mxu0 0
        %1836 = vmatpush1.bf16.msra.mxu0 %v1753
        %1837 = vmatprep.subr.bf16.mxu0 0
        %1838 = vmatpush1.bf16.msra.mxu0 %v1754
        %1839 = vmatprep.subr.bf16.mxu0 0
        %1840 = vmatpush1.bf16.msra.mxu0 %v1755
        %1841 = vmatprep.subr.bf16.mxu0 0
        %1842 = vmatpush1.bf16.msra.mxu0 %v1756
        %1843 = vmatprep.subr.bf16.mxu0 0
        %1844 = vmatpush1.bf16.msra.mxu0 %v1829
        %1845 = vmatprep.subr.bf16.mxu0 0
        %1846 = vmatpush1.bf16.msra.mxu0 0
        %1847 = vmatprep.subr.bf16.mxu0 0
        %1848 = vmatpush1.bf16.msra.mxu0 0
        %1849 = vmatprep.subr.bf16.mxu0 0
        %1850 = vmatpush1.bf16.msra.mxu0 0
        %1851 = vmatprep.subr.bf16.mxu0 0
        %1852 = vmatpush1.bf16.msra.mxu0 0
        %1853 = vmatprep.subr.bf16.mxu0 0
        %1854 = vmatpush1.bf16.msra.mxu0 0
        %1855 = vmatprep.subr.bf16.mxu0 0
        %1856 = vmatpush1.bf16.msra.mxu0 0
        %1857 = vmatprep.subr.bf16.mxu0 0
        %1858 = vmatpush1.bf16.msra.mxu0 0
        %1859 = vmatprep.subr.bf16.mxu0 0
        %1860 = vmatpush1.bf16.msra.mxu0 0
        %1861 = vmatprep.subr.bf16.mxu0 0
        %1862 = vmatpush1.bf16.msra.mxu0 0
        %1863 = vmatprep.mubr.bf16.mxu0 0
        %1864 = vmatmul.mubr.bf16.gmra.mrb[0].mxu0 %v1764
        %v1865 = vpop.f32.mrb[0].mxu0
        %v1866 = vpop.f32.mrb[0].mxu0
        %v1867 = vpop.f32.mrb[0].mxu0
        %v1868 = vadd.f32 %v1487, %v1867
        %v1869 = vpop.f32.mrb[0].mxu0
        %1870 = vmatprep.mubr.bf16.mxu0 0
        %1871 = vmatmul.mubr.bf16.gmra.mrb[0].mxu0 %v1766
        %v1872 = vpop.f32.mrb[0].mxu0
        %v1873 = vadd.f32 %v1492, %v1872
        %v1874 = vpop.f32.mrb[0].mxu0
        %v1875 = vpop.f32.mrb[0].mxu0
        %v1876 = vadd.f32 %v1495, %v1875
        %v1877 = vpop.f32.mrb[0].mxu0
        %1878 = vmatprep.mubr.bf16.mxu0 0
        %1879 = vmatmul.mubr.bf16.gmra.mrb[0].mxu0 %v1768
        %v1880 = vpop.f32.mrb[0].mxu0
        %v1881 = vpop.f32.mrb[0].mxu0
        %v1882 = vpop.f32.mrb[0].mxu0
        %v1883 = vadd.f32 %v1502, %v1882
        %v1884 = vpop.f32.mrb[0].mxu0
        %1885 = vmatprep.mubr.bf16.mxu0 0
        %1886 = vmatmul.mubr.bf16.gmra.mrb[0].mxu0 %v1770
        %v1887 = vpop.f32.mrb[0].mxu0
        %v1888 = vadd.f32 %v1507, %v1887
        %v1889 = vpop.f32.mrb[0].mxu0
        %v1890 = vpop.f32.mrb[0].mxu0
        %v1891 = vadd.f32 %v1510, %v1890
        %v1892 = vpop.f32.mrb[0].mxu0
        %1893 = vmatprep.mubr.bf16.mxu0 0
        %1894 = vmatmul.mubr.bf16.gmra.mrb[0].mxu0 %v1772
        %v1895 = vpop.f32.mrb[0].mxu0
        %v1896 = vpop.f32.mrb[0].mxu0
        %v1897 = vpop.f32.mrb[0].mxu0
        %v1898 = vadd.f32 %v1517, %v1897
        %v1899 = vpop.f32.mrb[0].mxu0
        %1900 = vmatprep.mubr.bf16.mxu0 0
        %1901 = vmatmul.mubr.bf16.gmra.mrb[0].mxu0 %v1774
        %v1902 = vpop.f32.mrb[0].mxu0
        %v1903 = vadd.f32 %v1522, %v1902
        %v1904 = vpop.f32.mrb[0].mxu0
        %v1905 = vpop.f32.mrb[0].mxu0
        %v1906 = vadd.f32 %v1525, %v1905
        %v1907 = vpop.f32.mrb[0].mxu0
        %1908 = vmatprep.mubr.bf16.mxu0 0
        %1909 = vmatmul.mubr.bf16.gmra.mrb[0].mxu0 %v1776
        %v1910 = vpop.f32.mrb[0].mxu0
        %v1911 = vpop.f32.mrb[0].mxu0
        %v1912 = vpop.f32.mrb[0].mxu0
        %v1913 = vadd.f32 %v1532, %v1912
        %v1914 = vpop.f32.mrb[0].mxu0
        %1915 = vmatprep.mubr.bf16.mxu0 0
        %1916 = vmatmul.mubr.bf16.gmra.mrb[0].mxu0 %v1778
        %v1917 = vpop.f32.mrb[0].mxu0
        %v1918 = vadd.f32 %v1537, %v1917
        %v1919 = vpop.f32.mrb[0].mxu0
        %v1920 = vpop.f32.mrb[0].mxu0
        %v1921 = vadd.f32 %v1540, %v1920
        %v1922 = vpop.f32.mrb[0].mxu0
        %1923 = vmatprep.mubr.bf16.mxu0 0
        %1924 = vmatmul.mubr.bf16.gmra.mrb[0].mxu0 %v1780
        %v1925 = vpop.f32.mrb[0].mxu0
        %v1926 = vpop.f32.mrb[0].mxu0
        %v1927 = vpop.f32.mrb[0].mxu0
        %v1928 = vadd.f32 %v1547, %v1927
        %v1929 = vpop.f32.mrb[0].mxu0
        %1930 = vmatprep.mubr.bf16.mxu0 0
        %1931 = vmatmul.mubr.bf16.gmra.mrb[0].mxu0 %v1782
        %v1932 = vpop.f32.mrb[0].mxu0
        %v1933 = vadd.f32 %v1552, %v1932
        %v1934 = vpop.f32.mrb[0].mxu0
        %v1935 = vpop.f32.mrb[0].mxu0
        %v1936 = vadd.f32 %v1555, %v1935
        %v1937 = vpop.f32.mrb[0].mxu0
        %1938 = vmatprep.mubr.bf16.mxu0 0
        %1939 = vmatmul.mubr.bf16.gmra.mrb[0].mxu0 %v1784
        %v1940 = vpop.f32.mrb[0].mxu0
        %v1941 = vpop.f32.mrb[0].mxu0
        %v1942 = vpop.f32.mrb[0].mxu0
        %v1943 = vadd.f32 %v1562, %v1942
        %v1944 = vpop.f32.mrb[0].mxu0
        %1945 = vmatprep.mubr.bf16.mxu0 0
        %1946 = vmatmul.mubr.bf16.gmra.mrb[0].mxu0 %v1786
        %v1947 = vpop.f32.mrb[0].mxu0
        %v1948 = vadd.f32 %v1567, %v1947
        %v1949 = vpop.f32.mrb[0].mxu0
        %v1950 = vpop.f32.mrb[0].mxu0
        %v1951 = vadd.f32 %v1570, %v1950
        %v1952 = vpop.f32.mrb[0].mxu0
        %1953 = vmatprep.mubr.bf16.mxu0 0
        %1954 = vmatmul.mubr.bf16.gmra.mrb[0].mxu0 %v1788
        %v1955 = vpop.f32.mrb[0].mxu0
        %v1956 = vpop.f32.mrb[0].mxu0
        %v1957 = vpop.f32.mrb[0].mxu0
        %v1958 = vadd.f32 %v1577, %v1957
        %v1959 = vpop.f32.mrb[0].mxu0
        %1960 = vmatprep.mubr.bf16.mxu0 0
        %1961 = vmatmul.mubr.bf16.gmra.mrb[0].mxu0 %v1790
        %v1962 = vpop.f32.mrb[0].mxu0
        %v1963 = vadd.f32 %v1582, %v1962
        %v1964 = vpop.f32.mrb[0].mxu0
        %v1965 = vpop.f32.mrb[0].mxu0
        %v1966 = vadd.f32 %v1585, %v1965
        %v1967 = vpop.f32.mrb[0].mxu0
        %1968 = vmatprep.mubr.bf16.mxu0 0
        %1969 = vmatmul.mubr.bf16.gmra.mrb[0].mxu0 %v1792
        %v1970 = vpop.f32.mrb[0].mxu0
        %v1971 = vpop.f32.mrb[0].mxu0
        %v1972 = vpop.f32.mrb[0].mxu0
        %v1973 = vadd.f32 %v1592, %v1972
        %v1974 = vpop.f32.mrb[0].mxu0
        %1975 = vmatprep.mubr.bf16.mxu0 0
        %1976 = vmatmul.mubr.bf16.gmra.mrb[0].mxu0 %v1794
        %v1977 = vpop.f32.mrb[0].mxu0
        %v1978 = vadd.f32 %v1597, %v1977
        %v1979 = vpop.f32.mrb[0].mxu0
        %v1980 = vpop.f32.mrb[0].mxu0
        %v1981 = vadd.f32 %v1600, %v1980
        %v1982 = vpop.f32.mrb[0].mxu0
        %1983 = vmatprep.mubr.bf16.mxu0 0
        %1984 = vmatmul.mubr.bf16.gmra.mrb[0].mxu0 %v1796
        %v1985 = vpop.f32.mrb[0].mxu0
        %v1986 = vpop.f32.mrb[0].mxu0
        %v1987 = vpop.f32.mrb[0].mxu0
        %v1988 = vadd.f32 %v1607, %v1987
        %v1989 = vpop.f32.mrb[0].mxu0
        %1990 = vmatprep.mubr.bf16.mxu0 0
        %1991 = vmatmul.mubr.bf16.gmra.mrb[0].mxu0 %v1798
        %v1992 = vpop.f32.mrb[0].mxu0
        %v1993 = vadd.f32 %v1612, %v1992
        %v1994 = vpop.f32.mrb[0].mxu0
        %v1995 = vpop.f32.mrb[0].mxu0
        %v1996 = vadd.f32 %v1615, %v1995
        %v1997 = vpop.f32.mrb[0].mxu0
        %1998 = vmatprep.mubr.bf16.mxu0 0
        %1999 = vmatmul.mubr.bf16.gmra.mrb[0].mxu0 %v1800
        %v2000 = vpop.f32.mrb[0].mxu0
        %v2001 = vpop.f32.mrb[0].mxu0
        %v2002 = vpop.f32.mrb[0].mxu0
        %v2003 = vadd.f32 %v1622, %v2002
        %v2004 = vpop.f32.mrb[0].mxu0
        %2005 = vmatprep.mubr.bf16.mxu0 0
        %2006 = vmatmul.mubr.bf16.gmra.mrb[0].mxu0 %v1802
        %v2007 = vpop.f32.mrb[0].mxu0
        %v2008 = vadd.f32 %v1627, %v2007
        %v2009 = vpop.f32.mrb[0].mxu0
        %v2010 = vpop.f32.mrb[0].mxu0
        %v2011 = vadd.f32 %v1630, %v2010
        %v2012 = vpop.f32.mrb[0].mxu0
        %2013 = vmatprep.mubr.bf16.mxu0 0
        %2014 = vmatmul.mubr.bf16.gmra.mrb[0].mxu0 %v1804
        %v2015 = vpop.f32.mrb[0].mxu0
        %v2016 = vpop.f32.mrb[0].mxu0
        %v2017 = vpop.f32.mrb[0].mxu0
        %v2018 = vadd.f32 %v1637, %v2017
        %v2019 = vpop.f32.mrb[0].mxu0
        %2020 = vmatprep.mubr.bf16.mxu0 0
        %2021 = vmatmul.mubr.bf16.gmra.mrb[0].mxu0 %v1806
        %v2022 = vpop.f32.mrb[0].mxu0
        %v2023 = vadd.f32 %v1642, %v2022
        %v2024 = vpop.f32.mrb[0].mxu0
        %v2025 = vpop.f32.mrb[0].mxu0
        %v2026 = vadd.f32 %v1645, %v2025
        %v2027 = vpop.f32.mrb[0].mxu0
        %2028 = vmatprep.mubr.bf16.mxu0 0
        %2029 = vmatmul.mubr.bf16.gmra.mrb[0].mxu0 %v1808
        %v2030 = vpop.f32.mrb[0].mxu0
        %v2031 = vpop.f32.mrb[0].mxu0
        %v2032 = vpop.f32.mrb[0].mxu0
        %v2033 = vadd.f32 %v1652, %v2032
        %v2034 = vpop.f32.mrb[0].mxu0
        %2035 = vmatprep.mubr.bf16.mxu0 0
        %2036 = vmatmul.mubr.bf16.gmra.mrb[0].mxu0 %v1810
        %v2037 = vpop.f32.mrb[0].mxu0
        %v2038 = vadd.f32 %v1657, %v2037
        %v2039 = vpop.f32.mrb[0].mxu0
        %v2040 = vpop.f32.mrb[0].mxu0
        %v2041 = vadd.f32 %v1660, %v2040
        %v2042 = vpop.f32.mrb[0].mxu0
        %2043 = vmatprep.mubr.bf16.mxu0 0
        %2044 = vmatmul.mubr.bf16.gmra.mrb[0].mxu0 %v1812
        %v2045 = vpop.f32.mrb[0].mxu0
        %v2046 = vpop.f32.mrb[0].mxu0
        %v2047 = vpop.f32.mrb[0].mxu0
        %v2048 = vadd.f32 %v1667, %v2047
        %v2049 = vpop.f32.mrb[0].mxu0
        %2050 = vmatprep.mubr.bf16.mxu0 0
        %2051 = vmatmul.mubr.bf16.gmra.mrb[0].mxu0 %v1814
        %v2052 = vpop.f32.mrb[0].mxu0
        %v2053 = vadd.f32 %v1672, %v2052
        %v2054 = vpop.f32.mrb[0].mxu0
        %v2055 = vpop.f32.mrb[0].mxu0
        %v2056 = vadd.f32 %v1675, %v2055
        %v2057 = vpop.f32.mrb[0].mxu0
        %2058 = vmatprep.mubr.bf16.mxu0 0
        %2059 = vmatmul.mubr.bf16.gmra.mrb[0].mxu0 %v1816
        %v2060 = vpop.f32.mrb[0].mxu0
        %v2061 = vpop.f32.mrb[0].mxu0
        %v2062 = vpop.f32.mrb[0].mxu0
        %v2063 = vadd.f32 %v1682, %v2062
        %v2064 = vpop.f32.mrb[0].mxu0
        %2065 = vmatprep.mubr.bf16.mxu0 0
        %2066 = vmatmul.mubr.bf16.gmra.mrb[0].mxu0 %v1818
        %v2067 = vpop.f32.mrb[0].mxu0
        %v2068 = vadd.f32 %v1687, %v2067
        %v2069 = vpop.f32.mrb[0].mxu0
        %v2070 = vpop.f32.mrb[0].mxu0
        %v2071 = vadd.f32 %v1690, %v2070
        %v2072 = vpop.f32.mrb[0].mxu0
        %2073 = vmatprep.mubr.bf16.mxu0 0
        %2074 = vmatmul.mubr.bf16.gmra.mrb[0].mxu0 %v1820
        %v2075 = vpop.f32.mrb[0].mxu0
        %v2076 = vpop.f32.mrb[0].mxu0
        %v2077 = vpop.f32.mrb[0].mxu0
        %v2078 = vadd.f32 %v1697, %v2077
        %v2079 = vpop.f32.mrb[0].mxu0
        %2080 = vmatprep.mubr.bf16.mxu0 0
        %2081 = vmatmul.mubr.bf16.gmra.mrb[0].mxu0 %v1822
        %v2082 = vpop.f32.mrb[0].mxu0
        %v2083 = vadd.f32 %v1702, %v2082
        %v2084 = vpop.f32.mrb[0].mxu0
        %v2085 = vpop.f32.mrb[0].mxu0
        %v2086 = vadd.f32 %v1705, %v2085
        %v2087 = vpop.f32.mrb[0].mxu0
        %2088 = vmatprep.mubr.bf16.mxu0 0
        %2089 = vmatmul.mubr.bf16.gmra.mrb[0].mxu0 %v1824
        %v2090 = vpop.f32.mrb[0].mxu0
        %v2091 = vpop.f32.mrb[0].mxu0
        %v2092 = vpop.f32.mrb[0].mxu0
        %v2093 = vadd.f32 %v1712, %v2092
        %v2094 = vpop.f32.mrb[0].mxu0
        %2095 = vmatprep.mubr.bf16.mxu0 0
        %2096 = vmatmul.mubr.bf16.gmra.mrb[0].mxu0 %v1826
        %v2097 = vpop.f32.mrb[0].mxu0
        %v2098 = vadd.f32 %v1717, %v2097
        %v2099 = vpop.f32.mrb[0].mxu0
        %v2100 = vpop.f32.mrb[0].mxu0
        %v2101 = vadd.f32 %v1720, %v2100
        %v2102 = vpop.f32.mrb[0].mxu0
        %2103 = vdwg.mxu0
        %s2104 = scalar_lea.vmem %s3, 112
        %v2105 = vld [vmem:[%s2104] sm:$0xf]
        %v2106 = vld [vmem:[%s2104 + $0x4] sm:$0xf]
        %v2107 = vld [vmem:[%s2104 + $0x8] sm:$0xf]
        %v2108 = vld [vmem:[%s2104 + $0xc] sm:$0xf]
        %v2109 = vld [vmem:[%s2104 + $0x10] sm:$0xf]
        %v2110 = vld [vmem:[%s2104 + $0x14] sm:$0xf]
        %v2111 = vld [vmem:[%s2104 + $0x18] sm:$0xf]
        %v2112 = vld [vmem:[%s2104 + $0x1c] sm:$0xf]
        %v2113 = vld [vmem:[%s2104 + $0x20] sm:$0xf]
        %v2114 = vld [vmem:[%s2104 + $0x24] sm:$0xf]
        %v2115 = vld [vmem:[%s2104 + $0x28] sm:$0xf]
        %v2116 = vld [vmem:[%s2104 + $0x2c] sm:$0xf]
        %v2117 = vld [vmem:[%s2104 + $0x30] sm:$0xf]
        %v2118 = vld [vmem:[%s2104 + $0x34] sm:$0x3]
        %vm2152 = vcmask 1046528
        %v2153 = vrot.slane %v986, 1
        %v2154 = vrot.slane %v988, 1
        %v2155 = vsel %vm2152, %v2153, %v2154
        %v2156 = vrot.slane %v990, 1
        %v2157 = vsel %vm2152, %v2154, %v2156
        %v2158 = vrot.slane %v992, 1
        %v2159 = vsel %vm2152, %v2156, %v2158
        %v2160 = vrot.slane %v994, 1
        %v2161 = vsel %vm2152, %v2158, %v2160
        %v2162 = vrot.slane %v996, 1
        %v2163 = vsel %vm2152, %v2160, %v2162
        %v2164 = vrot.slane %v998, 1
        %v2165 = vsel %vm2152, %v2162, %v2164
        %v2166 = vrot.slane %v1000, 1
        %v2167 = vsel %vm2152, %v2164, %v2166
        %v2168 = vrot.slane %v1002, 1
        %v2169 = vsel %vm2152, %v2166, %v2168
        %v2170 = vrot.slane %v1004, 1
        %v2171 = vsel %vm2152, %v2168, %v2170
        %v2172 = vrot.slane %v1006, 1
        %v2173 = vsel %vm2152, %v2170, %v2172
        %v2174 = vrot.slane %v1008, 1
        %v2175 = vsel %vm2152, %v2172, %v2174
        %v2176 = vrot.slane %v1010, 1
        %v2177 = vsel %vm2152, %v2174, %v2176
        %v2178 = vrot.slane %v1012, 1
        %v2179 = vsel %vm2152, %v2176, %v2178
        %v2180 = vrot.slane %v1014, 1
        %v2181 = vsel %vm2152, %v2178, %v2180
        %v2182 = vrot.slane %v1016, 1
        %v2183 = vsel %vm2152, %v2180, %v2182
        %v2184 = vrot.slane %v1018, 1
        %v2185 = vsel %vm2152, %v2182, %v2184
        %v2186 = vrot.slane %v1020, 1
        %v2187 = vsel %vm2152, %v2184, %v2186
        %v2188 = vrot.slane %v1022, 1
        %v2189 = vsel %vm2152, %v2186, %v2188
        %v2190 = vrot.slane %v1024, 1
        %v2191 = vsel %vm2152, %v2188, %v2190
        %v2192 = vrot.slane %v1026, 1
        %v2193 = vsel %vm2152, %v2190, %v2192
        %v2194 = vrot.slane %v1028, 1
        %v2195 = vsel %vm2152, %v2192, %v2194
        %v2196 = vrot.slane %v1030, 1
        %v2197 = vsel %vm2152, %v2194, %v2196
        %v2198 = vrot.slane %v1032, 1
        %v2199 = vsel %vm2152, %v2196, %v2198
        %v2200 = vrot.slane %v1034, 1
        %v2201 = vsel %vm2152, %v2198, %v2200
        %v2202 = vrot.slane %v1036, 1
        %v2203 = vsel %vm2152, %v2200, %v2202
        %v2204 = vrot.slane %v1038, 1
        %v2205 = vsel %vm2152, %v2202, %v2204
        %v2206 = vrot.slane %v1040, 1
        %v2207 = vsel %vm2152, %v2204, %v2206
        %v2208 = vrot.slane %v1042, 1
        %v2209 = vsel %vm2152, %v2206, %v2208
        %v2210 = vrot.slane %v1044, 1
        %v2211 = vsel %vm2152, %v2208, %v2210
        %v2212 = vrot.slane %v1046, 1
        %v2213 = vsel %vm2152, %v2210, %v2212
        %v2214 = vrot.slane %v1048, 1
        %v2215 = vsel %vm2152, %v2212, %v2214
        %v2216 = vrot.slane %v1050, 1
        %v2217 = vsel %vm2152, %v2214, %v2216
        %v2232 = vunpack.c.l.b16 %v2105
        %v2233 = vunpack.c.l.b16 %v2106
        %v2234 = vunpack.c.l.b16 %v2107
        %v2235 = vunpack.c.l.b16 %v2108
        %v2236 = vunpack.c.l.b16 %v2109
        %v2237 = vunpack.c.l.b16 %v2110
        %v2238 = vunpack.c.l.b16 %v2111
        %v2239 = vunpack.c.l.b16 %v2112
        %v2240 = vunpack.c.l.b16 %v2113
        %v2241 = vunpack.c.l.b16 %v2114
        %v2242 = vunpack.c.l.b16 %v2115
        %v2243 = vunpack.c.l.b16 %v2116
        %v2244 = vunpack.c.l.b16 %v2117
        %v2245 = vunpack.c.l.b16 %v2118
        %v2246 = vpack.c.b16 %v2233, %v2232
        %v2247 = vpack.c.b16 %v2235, %v2234
        %v2248 = vpack.c.b16 %v2237, %v2236
        %v2249 = vpack.c.b16 %v2239, %v2238
        %v2250 = vpack.c.b16 %v2241, %v2240
        %v2251 = vpack.c.b16 %v2243, %v2242
        %v2252 = vpack.c.b16 %v2245, %v2244
        %v2260 = vsel %vm1349, %v2155, 0
        %v2263 = vsel %vm1349, %v2157, 0
        %v2266 = vsel %vm1349, %v2159, 0
        %v2269 = vsel %vm1349, %v2161, 0
        %v2272 = vsel %vm1349, %v2163, 0
        %v2275 = vsel %vm1349, %v2165, 0
        %v2278 = vsel %vm1349, %v2167, 0
        %v2281 = vsel %vm1349, %v2169, 0
        %v2284 = vsel %vm1349, %v2171, 0
        %v2287 = vsel %vm1349, %v2173, 0
        %v2290 = vsel %vm1349, %v2175, 0
        %v2293 = vsel %vm1349, %v2177, 0
        %v2296 = vsel %vm1349, %v2179, 0
        %v2299 = vsel %vm1349, %v2181, 0
        %v2302 = vsel %vm1349, %v2183, 0
        %v2305 = vsel %vm1349, %v2185, 0
        %v2308 = vsel %vm1349, %v2187, 0
        %v2311 = vsel %vm1349, %v2189, 0
        %v2314 = vsel %vm1349, %v2191, 0
        %v2317 = vsel %vm1349, %v2193, 0
        %v2320 = vsel %vm1349, %v2195, 0
        %v2323 = vsel %vm1349, %v2197, 0
        %v2326 = vsel %vm1349, %v2199, 0
        %v2329 = vsel %vm1349, %v2201, 0
        %v2332 = vsel %vm1349, %v2203, 0
        %v2335 = vsel %vm1349, %v2205, 0
        %v2338 = vsel %vm1349, %v2207, 0
        %v2341 = vsel %vm1349, %v2209, 0
        %v2344 = vsel %vm1349, %v2211, 0
        %v2347 = vsel %vm1349, %v2213, 0
        %v2350 = vsel %vm1349, %v2215, 0
        %v2353 = vsel %vm1349, %v2217, 0
        %v2356 = vsel %vm1446, %v2252, 0
        %2358 = vmatprep.subr.bf16.mxu0 0
        %2359 = vmatpush1.bf16.msra.mxu0 %v2246
        %2360 = vmatprep.subr.bf16.mxu0 0
        %2361 = vmatpush1.bf16.msra.mxu0 %v2247
        %2362 = vmatprep.subr.bf16.mxu0 0
        %2363 = vmatpush1.bf16.msra.mxu0 %v2248
        %2364 = vmatprep.subr.bf16.mxu0 0
        %2365 = vmatpush1.bf16.msra.mxu0 %v2249
        %2366 = vmatprep.subr.bf16.mxu0 0
        %2367 = vmatpush1.bf16.msra.mxu0 %v2250
        %2368 = vmatprep.subr.bf16.mxu0 0
        %2369 = vmatpush1.bf16.msra.mxu0 %v2251
        %2370 = vmatprep.subr.bf16.mxu0 0
        %2371 = vmatpush1.bf16.msra.mxu0 %v2356
        %2372 = vmatprep.subr.bf16.mxu0 0
        %2373 = vmatpush1.bf16.msra.mxu0 0
        %2374 = vmatprep.subr.bf16.mxu0 0
        %2375 = vmatpush1.bf16.msra.mxu0 0
        %2376 = vmatprep.subr.bf16.mxu0 0
        %2377 = vmatpush1.bf16.msra.mxu0 0
        %2378 = vmatprep.subr.bf16.mxu0 0
        %2379 = vmatpush1.bf16.msra.mxu0 0
        %2380 = vmatprep.subr.bf16.mxu0 0
        %2381 = vmatpush1.bf16.msra.mxu0 0
        %2382 = vmatprep.subr.bf16.mxu0 0
        %2383 = vmatpush1.bf16.msra.mxu0 0
        %2384 = vmatprep.subr.bf16.mxu0 0
        %2385 = vmatpush1.bf16.msra.mxu0 0
        %2386 = vmatprep.subr.bf16.mxu0 0
        %2387 = vmatpush1.bf16.msra.mxu0 0
        %2388 = vmatprep.subr.bf16.mxu0 0
        %2389 = vmatpush1.bf16.msra.mxu0 0
        %2390 = vmatprep.mubr.bf16.mxu0 0
        %2391 = vmatmul.mubr.bf16.gmra.mrb[0].mxu0 %v2260
        %v2392 = vpop.f32.mrb[0].mxu0
        %v2393 = vpop.f32.mrb[0].mxu0
        %v2394 = vpop.f32.mrb[0].mxu0
        %v2395 = vadd.f32 0.0, %v2394
        %v2396 = vpop.f32.mrb[0].mxu0
        %2397 = vmatprep.mubr.bf16.mxu0 0
        %2398 = vmatmul.mubr.bf16.gmra.mrb[0].mxu0 %v2263
        %v2399 = vpop.f32.mrb[0].mxu0
        %v2400 = vadd.f32 0.0, %v2399
        %v2401 = vpop.f32.mrb[0].mxu0
        %v2402 = vpop.f32.mrb[0].mxu0
        %v2403 = vadd.f32 0.0, %v2402
        %v2404 = vpop.f32.mrb[0].mxu0
        %2405 = vmatprep.mubr.bf16.mxu0 0
        %2406 = vmatmul.mubr.bf16.gmra.mrb[0].mxu0 %v2266
        %v2407 = vpop.f32.mrb[0].mxu0
        %v2408 = vpop.f32.mrb[0].mxu0
        %v2409 = vpop.f32.mrb[0].mxu0
        %v2410 = vadd.f32 0.0, %v2409
        %v2411 = vpop.f32.mrb[0].mxu0
        %2412 = vmatprep.mubr.bf16.mxu0 0
        %2413 = vmatmul.mubr.bf16.gmra.mrb[0].mxu0 %v2269
        %v2414 = vpop.f32.mrb[0].mxu0
        %v2415 = vadd.f32 0.0, %v2414
        %v2416 = vpop.f32.mrb[0].mxu0
        %v2417 = vpop.f32.mrb[0].mxu0
        %v2418 = vadd.f32 0.0, %v2417
        %v2419 = vpop.f32.mrb[0].mxu0
        %2420 = vmatprep.mubr.bf16.mxu0 0
        %2421 = vmatmul.mubr.bf16.gmra.mrb[0].mxu0 %v2272
        %v2422 = vpop.f32.mrb[0].mxu0
        %v2423 = vpop.f32.mrb[0].mxu0
        %v2424 = vpop.f32.mrb[0].mxu0
        %v2425 = vadd.f32 0.0, %v2424
        %v2426 = vpop.f32.mrb[0].mxu0
        %2427 = vmatprep.mubr.bf16.mxu0 0
        %2428 = vmatmul.mubr.bf16.gmra.mrb[0].mxu0 %v2275
        %v2429 = vpop.f32.mrb[0].mxu0
        %v2430 = vadd.f32 0.0, %v2429
        %v2431 = vpop.f32.mrb[0].mxu0
        %v2432 = vpop.f32.mrb[0].mxu0
        %v2433 = vadd.f32 0.0, %v2432
        %v2434 = vpop.f32.mrb[0].mxu0
        %2435 = vmatprep.mubr.bf16.mxu0 0
        %2436 = vmatmul.mubr.bf16.gmra.mrb[0].mxu0 %v2278
        %v2437 = vpop.f32.mrb[0].mxu0
        %v2438 = vpop.f32.mrb[0].mxu0
        %v2439 = vpop.f32.mrb[0].mxu0
        %v2440 = vadd.f32 0.0, %v2439
        %v2441 = vpop.f32.mrb[0].mxu0
        %2442 = vmatprep.mubr.bf16.mxu0 0
        %2443 = vmatmul.mubr.bf16.gmra.mrb[0].mxu0 %v2281
        %v2444 = vpop.f32.mrb[0].mxu0
        %v2445 = vadd.f32 0.0, %v2444
        %v2446 = vpop.f32.mrb[0].mxu0
        %v2447 = vpop.f32.mrb[0].mxu0
        %v2448 = vadd.f32 0.0, %v2447
        %v2449 = vpop.f32.mrb[0].mxu0
        %2450 = vmatprep.mubr.bf16.mxu0 0
        %2451 = vmatmul.mubr.bf16.gmra.mrb[0].mxu0 %v2284
        %v2452 = vpop.f32.mrb[0].mxu0
        %v2453 = vpop.f32.mrb[0].mxu0
        %v2454 = vpop.f32.mrb[0].mxu0
        %v2455 = vadd.f32 0.0, %v2454
        %v2456 = vpop.f32.mrb[0].mxu0
        %2457 = vmatprep.mubr.bf16.mxu0 0
        %2458 = vmatmul.mubr.bf16.gmra.mrb[0].mxu0 %v2287
        %v2459 = vpop.f32.mrb[0].mxu0
        %v2460 = vadd.f32 0.0, %v2459
        %v2461 = vpop.f32.mrb[0].mxu0
        %v2462 = vpop.f32.mrb[0].mxu0
        %v2463 = vadd.f32 0.0, %v2462
        %v2464 = vpop.f32.mrb[0].mxu0
        %2465 = vmatprep.mubr.bf16.mxu0 0
        %2466 = vmatmul.mubr.bf16.gmra.mrb[0].mxu0 %v2290
        %v2467 = vpop.f32.mrb[0].mxu0
        %v2468 = vpop.f32.mrb[0].mxu0
        %v2469 = vpop.f32.mrb[0].mxu0
        %v2470 = vadd.f32 0.0, %v2469
        %v2471 = vpop.f32.mrb[0].mxu0
        %2472 = vmatprep.mubr.bf16.mxu0 0
        %2473 = vmatmul.mubr.bf16.gmra.mrb[0].mxu0 %v2293
        %v2474 = vpop.f32.mrb[0].mxu0
        %v2475 = vadd.f32 0.0, %v2474
        %v2476 = vpop.f32.mrb[0].mxu0
        %v2477 = vpop.f32.mrb[0].mxu0
        %v2478 = vadd.f32 0.0, %v2477
        %v2479 = vpop.f32.mrb[0].mxu0
        %2480 = vmatprep.mubr.bf16.mxu0 0
        %2481 = vmatmul.mubr.bf16.gmra.mrb[0].mxu0 %v2296
        %v2482 = vpop.f32.mrb[0].mxu0
        %v2483 = vpop.f32.mrb[0].mxu0
        %v2484 = vpop.f32.mrb[0].mxu0
        %v2485 = vadd.f32 0.0, %v2484
        %v2486 = vpop.f32.mrb[0].mxu0
        %2487 = vmatprep.mubr.bf16.mxu0 0
        %2488 = vmatmul.mubr.bf16.gmra.mrb[0].mxu0 %v2299
        %v2489 = vpop.f32.mrb[0].mxu0
        %v2490 = vadd.f32 0.0, %v2489
        %v2491 = vpop.f32.mrb[0].mxu0
        %v2492 = vpop.f32.mrb[0].mxu0
        %v2493 = vadd.f32 0.0, %v2492
        %v2494 = vpop.f32.mrb[0].mxu0
        %2495 = vmatprep.mubr.bf16.mxu0 0
        %2496 = vmatmul.mubr.bf16.gmra.mrb[0].mxu0 %v2302
        %v2497 = vpop.f32.mrb[0].mxu0
        %v2498 = vpop.f32.mrb[0].mxu0
        %v2499 = vpop.f32.mrb[0].mxu0
        %v2500 = vadd.f32 0.0, %v2499
        %v2501 = vpop.f32.mrb[0].mxu0
        %2502 = vmatprep.mubr.bf16.mxu0 0
        %2503 = vmatmul.mubr.bf16.gmra.mrb[0].mxu0 %v2305
        %v2504 = vpop.f32.mrb[0].mxu0
        %v2505 = vadd.f32 0.0, %v2504
        %v2506 = vpop.f32.mrb[0].mxu0
        %v2507 = vpop.f32.mrb[0].mxu0
        %v2508 = vadd.f32 0.0, %v2507
        %v2509 = vpop.f32.mrb[0].mxu0
        %2510 = vmatprep.mubr.bf16.mxu0 0
        %2511 = vmatmul.mubr.bf16.gmra.mrb[0].mxu0 %v2308
        %v2512 = vpop.f32.mrb[0].mxu0
        %v2513 = vpop.f32.mrb[0].mxu0
        %v2514 = vpop.f32.mrb[0].mxu0
        %v2515 = vadd.f32 0.0, %v2514
        %v2516 = vpop.f32.mrb[0].mxu0
        %2517 = vmatprep.mubr.bf16.mxu0 0
        %2518 = vmatmul.mubr.bf16.gmra.mrb[0].mxu0 %v2311
        %v2519 = vpop.f32.mrb[0].mxu0
        %v2520 = vadd.f32 0.0, %v2519
        %v2521 = vpop.f32.mrb[0].mxu0
        %v2522 = vpop.f32.mrb[0].mxu0
        %v2523 = vadd.f32 0.0, %v2522
        %v2524 = vpop.f32.mrb[0].mxu0
        %2525 = vmatprep.mubr.bf16.mxu0 0
        %2526 = vmatmul.mubr.bf16.gmra.mrb[0].mxu0 %v2314
        %v2527 = vpop.f32.mrb[0].mxu0
        %v2528 = vpop.f32.mrb[0].mxu0
        %v2529 = vpop.f32.mrb[0].mxu0
        %v2530 = vadd.f32 0.0, %v2529
        %v2531 = vpop.f32.mrb[0].mxu0
        %2532 = vmatprep.mubr.bf16.mxu0 0
        %2533 = vmatmul.mubr.bf16.gmra.mrb[0].mxu0 %v2317
        %v2534 = vpop.f32.mrb[0].mxu0
        %v2535 = vadd.f32 0.0, %v2534
        %v2536 = vpop.f32.mrb[0].mxu0
        %v2537 = vpop.f32.mrb[0].mxu0
        %v2538 = vadd.f32 0.0, %v2537
        %v2539 = vpop.f32.mrb[0].mxu0
        %2540 = vmatprep.mubr.bf16.mxu0 0
        %2541 = vmatmul.mubr.bf16.gmra.mrb[0].mxu0 %v2320
        %v2542 = vpop.f32.mrb[0].mxu0
        %v2543 = vpop.f32.mrb[0].mxu0
        %v2544 = vpop.f32.mrb[0].mxu0
        %v2545 = vadd.f32 0.0, %v2544
        %v2546 = vpop.f32.mrb[0].mxu0
        %2547 = vmatprep.mubr.bf16.mxu0 0
        %2548 = vmatmul.mubr.bf16.gmra.mrb[0].mxu0 %v2323
        %v2549 = vpop.f32.mrb[0].mxu0
        %v2550 = vadd.f32 0.0, %v2549
        %v2551 = vpop.f32.mrb[0].mxu0
        %v2552 = vpop.f32.mrb[0].mxu0
        %v2553 = vadd.f32 0.0, %v2552
        %v2554 = vpop.f32.mrb[0].mxu0
        %2555 = vmatprep.mubr.bf16.mxu0 0
        %2556 = vmatmul.mubr.bf16.gmra.mrb[0].mxu0 %v2326
        %v2557 = vpop.f32.mrb[0].mxu0
        %v2558 = vpop.f32.mrb[0].mxu0
        %v2559 = vpop.f32.mrb[0].mxu0
        %v2560 = vadd.f32 0.0, %v2559
        %v2561 = vpop.f32.mrb[0].mxu0
        %2562 = vmatprep.mubr.bf16.mxu0 0
        %2563 = vmatmul.mubr.bf16.gmra.mrb[0].mxu0 %v2329
        %v2564 = vpop.f32.mrb[0].mxu0
        %v2565 = vadd.f32 0.0, %v2564
        %v2566 = vpop.f32.mrb[0].mxu0
        %v2567 = vpop.f32.mrb[0].mxu0
        %v2568 = vadd.f32 0.0, %v2567
        %v2569 = vpop.f32.mrb[0].mxu0
        %2570 = vmatprep.mubr.bf16.mxu0 0
        %2571 = vmatmul.mubr.bf16.gmra.mrb[0].mxu0 %v2332
        %v2572 = vpop.f32.mrb[0].mxu0
        %v2573 = vpop.f32.mrb[0].mxu0
        %v2574 = vpop.f32.mrb[0].mxu0
        %v2575 = vadd.f32 0.0, %v2574
        %v2576 = vpop.f32.mrb[0].mxu0
        %2577 = vmatprep.mubr.bf16.mxu0 0
        %2578 = vmatmul.mubr.bf16.gmra.mrb[0].mxu0 %v2335
        %v2579 = vpop.f32.mrb[0].mxu0
        %v2580 = vadd.f32 0.0, %v2579
        %v2581 = vpop.f32.mrb[0].mxu0
        %v2582 = vpop.f32.mrb[0].mxu0
        %v2583 = vadd.f32 0.0, %v2582
        %v2584 = vpop.f32.mrb[0].mxu0
        %2585 = vmatprep.mubr.bf16.mxu0 0
        %2586 = vmatmul.mubr.bf16.gmra.mrb[0].mxu0 %v2338
        %v2587 = vpop.f32.mrb[0].mxu0
        %v2588 = vpop.f32.mrb[0].mxu0
        %v2589 = vpop.f32.mrb[0].mxu0
        %v2590 = vadd.f32 0.0, %v2589
        %v2591 = vpop.f32.mrb[0].mxu0
        %2592 = vmatprep.mubr.bf16.mxu0 0
        %2593 = vmatmul.mubr.bf16.gmra.mrb[0].mxu0 %v2341
        %v2594 = vpop.f32.mrb[0].mxu0
        %v2595 = vadd.f32 0.0, %v2594
        %v2596 = vpop.f32.mrb[0].mxu0
        %v2597 = vpop.f32.mrb[0].mxu0
        %v2598 = vadd.f32 0.0, %v2597
        %v2599 = vpop.f32.mrb[0].mxu0
        %2600 = vmatprep.mubr.bf16.mxu0 0
        %2601 = vmatmul.mubr.bf16.gmra.mrb[0].mxu0 %v2344
        %v2602 = vpop.f32.mrb[0].mxu0
        %v2603 = vpop.f32.mrb[0].mxu0
        %v2604 = vpop.f32.mrb[0].mxu0
        %v2605 = vadd.f32 0.0, %v2604
        %v2606 = vpop.f32.mrb[0].mxu0
        %2607 = vmatprep.mubr.bf16.mxu0 0
        %2608 = vmatmul.mubr.bf16.gmra.mrb[0].mxu0 %v2347
        %v2609 = vpop.f32.mrb[0].mxu0
        %v2610 = vadd.f32 0.0, %v2609
        %v2611 = vpop.f32.mrb[0].mxu0
        %v2612 = vpop.f32.mrb[0].mxu0
        %v2613 = vadd.f32 0.0, %v2612
        %v2614 = vpop.f32.mrb[0].mxu0
        %2615 = vmatprep.mubr.bf16.mxu0 0
        %2616 = vmatmul.mubr.bf16.gmra.mrb[0].mxu0 %v2350
        %v2617 = vpop.f32.mrb[0].mxu0
        %v2618 = vpop.f32.mrb[0].mxu0
        %v2619 = vpop.f32.mrb[0].mxu0
        %v2620 = vadd.f32 0.0, %v2619
        %v2621 = vpop.f32.mrb[0].mxu0
        %2622 = vmatprep.mubr.bf16.mxu0 0
        %2623 = vmatmul.mubr.bf16.gmra.mrb[0].mxu0 %v2353
        %v2624 = vpop.f32.mrb[0].mxu0
        %v2625 = vadd.f32 0.0, %v2624
        %v2626 = vpop.f32.mrb[0].mxu0
        %v2627 = vpop.f32.mrb[0].mxu0
        %v2628 = vadd.f32 0.0, %v2627
        %v2629 = vpop.f32.mrb[0].mxu0
        %2630 = vdwg.mxu0
        %v2631 = vadd.f32 %v1868, %v2395
        %v2632 = vadd.f32 %v1873, %v2400
        %v2633 = vadd.f32 %v1876, %v2403
        %v2634 = vadd.f32 %v1883, %v2410
        %v2635 = vadd.f32 %v1888, %v2415
        %v2636 = vadd.f32 %v1891, %v2418
        %v2637 = vadd.f32 %v1898, %v2425
        %v2638 = vadd.f32 %v1903, %v2430
        %v2639 = vadd.f32 %v1906, %v2433
        %v2640 = vadd.f32 %v1913, %v2440
        %v2641 = vadd.f32 %v1918, %v2445
        %v2642 = vadd.f32 %v1921, %v2448
        %v2643 = vadd.f32 %v1928, %v2455
        %v2644 = vadd.f32 %v1933, %v2460
        %v2645 = vadd.f32 %v1936, %v2463
        %v2646 = vadd.f32 %v1943, %v2470
        %v2647 = vadd.f32 %v1948, %v2475
        %v2648 = vadd.f32 %v1951, %v2478
        %v2649 = vadd.f32 %v1958, %v2485
        %v2650 = vadd.f32 %v1963, %v2490
        %v2651 = vadd.f32 %v1966, %v2493
        %v2652 = vadd.f32 %v1973, %v2500
        %v2653 = vadd.f32 %v1978, %v2505
        %v2654 = vadd.f32 %v1981, %v2508
        %v2655 = vadd.f32 %v1988, %v2515
        %v2656 = vadd.f32 %v1993, %v2520
        %v2657 = vadd.f32 %v1996, %v2523
        %v2658 = vadd.f32 %v2003, %v2530
        %v2659 = vadd.f32 %v2008, %v2535
        %v2660 = vadd.f32 %v2011, %v2538
        %v2661 = vadd.f32 %v2018, %v2545
        %v2662 = vadd.f32 %v2023, %v2550
        %v2663 = vadd.f32 %v2026, %v2553
        %v2664 = vadd.f32 %v2033, %v2560
        %v2665 = vadd.f32 %v2038, %v2565
        %v2666 = vadd.f32 %v2041, %v2568
        %v2667 = vadd.f32 %v2048, %v2575
        %v2668 = vadd.f32 %v2053, %v2580
        %v2669 = vadd.f32 %v2056, %v2583
        %v2670 = vadd.f32 %v2063, %v2590
        %v2671 = vadd.f32 %v2068, %v2595
        %v2672 = vadd.f32 %v2071, %v2598
        %v2673 = vadd.f32 %v2078, %v2605
        %v2674 = vadd.f32 %v2083, %v2610
        %v2675 = vadd.f32 %v2086, %v2613
        %v2676 = vadd.f32 %v2093, %v2620
        %v2677 = vadd.f32 %v2098, %v2625
        %v2678 = vadd.f32 %v2101, %v2628
        %v2679 = vld [vmem:[%s4] sm:$0x1]
        %v2681 = vlaneseq
        %v2682 = vshrl.u32 %v2681, 7
        %v2683 = vsub.s32 0, %v2682
        %v2684 = vrot.slane %v2679, %v2683
        %v2686 = vadd.f32 %v2631, %v2684
        %v2687 = vadd.f32 %v2632, %v2684
        %v2688 = vadd.f32 %v2633, %v2684
        %v2689 = vadd.f32 %v2634, %v2684
        %v2690 = vadd.f32 %v2635, %v2684
        %v2691 = vadd.f32 %v2636, %v2684
        %v2692 = vadd.f32 %v2637, %v2684
        %v2693 = vadd.f32 %v2638, %v2684
        %v2694 = vadd.f32 %v2639, %v2684
        %v2695 = vadd.f32 %v2640, %v2684
        %v2696 = vadd.f32 %v2641, %v2684
        %v2697 = vadd.f32 %v2642, %v2684
        %v2698 = vadd.f32 %v2643, %v2684
        %v2699 = vadd.f32 %v2644, %v2684
        %v2700 = vadd.f32 %v2645, %v2684
        %v2701 = vadd.f32 %v2646, %v2684
        %v2702 = vadd.f32 %v2647, %v2684
        %v2703 = vadd.f32 %v2648, %v2684
        %v2704 = vadd.f32 %v2649, %v2684
        %v2705 = vadd.f32 %v2650, %v2684
        %v2706 = vadd.f32 %v2651, %v2684
        %v2707 = vadd.f32 %v2652, %v2684
        %v2708 = vadd.f32 %v2653, %v2684
        %v2709 = vadd.f32 %v2654, %v2684
        %v2710 = vadd.f32 %v2655, %v2684
        %v2711 = vadd.f32 %v2656, %v2684
        %v2712 = vadd.f32 %v2657, %v2684
        %v2713 = vadd.f32 %v2658, %v2684
        %v2714 = vadd.f32 %v2659, %v2684
        %v2715 = vadd.f32 %v2660, %v2684
        %v2716 = vadd.f32 %v2661, %v2684
        %v2717 = vadd.f32 %v2662, %v2684
        %v2718 = vadd.f32 %v2663, %v2684
        %v2719 = vadd.f32 %v2664, %v2684
        %v2720 = vadd.f32 %v2665, %v2684
        %v2721 = vadd.f32 %v2666, %v2684
        %v2722 = vadd.f32 %v2667, %v2684
        %v2723 = vadd.f32 %v2668, %v2684
        %v2724 = vadd.f32 %v2669, %v2684
        %v2725 = vadd.f32 %v2670, %v2684
        %v2726 = vadd.f32 %v2671, %v2684
        %v2727 = vadd.f32 %v2672, %v2684
        %v2728 = vadd.f32 %v2673, %v2684
        %v2729 = vadd.f32 %v2674, %v2684
        %v2730 = vadd.f32 %v2675, %v2684
        %v2731 = vadd.f32 %v2676, %v2684
        %v2732 = vadd.f32 %v2677, %v2684
        %v2733 = vadd.f32 %v2678, %v2684
        %v2734 = vlaneseq
        %v2735 = vand.u32 %v2734, 127
        %vm2736 = vcmp.ge.s32.totalorder %v2735, 96
        %v2737 = vtanh.pop %v2686
        %v2738 = vtanh.pop %v2687
        %v2739 = vtanh.pop %v2688
        %v2740 = vtanh.pop %v2689
        %v2741 = vtanh.pop %v2690
        %v2742 = vtanh.pop %v2691
        %v2743 = vtanh.pop %v2692
        %v2744 = vtanh.pop %v2693
        %v2745 = vtanh.pop %v2694
        %v2746 = vtanh.pop %v2695
        %v2747 = vtanh.pop %v2696
        %v2748 = vtanh.pop %v2697
        %v2749 = vtanh.pop %v2698
        %v2750 = vtanh.pop %v2699
        %v2751 = vtanh.pop %v2700
        %v2752 = vtanh.pop %v2701
        %v2753 = vtanh.pop %v2702
        %v2754 = vtanh.pop %v2703
        %v2755 = vtanh.pop %v2704
        %v2756 = vtanh.pop %v2705
        %v2757 = vtanh.pop %v2706
        %v2758 = vtanh.pop %v2707
        %v2759 = vtanh.pop %v2708
        %v2760 = vtanh.pop %v2709
        %v2761 = vtanh.pop %v2710
        %v2762 = vtanh.pop %v2711
        %v2763 = vtanh.pop %v2712
        %v2764 = vtanh.pop %v2713
        %v2765 = vtanh.pop %v2714
        %v2766 = vtanh.pop %v2715
        %v2767 = vtanh.pop %v2716
        %v2768 = vtanh.pop %v2717
        %v2769 = vtanh.pop %v2718
        %v2770 = vtanh.pop %v2719
        %v2771 = vtanh.pop %v2720
        %v2772 = vtanh.pop %v2721
        %v2773 = vtanh.pop %v2722
        %v2774 = vtanh.pop %v2723
        %v2775 = vtanh.pop %v2724
        %v2776 = vtanh.pop %v2725
        %v2777 = vtanh.pop %v2726
        %v2778 = vtanh.pop %v2727
        %v2779 = vtanh.pop %v2728
        %v2780 = vtanh.pop %v2729
        %v2781 = vtanh.pop %v2730
        %v2782 = vtanh.pop %v2731
        %v2783 = vtanh.pop %v2732
        %v2784 = vtanh.pop %v2733
        %v2785 = vxor.u32 %v2686, 2147483648
        %v2786 = vxor.u32 %v2687, 2147483648
        %v2787 = vxor.u32 %v2688, 2147483648
        %v2788 = vxor.u32 %v2689, 2147483648
        %v2789 = vxor.u32 %v2690, 2147483648
        %v2790 = vxor.u32 %v2691, 2147483648
        %v2791 = vxor.u32 %v2692, 2147483648
        %v2792 = vxor.u32 %v2693, 2147483648
        %v2793 = vxor.u32 %v2694, 2147483648
        %v2794 = vxor.u32 %v2695, 2147483648
        %v2795 = vxor.u32 %v2696, 2147483648
        %v2796 = vxor.u32 %v2697, 2147483648
        %v2797 = vxor.u32 %v2698, 2147483648
        %v2798 = vxor.u32 %v2699, 2147483648
        %v2799 = vxor.u32 %v2700, 2147483648
        %v2800 = vxor.u32 %v2701, 2147483648
        %v2801 = vxor.u32 %v2702, 2147483648
        %v2802 = vxor.u32 %v2703, 2147483648
        %v2803 = vxor.u32 %v2704, 2147483648
        %v2804 = vxor.u32 %v2705, 2147483648
        %v2805 = vxor.u32 %v2706, 2147483648
        %v2806 = vxor.u32 %v2707, 2147483648
        %v2807 = vxor.u32 %v2708, 2147483648
        %v2808 = vxor.u32 %v2709, 2147483648
        %v2809 = vxor.u32 %v2710, 2147483648
        %v2810 = vxor.u32 %v2711, 2147483648
        %v2811 = vxor.u32 %v2712, 2147483648
        %v2812 = vxor.u32 %v2713, 2147483648
        %v2813 = vxor.u32 %v2714, 2147483648
        %v2814 = vxor.u32 %v2715, 2147483648
        %v2815 = vxor.u32 %v2716, 2147483648
        %v2816 = vxor.u32 %v2717, 2147483648
        %v2817 = vxor.u32 %v2718, 2147483648
        %v2818 = vxor.u32 %v2719, 2147483648
        %v2819 = vxor.u32 %v2720, 2147483648
        %v2820 = vxor.u32 %v2721, 2147483648
        %v2821 = vxor.u32 %v2722, 2147483648
        %v2822 = vxor.u32 %v2723, 2147483648
        %v2823 = vxor.u32 %v2724, 2147483648
        %v2824 = vxor.u32 %v2725, 2147483648
        %v2825 = vxor.u32 %v2726, 2147483648
        %v2826 = vxor.u32 %v2727, 2147483648
        %v2827 = vxor.u32 %v2728, 2147483648
        %v2828 = vxor.u32 %v2729, 2147483648
        %v2829 = vxor.u32 %v2730, 2147483648
        %v2830 = vxor.u32 %v2731, 2147483648
        %v2831 = vxor.u32 %v2732, 2147483648
        %v2832 = vxor.u32 %v2733, 2147483648
        %v2833 = vmul.f32 %v2785, 1.442695
        %v2834 = vpow.pop %v2833
        %v2835 = vmul.f32 %v2786, 1.442695
        %v2836 = vpow.pop %v2835
        %v2837 = vmul.f32 %v2787, 1.442695
        %v2838 = vpow.pop %v2837
        %v2839 = vmul.f32 %v2788, 1.442695
        %v2840 = vpow.pop %v2839
        %v2841 = vmul.f32 %v2789, 1.442695
        %v2842 = vpow.pop %v2841
        %v2843 = vmul.f32 %v2790, 1.442695
        %v2844 = vpow.pop %v2843
        %v2845 = vmul.f32 %v2791, 1.442695
        %v2846 = vpow.pop %v2845
        %v2847 = vmul.f32 %v2792, 1.442695
        %v2848 = vpow.pop %v2847
        %v2849 = vmul.f32 %v2793, 1.442695
        %v2850 = vpow.pop %v2849
        %v2851 = vmul.f32 %v2794, 1.442695
        %v2852 = vpow.pop %v2851
        %v2853 = vmul.f32 %v2795, 1.442695
        %v2854 = vpow.pop %v2853
        %v2855 = vmul.f32 %v2796, 1.442695
        %v2856 = vpow.pop %v2855
        %v2857 = vmul.f32 %v2797, 1.442695
        %v2858 = vpow.pop %v2857
        %v2859 = vmul.f32 %v2798, 1.442695
        %v2860 = vpow.pop %v2859
        %v2861 = vmul.f32 %v2799, 1.442695
        %v2862 = vpow.pop %v2861
        %v2863 = vmul.f32 %v2800, 1.442695
        %v2864 = vpow.pop %v2863
        %v2865 = vmul.f32 %v2801, 1.442695
        %v2866 = vpow.pop %v2865
        %v2867 = vmul.f32 %v2802, 1.442695
        %v2868 = vpow.pop %v2867
        %v2869 = vmul.f32 %v2803, 1.442695
        %v2870 = vpow.pop %v2869
        %v2871 = vmul.f32 %v2804, 1.442695
        %v2872 = vpow.pop %v2871
        %v2873 = vmul.f32 %v2805, 1.442695
        %v2874 = vpow.pop %v2873
        %v2875 = vmul.f32 %v2806, 1.442695
        %v2876 = vpow.pop %v2875
        %v2877 = vmul.f32 %v2807, 1.442695
        %v2878 = vpow.pop %v2877
        %v2879 = vmul.f32 %v2808, 1.442695
        %v2880 = vpow.pop %v2879
        %v2881 = vmul.f32 %v2809, 1.442695
        %v2882 = vpow.pop %v2881
        %v2883 = vmul.f32 %v2810, 1.442695
        %v2884 = vpow.pop %v2883
        %v2885 = vmul.f32 %v2811, 1.442695
        %v2886 = vpow.pop %v2885
        %v2887 = vmul.f32 %v2812, 1.442695
        %v2888 = vpow.pop %v2887
        %v2889 = vmul.f32 %v2813, 1.442695
        %v2890 = vpow.pop %v2889
        %v2891 = vmul.f32 %v2814, 1.442695
        %v2892 = vpow.pop %v2891
        %v2893 = vmul.f32 %v2815, 1.442695
        %v2894 = vpow.pop %v2893
        %v2895 = vmul.f32 %v2816, 1.442695
        %v2896 = vpow.pop %v2895
        %v2897 = vmul.f32 %v2817, 1.442695
        %v2898 = vpow.pop %v2897
        %v2899 = vmul.f32 %v2818, 1.442695
        %v2900 = vpow.pop %v2899
        %v2901 = vmul.f32 %v2819, 1.442695
        %v2902 = vpow.pop %v2901
        %v2903 = vmul.f32 %v2820, 1.442695
        %v2904 = vpow.pop %v2903
        %v2905 = vmul.f32 %v2821, 1.442695
        %v2906 = vpow.pop %v2905
        %v2907 = vmul.f32 %v2822, 1.442695
        %v2908 = vpow.pop %v2907
        %v2909 = vmul.f32 %v2823, 1.442695
        %v2910 = vpow.pop %v2909
        %v2911 = vmul.f32 %v2824, 1.442695
        %v2912 = vpow.pop %v2911
        %v2913 = vmul.f32 %v2825, 1.442695
        %v2914 = vpow.pop %v2913
        %v2915 = vmul.f32 %v2826, 1.442695
        %v2916 = vpow.pop %v2915
        %v2917 = vmul.f32 %v2827, 1.442695
        %v2918 = vpow.pop %v2917
        %v2919 = vmul.f32 %v2828, 1.442695
        %v2920 = vpow.pop %v2919
        %v2921 = vmul.f32 %v2829, 1.442695
        %v2922 = vpow.pop %v2921
        %v2923 = vmul.f32 %v2830, 1.442695
        %v2924 = vpow.pop %v2923
        %v2925 = vmul.f32 %v2831, 1.442695
        %v2926 = vpow.pop %v2925
        %v2927 = vmul.f32 %v2832, 1.442695
        %v2928 = vpow.pop %v2927
        %v2929 = vadd.f32 %v2834, 1.0
        %v2930 = vadd.f32 %v2836, 1.0
        %v2931 = vadd.f32 %v2838, 1.0
        %v2932 = vadd.f32 %v2840, 1.0
        %v2933 = vadd.f32 %v2842, 1.0
        %v2934 = vadd.f32 %v2844, 1.0
        %v2935 = vadd.f32 %v2846, 1.0
        %v2936 = vadd.f32 %v2848, 1.0
        %v2937 = vadd.f32 %v2850, 1.0
        %v2938 = vadd.f32 %v2852, 1.0
        %v2939 = vadd.f32 %v2854, 1.0
        %v2940 = vadd.f32 %v2856, 1.0
        %v2941 = vadd.f32 %v2858, 1.0
        %v2942 = vadd.f32 %v2860, 1.0
        %v2943 = vadd.f32 %v2862, 1.0
        %v2944 = vadd.f32 %v2864, 1.0
        %v2945 = vadd.f32 %v2866, 1.0
        %v2946 = vadd.f32 %v2868, 1.0
        %v2947 = vadd.f32 %v2870, 1.0
        %v2948 = vadd.f32 %v2872, 1.0
        %v2949 = vadd.f32 %v2874, 1.0
        %v2950 = vadd.f32 %v2876, 1.0
        %v2951 = vadd.f32 %v2878, 1.0
        %v2952 = vadd.f32 %v2880, 1.0
        %v2953 = vadd.f32 %v2882, 1.0
        %v2954 = vadd.f32 %v2884, 1.0
        %v2955 = vadd.f32 %v2886, 1.0
        %v2956 = vadd.f32 %v2888, 1.0
        %v2957 = vadd.f32 %v2890, 1.0
        %v2958 = vadd.f32 %v2892, 1.0
        %v2959 = vadd.f32 %v2894, 1.0
        %v2960 = vadd.f32 %v2896, 1.0
        %v2961 = vadd.f32 %v2898, 1.0
        %v2962 = vadd.f32 %v2900, 1.0
        %v2963 = vadd.f32 %v2902, 1.0
        %v2964 = vadd.f32 %v2904, 1.0
        %v2965 = vadd.f32 %v2906, 1.0
        %v2966 = vadd.f32 %v2908, 1.0
        %v2967 = vadd.f32 %v2910, 1.0
        %v2968 = vadd.f32 %v2912, 1.0
        %v2969 = vadd.f32 %v2914, 1.0
        %v2970 = vadd.f32 %v2916, 1.0
        %v2971 = vadd.f32 %v2918, 1.0
        %v2972 = vadd.f32 %v2920, 1.0
        %v2973 = vadd.f32 %v2922, 1.0
        %v2974 = vadd.f32 %v2924, 1.0
        %v2975 = vadd.f32 %v2926, 1.0
        %v2976 = vadd.f32 %v2928, 1.0
        %v2977 = vrcp.pop %v2929
        %v2978 = vmul.f32 1.0, %v2977
        %v2979 = vrcp.pop %v2930
        %v2980 = vmul.f32 1.0, %v2979
        %v2981 = vrcp.pop %v2931
        %v2982 = vmul.f32 1.0, %v2981
        %v2983 = vrcp.pop %v2932
        %v2984 = vmul.f32 1.0, %v2983
        %v2985 = vrcp.pop %v2933
        %v2986 = vmul.f32 1.0, %v2985
        %v2987 = vrcp.pop %v2934
        %v2988 = vmul.f32 1.0, %v2987
        %v2989 = vrcp.pop %v2935
        %v2990 = vmul.f32 1.0, %v2989
        %v2991 = vrcp.pop %v2936
        %v2992 = vmul.f32 1.0, %v2991
        %v2993 = vrcp.pop %v2937
        %v2994 = vmul.f32 1.0, %v2993
        %v2995 = vrcp.pop %v2938
        %v2996 = vmul.f32 1.0, %v2995
        %v2997 = vrcp.pop %v2939
        %v2998 = vmul.f32 1.0, %v2997
        %v2999 = vrcp.pop %v2940
        %v3000 = vmul.f32 1.0, %v2999
        %v3001 = vrcp.pop %v2941
        %v3002 = vmul.f32 1.0, %v3001
        %v3003 = vrcp.pop %v2942
        %v3004 = vmul.f32 1.0, %v3003
        %v3005 = vrcp.pop %v2943
        %v3006 = vmul.f32 1.0, %v3005
        %v3007 = vrcp.pop %v2944
        %v3008 = vmul.f32 1.0, %v3007
        %v3009 = vrcp.pop %v2945
        %v3010 = vmul.f32 1.0, %v3009
        %v3011 = vrcp.pop %v2946
        %v3012 = vmul.f32 1.0, %v3011
        %v3013 = vrcp.pop %v2947
        %v3014 = vmul.f32 1.0, %v3013
        %v3015 = vrcp.pop %v2948
        %v3016 = vmul.f32 1.0, %v3015
        %v3017 = vrcp.pop %v2949
        %v3018 = vmul.f32 1.0, %v3017
        %v3019 = vrcp.pop %v2950
        %v3020 = vmul.f32 1.0, %v3019
        %v3021 = vrcp.pop %v2951
        %v3022 = vmul.f32 1.0, %v3021
        %v3023 = vrcp.pop %v2952
        %v3024 = vmul.f32 1.0, %v3023
        %v3025 = vrcp.pop %v2953
        %v3026 = vmul.f32 1.0, %v3025
        %v3027 = vrcp.pop %v2954
        %v3028 = vmul.f32 1.0, %v3027
        %v3029 = vrcp.pop %v2955
        %v3030 = vmul.f32 1.0, %v3029
        %v3031 = vrcp.pop %v2956
        %v3032 = vmul.f32 1.0, %v3031
        %v3033 = vrcp.pop %v2957
        %v3034 = vmul.f32 1.0, %v3033
        %v3035 = vrcp.pop %v2958
        %v3036 = vmul.f32 1.0, %v3035
        %v3037 = vrcp.pop %v2959
        %v3038 = vmul.f32 1.0, %v3037
        %v3039 = vrcp.pop %v2960
        %v3040 = vmul.f32 1.0, %v3039
        %v3041 = vrcp.pop %v2961
        %v3042 = vmul.f32 1.0, %v3041
        %v3043 = vrcp.pop %v2962
        %v3044 = vmul.f32 1.0, %v3043
        %v3045 = vrcp.pop %v2963
        %v3046 = vmul.f32 1.0, %v3045
        %v3047 = vrcp.pop %v2964
        %v3048 = vmul.f32 1.0, %v3047
        %v3049 = vrcp.pop %v2965
        %v3050 = vmul.f32 1.0, %v3049
        %v3051 = vrcp.pop %v2966
        %v3052 = vmul.f32 1.0, %v3051
        %v3053 = vrcp.pop %v2967
        %v3054 = vmul.f32 1.0, %v3053
        %v3055 = vrcp.pop %v2968
        %v3056 = vmul.f32 1.0, %v3055
        %v3057 = vrcp.pop %v2969
        %v3058 = vmul.f32 1.0, %v3057
        %v3059 = vrcp.pop %v2970
        %v3060 = vmul.f32 1.0, %v3059
        %v3061 = vrcp.pop %v2971
        %v3062 = vmul.f32 1.0, %v3061
        %v3063 = vrcp.pop %v2972
        %v3064 = vmul.f32 1.0, %v3063
        %v3065 = vrcp.pop %v2973
        %v3066 = vmul.f32 1.0, %v3065
        %v3067 = vrcp.pop %v2974
        %v3068 = vmul.f32 1.0, %v3067
        %v3069 = vrcp.pop %v2975
        %v3070 = vmul.f32 1.0, %v3069
        %v3071 = vrcp.pop %v2976
        %v3072 = vmul.f32 1.0, %v3071
        %v3073 = vsel %vm2736, %v2737, %v2978
        %v3074 = vsel %vm2736, %v2738, %v2980
        %v3075 = vsel %vm2736, %v2739, %v2982
        %v3076 = vsel %vm2736, %v2740, %v2984
        %v3077 = vsel %vm2736, %v2741, %v2986
        %v3078 = vsel %vm2736, %v2742, %v2988
        %v3079 = vsel %vm2736, %v2743, %v2990
        %v3080 = vsel %vm2736, %v2744, %v2992
        %v3081 = vsel %vm2736, %v2745, %v2994
        %v3082 = vsel %vm2736, %v2746, %v2996
        %v3083 = vsel %vm2736, %v2747, %v2998
        %v3084 = vsel %vm2736, %v2748, %v3000
        %v3085 = vsel %vm2736, %v2749, %v3002
        %v3086 = vsel %vm2736, %v2750, %v3004
        %v3087 = vsel %vm2736, %v2751, %v3006
        %v3088 = vsel %vm2736, %v2752, %v3008
        %v3089 = vsel %vm2736, %v2753, %v3010
        %v3090 = vsel %vm2736, %v2754, %v3012
        %v3091 = vsel %vm2736, %v2755, %v3014
        %v3092 = vsel %vm2736, %v2756, %v3016
        %v3093 = vsel %vm2736, %v2757, %v3018
        %v3094 = vsel %vm2736, %v2758, %v3020
        %v3095 = vsel %vm2736, %v2759, %v3022
        %v3096 = vsel %vm2736, %v2760, %v3024
        %v3097 = vsel %vm2736, %v2761, %v3026
        %v3098 = vsel %vm2736, %v2762, %v3028
        %v3099 = vsel %vm2736, %v2763, %v3030
        %v3100 = vsel %vm2736, %v2764, %v3032
        %v3101 = vsel %vm2736, %v2765, %v3034
        %v3102 = vsel %vm2736, %v2766, %v3036
        %v3103 = vsel %vm2736, %v2767, %v3038
        %v3104 = vsel %vm2736, %v2768, %v3040
        %v3105 = vsel %vm2736, %v2769, %v3042
        %v3106 = vsel %vm2736, %v2770, %v3044
        %v3107 = vsel %vm2736, %v2771, %v3046
        %v3108 = vsel %vm2736, %v2772, %v3048
        %v3109 = vsel %vm2736, %v2773, %v3050
        %v3110 = vsel %vm2736, %v2774, %v3052
        %v3111 = vsel %vm2736, %v2775, %v3054
        %v3112 = vsel %vm2736, %v2776, %v3056
        %v3113 = vsel %vm2736, %v2777, %v3058
        %v3114 = vsel %vm2736, %v2778, %v3060
        %v3115 = vsel %vm2736, %v2779, %v3062
        %v3116 = vsel %vm2736, %v2780, %v3064
        %v3117 = vsel %vm2736, %v2781, %v3066
        %v3118 = vsel %vm2736, %v2782, %v3068
        %v3119 = vsel %vm2736, %v2783, %v3070
        %v3120 = vsel %vm2736, %v2784, %v3072
        %v3121 = vld [vmem:[%s297] sm:$0xff]
        %v3122 = vld [vmem:[%s297 + $0x8] sm:$0xff]
        %v3123 = vld [vmem:[%s297 + $0x10] sm:$0xff]
        %v3124 = vld [vmem:[%s297 + $0x18] sm:$0xff]
        %v3125 = vld [vmem:[%s297 + $0x20] sm:$0xff]
        %v3126 = vld [vmem:[%s297 + $0x28] sm:$0xff]
        %v3127 = vld [vmem:[%s297 + $0x30] sm:$0xff]
        %v3128 = vld [vmem:[%s297 + $0x38] sm:$0xff]
        %v3129 = vld [vmem:[%s297 + $0x40] sm:$0xff]
        %v3130 = vld [vmem:[%s297 + $0x48] sm:$0xff]
        %v3131 = vld [vmem:[%s297 + $0x50] sm:$0xff]
        %v3132 = vld [vmem:[%s297 + $0x58] sm:$0xff]
        %v3133 = vld [vmem:[%s297 + $0x60] sm:$0xff]
        %v3134 = vld [vmem:[%s297 + $0x68] sm:$0xff]
        %v3135 = vld [vmem:[%s297 + $0x70] sm:$0xff]
        %v3136 = vld [vmem:[%s297 + $0x78] sm:$0xff]
        %v3137 = vld [vmem:[%s297 + $0x80] sm:$0xff]
        %v3138 = vld [vmem:[%s297 + $0x88] sm:$0xff]
        %v3139 = vld [vmem:[%s297 + $0x90] sm:$0xff]
        %v3140 = vld [vmem:[%s297 + $0x98] sm:$0xff]
        %v3141 = vld [vmem:[%s297 + $0xa0] sm:$0xff]
        %v3142 = vld [vmem:[%s297 + $0xa8] sm:$0xff]
        %v3143 = vld [vmem:[%s297 + $0xb0] sm:$0xff]
        %v3144 = vld [vmem:[%s297 + $0xb8] sm:$0xff]
        %v3145 = vld [vmem:[%s297 + $0xc0] sm:$0xff]
        %v3146 = vld [vmem:[%s297 + $0xc8] sm:$0xff]
        %v3147 = vld [vmem:[%s297 + $0xd0] sm:$0xff]
        %v3148 = vld [vmem:[%s297 + $0xd8] sm:$0xff]
        %v3149 = vld [vmem:[%s297 + $0xe0] sm:$0xff]
        %v3150 = vld [vmem:[%s297 + $0xe8] sm:$0xff]
        %v3151 = vld [vmem:[%s297 + $0xf0] sm:$0xff]
        %v3152 = vld [vmem:[%s297 + $0xf8] sm:$0xff]
        %vm3185 = vcmask 1046528
        %v3186 = vrot.slane %v3121, 1
        %v3187 = vrot.slane %v3122, 1
        %v3188 = vsel %vm3185, %v3186, %v3187
        %v3189 = vrot.slane %v3123, 1
        %v3190 = vrot.slane %v3124, 1
        %v3191 = vsel %vm3185, %v3189, %v3190
        %v3192 = vrot.slane %v3125, 1
        %v3193 = vrot.slane %v3126, 1
        %v3194 = vsel %vm3185, %v3192, %v3193
        %v3195 = vrot.slane %v3127, 1
        %v3196 = vrot.slane %v3128, 1
        %v3197 = vsel %vm3185, %v3195, %v3196
        %v3198 = vrot.slane %v3129, 1
        %v3199 = vrot.slane %v3130, 1
        %v3200 = vsel %vm3185, %v3198, %v3199
        %v3201 = vrot.slane %v3131, 1
        %v3202 = vrot.slane %v3132, 1
        %v3203 = vsel %vm3185, %v3201, %v3202
        %v3204 = vrot.slane %v3133, 1
        %v3205 = vrot.slane %v3134, 1
        %v3206 = vsel %vm3185, %v3204, %v3205
        %v3207 = vrot.slane %v3135, 1
        %v3208 = vrot.slane %v3136, 1
        %v3209 = vsel %vm3185, %v3207, %v3208
        %v3210 = vrot.slane %v3137, 1
        %v3211 = vrot.slane %v3138, 1
        %v3212 = vsel %vm3185, %v3210, %v3211
        %v3213 = vrot.slane %v3139, 1
        %v3214 = vrot.slane %v3140, 1
        %v3215 = vsel %vm3185, %v3213, %v3214
        %v3216 = vrot.slane %v3141, 1
        %v3217 = vrot.slane %v3142, 1
        %v3218 = vsel %vm3185, %v3216, %v3217
        %v3219 = vrot.slane %v3143, 1
        %v3220 = vrot.slane %v3144, 1
        %v3221 = vsel %vm3185, %v3219, %v3220
        %v3222 = vrot.slane %v3145, 1
        %v3223 = vrot.slane %v3146, 1
        %v3224 = vsel %vm3185, %v3222, %v3223
        %v3225 = vrot.slane %v3147, 1
        %v3226 = vrot.slane %v3148, 1
        %v3227 = vsel %vm3185, %v3225, %v3226
        %v3228 = vrot.slane %v3149, 1
        %v3229 = vrot.slane %v3150, 1
        %v3230 = vsel %vm3185, %v3228, %v3229
        %v3231 = vrot.slane %v3151, 1
        %v3232 = vrot.slane %v3152, 1
        %v3233 = vsel %vm3185, %v3231, %v3232
        %3234 = vrot.lane.b32.xlu0 %v3186, 32
        %v3235 = vpop.permute.xlu0 %3234
        %3236 = vrot.lane.b32.xlu0 %v3188, 32
        %v3237 = vpop.permute.xlu0 %3236
        %3238 = vrot.lane.b32.xlu0 %v3187, 32
        %v3239 = vpop.permute.xlu0 %3238
        %3240 = vrot.lane.b32.xlu0 %v3189, 32
        %v3241 = vpop.permute.xlu0 %3240
        %3242 = vrot.lane.b32.xlu0 %v3191, 32
        %v3243 = vpop.permute.xlu0 %3242
        %3244 = vrot.lane.b32.xlu0 %v3190, 32
        %v3245 = vpop.permute.xlu0 %3244
        %3246 = vrot.lane.b32.xlu0 %v3192, 32
        %v3247 = vpop.permute.xlu0 %3246
        %3248 = vrot.lane.b32.xlu0 %v3194, 32
        %v3249 = vpop.permute.xlu0 %3248
        %3250 = vrot.lane.b32.xlu0 %v3193, 32
        %v3251 = vpop.permute.xlu0 %3250
        %3252 = vrot.lane.b32.xlu0 %v3195, 32
        %v3253 = vpop.permute.xlu0 %3252
        %3254 = vrot.lane.b32.xlu0 %v3197, 32
        %v3255 = vpop.permute.xlu0 %3254
        %3256 = vrot.lane.b32.xlu0 %v3196, 32
        %v3257 = vpop.permute.xlu0 %3256
        %3258 = vrot.lane.b32.xlu0 %v3198, 32
        %v3259 = vpop.permute.xlu0 %3258
        %3260 = vrot.lane.b32.xlu0 %v3200, 32
        %v3261 = vpop.permute.xlu0 %3260
        %3262 = vrot.lane.b32.xlu0 %v3199, 32
        %v3263 = vpop.permute.xlu0 %3262
        %3264 = vrot.lane.b32.xlu0 %v3201, 32
        %v3265 = vpop.permute.xlu0 %3264
        %3266 = vrot.lane.b32.xlu0 %v3203, 32
        %v3267 = vpop.permute.xlu0 %3266
        %3268 = vrot.lane.b32.xlu0 %v3202, 32
        %v3269 = vpop.permute.xlu0 %3268
        %3270 = vrot.lane.b32.xlu0 %v3204, 32
        %v3271 = vpop.permute.xlu0 %3270
        %3272 = vrot.lane.b32.xlu0 %v3206, 32
        %v3273 = vpop.permute.xlu0 %3272
        %3274 = vrot.lane.b32.xlu0 %v3205, 32
        %v3275 = vpop.permute.xlu0 %3274
        %3276 = vrot.lane.b32.xlu0 %v3207, 32
        %v3277 = vpop.permute.xlu0 %3276
        %3278 = vrot.lane.b32.xlu0 %v3209, 32
        %v3279 = vpop.permute.xlu0 %3278
        %3280 = vrot.lane.b32.xlu0 %v3208, 32
        %v3281 = vpop.permute.xlu0 %3280
        %3282 = vrot.lane.b32.xlu0 %v3210, 32
        %v3283 = vpop.permute.xlu0 %3282
        %3284 = vrot.lane.b32.xlu0 %v3212, 32
        %v3285 = vpop.permute.xlu0 %3284
        %3286 = vrot.lane.b32.xlu0 %v3211, 32
        %v3287 = vpop.permute.xlu0 %3286
        %3288 = vrot.lane.b32.xlu0 %v3213, 32
        %v3289 = vpop.permute.xlu0 %3288
        %3290 = vrot.lane.b32.xlu0 %v3215, 32
        %v3291 = vpop.permute.xlu0 %3290
        %3292 = vrot.lane.b32.xlu0 %v3214, 32
        %v3293 = vpop.permute.xlu0 %3292
        %3294 = vrot.lane.b32.xlu0 %v3216, 32
        %v3295 = vpop.permute.xlu0 %3294
        %3296 = vrot.lane.b32.xlu0 %v3218, 32
        %v3297 = vpop.permute.xlu0 %3296
        %3298 = vrot.lane.b32.xlu0 %v3217, 32
        %v3299 = vpop.permute.xlu0 %3298
        %3300 = vrot.lane.b32.xlu0 %v3219, 32
        %v3301 = vpop.permute.xlu0 %3300
        %3302 = vrot.lane.b32.xlu0 %v3221, 32
        %v3303 = vpop.permute.xlu0 %3302
        %3304 = vrot.lane.b32.xlu0 %v3220, 32
        %v3305 = vpop.permute.xlu0 %3304
        %3306 = vrot.lane.b32.xlu0 %v3222, 32
        %v3307 = vpop.permute.xlu0 %3306
        %3308 = vrot.lane.b32.xlu0 %v3224, 32
        %v3309 = vpop.permute.xlu0 %3308
        %3310 = vrot.lane.b32.xlu0 %v3223, 32
        %v3311 = vpop.permute.xlu0 %3310
        %3312 = vrot.lane.b32.xlu0 %v3225, 32
        %v3313 = vpop.permute.xlu0 %3312
        %3314 = vrot.lane.b32.xlu0 %v3227, 32
        %v3315 = vpop.permute.xlu0 %3314
        %3316 = vrot.lane.b32.xlu0 %v3226, 32
        %v3317 = vpop.permute.xlu0 %3316
        %3318 = vrot.lane.b32.xlu0 %v3228, 32
        %v3319 = vpop.permute.xlu0 %3318
        %3320 = vrot.lane.b32.xlu0 %v3230, 32
        %v3321 = vpop.permute.xlu0 %3320
        %3322 = vrot.lane.b32.xlu0 %v3229, 32
        %v3323 = vpop.permute.xlu0 %3322
        %3324 = vrot.lane.b32.xlu0 %v3231, 32
        %v3325 = vpop.permute.xlu0 %3324
        %3326 = vrot.lane.b32.xlu0 %v3233, 32
        %v3327 = vpop.permute.xlu0 %3326
        %3328 = vrot.lane.b32.xlu0 %v3232, 32
        %v3329 = vpop.permute.xlu0 %3328
        %v3378 = vmul.f32 %v3073, %v3235
        %v3379 = vmul.f32 %v3074, %v3237
        %v3380 = vmul.f32 %v3075, %v3239
        %v3381 = vmul.f32 %v3076, %v3241
        %v3382 = vmul.f32 %v3077, %v3243
        %v3383 = vmul.f32 %v3078, %v3245
        %v3384 = vmul.f32 %v3079, %v3247
        %v3385 = vmul.f32 %v3080, %v3249
        %v3386 = vmul.f32 %v3081, %v3251
        %v3387 = vmul.f32 %v3082, %v3253
        %v3388 = vmul.f32 %v3083, %v3255
        %v3389 = vmul.f32 %v3084, %v3257
        %v3390 = vmul.f32 %v3085, %v3259
        %v3391 = vmul.f32 %v3086, %v3261
        %v3392 = vmul.f32 %v3087, %v3263
        %v3393 = vmul.f32 %v3088, %v3265
        %v3394 = vmul.f32 %v3089, %v3267
        %v3395 = vmul.f32 %v3090, %v3269
        %v3396 = vmul.f32 %v3091, %v3271
        %v3397 = vmul.f32 %v3092, %v3273
        %v3398 = vmul.f32 %v3093, %v3275
        %v3399 = vmul.f32 %v3094, %v3277
        %v3400 = vmul.f32 %v3095, %v3279
        %v3401 = vmul.f32 %v3096, %v3281
        %v3402 = vmul.f32 %v3097, %v3283
        %v3403 = vmul.f32 %v3098, %v3285
        %v3404 = vmul.f32 %v3099, %v3287
        %v3405 = vmul.f32 %v3100, %v3289
        %v3406 = vmul.f32 %v3101, %v3291
        %v3407 = vmul.f32 %v3102, %v3293
        %v3408 = vmul.f32 %v3103, %v3295
        %v3409 = vmul.f32 %v3104, %v3297
        %v3410 = vmul.f32 %v3105, %v3299
        %v3411 = vmul.f32 %v3106, %v3301
        %v3412 = vmul.f32 %v3107, %v3303
        %v3413 = vmul.f32 %v3108, %v3305
        %v3414 = vmul.f32 %v3109, %v3307
        %v3415 = vmul.f32 %v3110, %v3309
        %v3416 = vmul.f32 %v3111, %v3311
        %v3417 = vmul.f32 %v3112, %v3313
        %v3418 = vmul.f32 %v3113, %v3315
        %v3419 = vmul.f32 %v3114, %v3317
        %v3420 = vmul.f32 %v3115, %v3319
        %v3421 = vmul.f32 %v3116, %v3321
        %v3422 = vmul.f32 %v3117, %v3323
        %v3423 = vmul.f32 %v3118, %v3325
        %v3424 = vmul.f32 %v3119, %v3327
        %v3425 = vmul.f32 %v3120, %v3329
        %3474 = vrot.lane.b32.xlu0 %v3073, 32
        %v3475 = vpop.permute.xlu0 %3474
        %3476 = vrot.lane.b32.xlu0 %v3074, 32
        %v3477 = vpop.permute.xlu0 %3476
        %3478 = vrot.lane.b32.xlu0 %v3075, 32
        %v3479 = vpop.permute.xlu0 %3478
        %3480 = vrot.lane.b32.xlu0 %v3076, 32
        %v3481 = vpop.permute.xlu0 %3480
        %3482 = vrot.lane.b32.xlu0 %v3077, 32
        %v3483 = vpop.permute.xlu0 %3482
        %3484 = vrot.lane.b32.xlu0 %v3078, 32
        %v3485 = vpop.permute.xlu0 %3484
        %3486 = vrot.lane.b32.xlu0 %v3079, 32
        %v3487 = vpop.permute.xlu0 %3486
        %3488 = vrot.lane.b32.xlu0 %v3080, 32
        %v3489 = vpop.permute.xlu0 %3488
        %3490 = vrot.lane.b32.xlu0 %v3081, 32
        %v3491 = vpop.permute.xlu0 %3490
        %3492 = vrot.lane.b32.xlu0 %v3082, 32
        %v3493 = vpop.permute.xlu0 %3492
        %3494 = vrot.lane.b32.xlu0 %v3083, 32
        %v3495 = vpop.permute.xlu0 %3494
        %3496 = vrot.lane.b32.xlu0 %v3084, 32
        %v3497 = vpop.permute.xlu0 %3496
        %3498 = vrot.lane.b32.xlu0 %v3085, 32
        %v3499 = vpop.permute.xlu0 %3498
        %3500 = vrot.lane.b32.xlu0 %v3086, 32
        %v3501 = vpop.permute.xlu0 %3500
        %3502 = vrot.lane.b32.xlu0 %v3087, 32
        %v3503 = vpop.permute.xlu0 %3502
        %3504 = vrot.lane.b32.xlu0 %v3088, 32
        %v3505 = vpop.permute.xlu0 %3504
        %3506 = vrot.lane.b32.xlu0 %v3089, 32
        %v3507 = vpop.permute.xlu0 %3506
        %3508 = vrot.lane.b32.xlu0 %v3090, 32
        %v3509 = vpop.permute.xlu0 %3508
        %3510 = vrot.lane.b32.xlu0 %v3091, 32
        %v3511 = vpop.permute.xlu0 %3510
        %3512 = vrot.lane.b32.xlu0 %v3092, 32
        %v3513 = vpop.permute.xlu0 %3512
        %3514 = vrot.lane.b32.xlu0 %v3093, 32
        %v3515 = vpop.permute.xlu0 %3514
        %3516 = vrot.lane.b32.xlu0 %v3094, 32
        %v3517 = vpop.permute.xlu0 %3516
        %3518 = vrot.lane.b32.xlu0 %v3095, 32
        %v3519 = vpop.permute.xlu0 %3518
        %3520 = vrot.lane.b32.xlu0 %v3096, 32
        %v3521 = vpop.permute.xlu0 %3520
        %3522 = vrot.lane.b32.xlu0 %v3097, 32
        %v3523 = vpop.permute.xlu0 %3522
        %3524 = vrot.lane.b32.xlu0 %v3098, 32
        %v3525 = vpop.permute.xlu0 %3524
        %3526 = vrot.lane.b32.xlu0 %v3099, 32
        %v3527 = vpop.permute.xlu0 %3526
        %3528 = vrot.lane.b32.xlu0 %v3100, 32
        %v3529 = vpop.permute.xlu0 %3528
        %3530 = vrot.lane.b32.xlu0 %v3101, 32
        %v3531 = vpop.permute.xlu0 %3530
        %3532 = vrot.lane.b32.xlu0 %v3102, 32
        %v3533 = vpop.permute.xlu0 %3532
        %3534 = vrot.lane.b32.xlu0 %v3103, 32
        %v3535 = vpop.permute.xlu0 %3534
        %3536 = vrot.lane.b32.xlu0 %v3104, 32
        %v3537 = vpop.permute.xlu0 %3536
        %3538 = vrot.lane.b32.xlu0 %v3105, 32
        %v3539 = vpop.permute.xlu0 %3538
        %3540 = vrot.lane.b32.xlu0 %v3106, 32
        %v3541 = vpop.permute.xlu0 %3540
        %3542 = vrot.lane.b32.xlu0 %v3107, 32
        %v3543 = vpop.permute.xlu0 %3542
        %3544 = vrot.lane.b32.xlu0 %v3108, 32
        %v3545 = vpop.permute.xlu0 %3544
        %3546 = vrot.lane.b32.xlu0 %v3109, 32
        %v3547 = vpop.permute.xlu0 %3546
        %3548 = vrot.lane.b32.xlu0 %v3110, 32
        %v3549 = vpop.permute.xlu0 %3548
        %3550 = vrot.lane.b32.xlu0 %v3111, 32
        %v3551 = vpop.permute.xlu0 %3550
        %3552 = vrot.lane.b32.xlu0 %v3112, 32
        %v3553 = vpop.permute.xlu0 %3552
        %3554 = vrot.lane.b32.xlu0 %v3113, 32
        %v3555 = vpop.permute.xlu0 %3554
        %3556 = vrot.lane.b32.xlu0 %v3114, 32
        %v3557 = vpop.permute.xlu0 %3556
        %3558 = vrot.lane.b32.xlu0 %v3115, 32
        %v3559 = vpop.permute.xlu0 %3558
        %3560 = vrot.lane.b32.xlu0 %v3116, 32
        %v3561 = vpop.permute.xlu0 %3560
        %3562 = vrot.lane.b32.xlu0 %v3117, 32
        %v3563 = vpop.permute.xlu0 %3562
        %3564 = vrot.lane.b32.xlu0 %v3118, 32
        %v3565 = vpop.permute.xlu0 %3564
        %3566 = vrot.lane.b32.xlu0 %v3119, 32
        %v3567 = vpop.permute.xlu0 %3566
        %3568 = vrot.lane.b32.xlu0 %v3120, 32
        %v3569 = vpop.permute.xlu0 %3568
        %v3618 = vmul.f32 %v3073, %v3475
        %v3619 = vmul.f32 %v3074, %v3477
        %v3620 = vmul.f32 %v3075, %v3479
        %v3621 = vmul.f32 %v3076, %v3481
        %v3622 = vmul.f32 %v3077, %v3483
        %v3623 = vmul.f32 %v3078, %v3485
        %v3624 = vmul.f32 %v3079, %v3487
        %v3625 = vmul.f32 %v3080, %v3489
        %v3626 = vmul.f32 %v3081, %v3491
        %v3627 = vmul.f32 %v3082, %v3493
        %v3628 = vmul.f32 %v3083, %v3495
        %v3629 = vmul.f32 %v3084, %v3497
        %v3630 = vmul.f32 %v3085, %v3499
        %v3631 = vmul.f32 %v3086, %v3501
        %v3632 = vmul.f32 %v3087, %v3503
        %v3633 = vmul.f32 %v3088, %v3505
        %v3634 = vmul.f32 %v3089, %v3507
        %v3635 = vmul.f32 %v3090, %v3509
        %v3636 = vmul.f32 %v3091, %v3511
        %v3637 = vmul.f32 %v3092, %v3513
        %v3638 = vmul.f32 %v3093, %v3515
        %v3639 = vmul.f32 %v3094, %v3517
        %v3640 = vmul.f32 %v3095, %v3519
        %v3641 = vmul.f32 %v3096, %v3521
        %v3642 = vmul.f32 %v3097, %v3523
        %v3643 = vmul.f32 %v3098, %v3525
        %v3644 = vmul.f32 %v3099, %v3527
        %v3645 = vmul.f32 %v3100, %v3529
        %v3646 = vmul.f32 %v3101, %v3531
        %v3647 = vmul.f32 %v3102, %v3533
        %v3648 = vmul.f32 %v3103, %v3535
        %v3649 = vmul.f32 %v3104, %v3537
        %v3650 = vmul.f32 %v3105, %v3539
        %v3651 = vmul.f32 %v3106, %v3541
        %v3652 = vmul.f32 %v3107, %v3543
        %v3653 = vmul.f32 %v3108, %v3545
        %v3654 = vmul.f32 %v3109, %v3547
        %v3655 = vmul.f32 %v3110, %v3549
        %v3656 = vmul.f32 %v3111, %v3551
        %v3657 = vmul.f32 %v3112, %v3553
        %v3658 = vmul.f32 %v3113, %v3555
        %v3659 = vmul.f32 %v3114, %v3557
        %v3660 = vmul.f32 %v3115, %v3559
        %v3661 = vmul.f32 %v3116, %v3561
        %v3662 = vmul.f32 %v3117, %v3563
        %v3663 = vmul.f32 %v3118, %v3565
        %v3664 = vmul.f32 %v3119, %v3567
        %v3665 = vmul.f32 %v3120, %v3569
        %3714 = vrot.lane.b32.xlu0 %v3618, 32
        %v3715 = vpop.permute.xlu0 %3714
        %3716 = vrot.lane.b32.xlu0 %v3619, 32
        %v3717 = vpop.permute.xlu0 %3716
        %3718 = vrot.lane.b32.xlu0 %v3620, 32
        %v3719 = vpop.permute.xlu0 %3718
        %3720 = vrot.lane.b32.xlu0 %v3621, 32
        %v3721 = vpop.permute.xlu0 %3720
        %3722 = vrot.lane.b32.xlu0 %v3622, 32
        %v3723 = vpop.permute.xlu0 %3722
        %3724 = vrot.lane.b32.xlu0 %v3623, 32
        %v3725 = vpop.permute.xlu0 %3724
        %3726 = vrot.lane.b32.xlu0 %v3624, 32
        %v3727 = vpop.permute.xlu0 %3726
        %3728 = vrot.lane.b32.xlu0 %v3625, 32
        %v3729 = vpop.permute.xlu0 %3728
        %3730 = vrot.lane.b32.xlu0 %v3626, 32
        %v3731 = vpop.permute.xlu0 %3730
        %3732 = vrot.lane.b32.xlu0 %v3627, 32
        %v3733 = vpop.permute.xlu0 %3732
        %3734 = vrot.lane.b32.xlu0 %v3628, 32
        %v3735 = vpop.permute.xlu0 %3734
        %3736 = vrot.lane.b32.xlu0 %v3629, 32
        %v3737 = vpop.permute.xlu0 %3736
        %3738 = vrot.lane.b32.xlu0 %v3630, 32
        %v3739 = vpop.permute.xlu0 %3738
        %3740 = vrot.lane.b32.xlu0 %v3631, 32
        %v3741 = vpop.permute.xlu0 %3740
        %3742 = vrot.lane.b32.xlu0 %v3632, 32
        %v3743 = vpop.permute.xlu0 %3742
        %3744 = vrot.lane.b32.xlu0 %v3633, 32
        %v3745 = vpop.permute.xlu0 %3744
        %3746 = vrot.lane.b32.xlu0 %v3634, 32
        %v3747 = vpop.permute.xlu0 %3746
        %3748 = vrot.lane.b32.xlu0 %v3635, 32
        %v3749 = vpop.permute.xlu0 %3748
        %3750 = vrot.lane.b32.xlu0 %v3636, 32
        %v3751 = vpop.permute.xlu0 %3750
        %3752 = vrot.lane.b32.xlu0 %v3637, 32
        %v3753 = vpop.permute.xlu0 %3752
        %3754 = vrot.lane.b32.xlu0 %v3638, 32
        %v3755 = vpop.permute.xlu0 %3754
        %3756 = vrot.lane.b32.xlu0 %v3639, 32
        %v3757 = vpop.permute.xlu0 %3756
        %3758 = vrot.lane.b32.xlu0 %v3640, 32
        %v3759 = vpop.permute.xlu0 %3758
        %3760 = vrot.lane.b32.xlu0 %v3641, 32
        %v3761 = vpop.permute.xlu0 %3760
        %3762 = vrot.lane.b32.xlu0 %v3642, 32
        %v3763 = vpop.permute.xlu0 %3762
        %3764 = vrot.lane.b32.xlu0 %v3643, 32
        %v3765 = vpop.permute.xlu0 %3764
        %3766 = vrot.lane.b32.xlu0 %v3644, 32
        %v3767 = vpop.permute.xlu0 %3766
        %3768 = vrot.lane.b32.xlu0 %v3645, 32
        %v3769 = vpop.permute.xlu0 %3768
        %3770 = vrot.lane.b32.xlu0 %v3646, 32
        %v3771 = vpop.permute.xlu0 %3770
        %3772 = vrot.lane.b32.xlu0 %v3647, 32
        %v3773 = vpop.permute.xlu0 %3772
        %3774 = vrot.lane.b32.xlu0 %v3648, 32
        %v3775 = vpop.permute.xlu0 %3774
        %3776 = vrot.lane.b32.xlu0 %v3649, 32
        %v3777 = vpop.permute.xlu0 %3776
        %3778 = vrot.lane.b32.xlu0 %v3650, 32
        %v3779 = vpop.permute.xlu0 %3778
        %3780 = vrot.lane.b32.xlu0 %v3651, 32
        %v3781 = vpop.permute.xlu0 %3780
        %3782 = vrot.lane.b32.xlu0 %v3652, 32
        %v3783 = vpop.permute.xlu0 %3782
        %3784 = vrot.lane.b32.xlu0 %v3653, 32
        %v3785 = vpop.permute.xlu0 %3784
        %3786 = vrot.lane.b32.xlu0 %v3654, 32
        %v3787 = vpop.permute.xlu0 %3786
        %3788 = vrot.lane.b32.xlu0 %v3655, 32
        %v3789 = vpop.permute.xlu0 %3788
        %3790 = vrot.lane.b32.xlu0 %v3656, 32
        %v3791 = vpop.permute.xlu0 %3790
        %3792 = vrot.lane.b32.xlu0 %v3657, 32
        %v3793 = vpop.permute.xlu0 %3792
        %3794 = vrot.lane.b32.xlu0 %v3658, 32
        %v3795 = vpop.permute.xlu0 %3794
        %3796 = vrot.lane.b32.xlu0 %v3659, 32
        %v3797 = vpop.permute.xlu0 %3796
        %3798 = vrot.lane.b32.xlu0 %v3660, 32
        %v3799 = vpop.permute.xlu0 %3798
        %3800 = vrot.lane.b32.xlu0 %v3661, 32
        %v3801 = vpop.permute.xlu0 %3800
        %3802 = vrot.lane.b32.xlu0 %v3662, 32
        %v3803 = vpop.permute.xlu0 %3802
        %3804 = vrot.lane.b32.xlu0 %v3663, 32
        %v3805 = vpop.permute.xlu0 %3804
        %3806 = vrot.lane.b32.xlu0 %v3664, 32
        %v3807 = vpop.permute.xlu0 %3806
        %3808 = vrot.lane.b32.xlu0 %v3665, 32
        %v3809 = vpop.permute.xlu0 %3808
        %v3858 = vadd.f32 %v3378, %v3715
        %v3859 = vadd.f32 %v3379, %v3717
        %v3860 = vadd.f32 %v3380, %v3719
        %v3861 = vadd.f32 %v3381, %v3721
        %v3862 = vadd.f32 %v3382, %v3723
        %v3863 = vadd.f32 %v3383, %v3725
        %v3864 = vadd.f32 %v3384, %v3727
        %v3865 = vadd.f32 %v3385, %v3729
        %v3866 = vadd.f32 %v3386, %v3731
        %v3867 = vadd.f32 %v3387, %v3733
        %v3868 = vadd.f32 %v3388, %v3735
        %v3869 = vadd.f32 %v3389, %v3737
        %v3870 = vadd.f32 %v3390, %v3739
        %v3871 = vadd.f32 %v3391, %v3741
        %v3872 = vadd.f32 %v3392, %v3743
        %v3873 = vadd.f32 %v3393, %v3745
        %v3874 = vadd.f32 %v3394, %v3747
        %v3875 = vadd.f32 %v3395, %v3749
        %v3876 = vadd.f32 %v3396, %v3751
        %v3877 = vadd.f32 %v3397, %v3753
        %v3878 = vadd.f32 %v3398, %v3755
        %v3879 = vadd.f32 %v3399, %v3757
        %v3880 = vadd.f32 %v3400, %v3759
        %v3881 = vadd.f32 %v3401, %v3761
        %v3882 = vadd.f32 %v3402, %v3763
        %v3883 = vadd.f32 %v3403, %v3765
        %v3884 = vadd.f32 %v3404, %v3767
        %v3885 = vadd.f32 %v3405, %v3769
        %v3886 = vadd.f32 %v3406, %v3771
        %v3887 = vadd.f32 %v3407, %v3773
        %v3888 = vadd.f32 %v3408, %v3775
        %v3889 = vadd.f32 %v3409, %v3777
        %v3890 = vadd.f32 %v3410, %v3779
        %v3891 = vadd.f32 %v3411, %v3781
        %v3892 = vadd.f32 %v3412, %v3783
        %v3893 = vadd.f32 %v3413, %v3785
        %v3894 = vadd.f32 %v3414, %v3787
        %v3895 = vadd.f32 %v3415, %v3789
        %v3896 = vadd.f32 %v3416, %v3791
        %v3897 = vadd.f32 %v3417, %v3793
        %v3898 = vadd.f32 %v3418, %v3795
        %v3899 = vadd.f32 %v3419, %v3797
        %v3900 = vadd.f32 %v3420, %v3799
        %v3901 = vadd.f32 %v3421, %v3801
        %v3902 = vadd.f32 %v3422, %v3803
        %v3903 = vadd.f32 %v3423, %v3805
        %v3904 = vadd.f32 %v3424, %v3807
        %v3905 = vadd.f32 %v3425, %v3809
        %v3906 = vtanh.pop %v3858
        %v3907 = vtanh.pop %v3859
        %v3908 = vtanh.pop %v3860
        %v3909 = vtanh.pop %v3861
        %v3910 = vtanh.pop %v3862
        %v3911 = vtanh.pop %v3863
        %v3912 = vtanh.pop %v3864
        %v3913 = vtanh.pop %v3865
        %v3914 = vtanh.pop %v3866
        %v3915 = vtanh.pop %v3867
        %v3916 = vtanh.pop %v3868
        %v3917 = vtanh.pop %v3869
        %v3918 = vtanh.pop %v3870
        %v3919 = vtanh.pop %v3871
        %v3920 = vtanh.pop %v3872
        %v3921 = vtanh.pop %v3873
        %v3922 = vtanh.pop %v3874
        %v3923 = vtanh.pop %v3875
        %v3924 = vtanh.pop %v3876
        %v3925 = vtanh.pop %v3877
        %v3926 = vtanh.pop %v3878
        %v3927 = vtanh.pop %v3879
        %v3928 = vtanh.pop %v3880
        %v3929 = vtanh.pop %v3881
        %v3930 = vtanh.pop %v3882
        %v3931 = vtanh.pop %v3883
        %v3932 = vtanh.pop %v3884
        %v3933 = vtanh.pop %v3885
        %v3934 = vtanh.pop %v3886
        %v3935 = vtanh.pop %v3887
        %v3936 = vtanh.pop %v3888
        %v3937 = vtanh.pop %v3889
        %v3938 = vtanh.pop %v3890
        %v3939 = vtanh.pop %v3891
        %v3940 = vtanh.pop %v3892
        %v3941 = vtanh.pop %v3893
        %v3942 = vtanh.pop %v3894
        %v3943 = vtanh.pop %v3895
        %v3944 = vtanh.pop %v3896
        %v3945 = vtanh.pop %v3897
        %v3946 = vtanh.pop %v3898
        %v3947 = vtanh.pop %v3899
        %v3948 = vtanh.pop %v3900
        %v3949 = vtanh.pop %v3901
        %v3950 = vtanh.pop %v3902
        %v3951 = vtanh.pop %v3903
        %v3952 = vtanh.pop %v3904
        %v3953 = vtanh.pop %v3905
        %4002 = vrot.lane.b32.xlu0 %v3906, 32
        %v4003 = vpop.permute.xlu0 %4002
        %4004 = vrot.lane.b32.xlu0 %v3907, 32
        %v4005 = vpop.permute.xlu0 %4004
        %4006 = vrot.lane.b32.xlu0 %v3908, 32
        %v4007 = vpop.permute.xlu0 %4006
        %4008 = vrot.lane.b32.xlu0 %v3909, 32
        %v4009 = vpop.permute.xlu0 %4008
        %4010 = vrot.lane.b32.xlu0 %v3910, 32
        %v4011 = vpop.permute.xlu0 %4010
        %4012 = vrot.lane.b32.xlu0 %v3911, 32
        %v4013 = vpop.permute.xlu0 %4012
        %4014 = vrot.lane.b32.xlu0 %v3912, 32
        %v4015 = vpop.permute.xlu0 %4014
        %4016 = vrot.lane.b32.xlu0 %v3913, 32
        %v4017 = vpop.permute.xlu0 %4016
        %4018 = vrot.lane.b32.xlu0 %v3914, 32
        %v4019 = vpop.permute.xlu0 %4018
        %4020 = vrot.lane.b32.xlu0 %v3915, 32
        %v4021 = vpop.permute.xlu0 %4020
        %4022 = vrot.lane.b32.xlu0 %v3916, 32
        %v4023 = vpop.permute.xlu0 %4022
        %4024 = vrot.lane.b32.xlu0 %v3917, 32
        %v4025 = vpop.permute.xlu0 %4024
        %4026 = vrot.lane.b32.xlu0 %v3918, 32
        %v4027 = vpop.permute.xlu0 %4026
        %4028 = vrot.lane.b32.xlu0 %v3919, 32
        %v4029 = vpop.permute.xlu0 %4028
        %4030 = vrot.lane.b32.xlu0 %v3920, 32
        %v4031 = vpop.permute.xlu0 %4030
        %4032 = vrot.lane.b32.xlu0 %v3921, 32
        %v4033 = vpop.permute.xlu0 %4032
        %4034 = vrot.lane.b32.xlu0 %v3922, 32
        %v4035 = vpop.permute.xlu0 %4034
        %4036 = vrot.lane.b32.xlu0 %v3923, 32
        %v4037 = vpop.permute.xlu0 %4036
        %4038 = vrot.lane.b32.xlu0 %v3924, 32
        %v4039 = vpop.permute.xlu0 %4038
        %4040 = vrot.lane.b32.xlu0 %v3925, 32
        %v4041 = vpop.permute.xlu0 %4040
        %4042 = vrot.lane.b32.xlu0 %v3926, 32
        %v4043 = vpop.permute.xlu0 %4042
        %4044 = vrot.lane.b32.xlu0 %v3927, 32
        %v4045 = vpop.permute.xlu0 %4044
        %4046 = vrot.lane.b32.xlu0 %v3928, 32
        %v4047 = vpop.permute.xlu0 %4046
        %4048 = vrot.lane.b32.xlu0 %v3929, 32
        %v4049 = vpop.permute.xlu0 %4048
        %4050 = vrot.lane.b32.xlu0 %v3930, 32
        %v4051 = vpop.permute.xlu0 %4050
        %4052 = vrot.lane.b32.xlu0 %v3931, 32
        %v4053 = vpop.permute.xlu0 %4052
        %4054 = vrot.lane.b32.xlu0 %v3932, 32
        %v4055 = vpop.permute.xlu0 %4054
        %4056 = vrot.lane.b32.xlu0 %v3933, 32
        %v4057 = vpop.permute.xlu0 %4056
        %4058 = vrot.lane.b32.xlu0 %v3934, 32
        %v4059 = vpop.permute.xlu0 %4058
        %4060 = vrot.lane.b32.xlu0 %v3935, 32
        %v4061 = vpop.permute.xlu0 %4060
        %4062 = vrot.lane.b32.xlu0 %v3936, 32
        %v4063 = vpop.permute.xlu0 %4062
        %4064 = vrot.lane.b32.xlu0 %v3937, 32
        %v4065 = vpop.permute.xlu0 %4064
        %4066 = vrot.lane.b32.xlu0 %v3938, 32
        %v4067 = vpop.permute.xlu0 %4066
        %4068 = vrot.lane.b32.xlu0 %v3939, 32
        %v4069 = vpop.permute.xlu0 %4068
        %4070 = vrot.lane.b32.xlu0 %v3940, 32
        %v4071 = vpop.permute.xlu0 %4070
        %4072 = vrot.lane.b32.xlu0 %v3941, 32
        %v4073 = vpop.permute.xlu0 %4072
        %4074 = vrot.lane.b32.xlu0 %v3942, 32
        %v4075 = vpop.permute.xlu0 %4074
        %4076 = vrot.lane.b32.xlu0 %v3943, 32
        %v4077 = vpop.permute.xlu0 %4076
        %4078 = vrot.lane.b32.xlu0 %v3944, 32
        %v4079 = vpop.permute.xlu0 %4078
        %4080 = vrot.lane.b32.xlu0 %v3945, 32
        %v4081 = vpop.permute.xlu0 %4080
        %4082 = vrot.lane.b32.xlu0 %v3946, 32
        %v4083 = vpop.permute.xlu0 %4082
        %4084 = vrot.lane.b32.xlu0 %v3947, 32
        %v4085 = vpop.permute.xlu0 %4084
        %4086 = vrot.lane.b32.xlu0 %v3948, 32
        %v4087 = vpop.permute.xlu0 %4086
        %4088 = vrot.lane.b32.xlu0 %v3949, 32
        %v4089 = vpop.permute.xlu0 %4088
        %4090 = vrot.lane.b32.xlu0 %v3950, 32
        %v4091 = vpop.permute.xlu0 %4090
        %4092 = vrot.lane.b32.xlu0 %v3951, 32
        %v4093 = vpop.permute.xlu0 %4092
        %4094 = vrot.lane.b32.xlu0 %v3952, 32
        %v4095 = vpop.permute.xlu0 %4094
        %4096 = vrot.lane.b32.xlu0 %v3953, 32
        %v4097 = vpop.permute.xlu0 %4096
        %v4146 = vmul.f32 %v3073, %v4003
        %v4147 = vmul.f32 %v3074, %v4005
        %v4148 = vmul.f32 %v3075, %v4007
        %v4149 = vmul.f32 %v3076, %v4009
        %v4150 = vmul.f32 %v3077, %v4011
        %v4151 = vmul.f32 %v3078, %v4013
        %v4152 = vmul.f32 %v3079, %v4015
        %v4153 = vmul.f32 %v3080, %v4017
        %v4154 = vmul.f32 %v3081, %v4019
        %v4155 = vmul.f32 %v3082, %v4021
        %v4156 = vmul.f32 %v3083, %v4023
        %v4157 = vmul.f32 %v3084, %v4025
        %v4158 = vmul.f32 %v3085, %v4027
        %v4159 = vmul.f32 %v3086, %v4029
        %v4160 = vmul.f32 %v3087, %v4031
        %v4161 = vmul.f32 %v3088, %v4033
        %v4162 = vmul.f32 %v3089, %v4035
        %v4163 = vmul.f32 %v3090, %v4037
        %v4164 = vmul.f32 %v3091, %v4039
        %v4165 = vmul.f32 %v3092, %v4041
        %v4166 = vmul.f32 %v3093, %v4043
        %v4167 = vmul.f32 %v3094, %v4045
        %v4168 = vmul.f32 %v3095, %v4047
        %v4169 = vmul.f32 %v3096, %v4049
        %v4170 = vmul.f32 %v3097, %v4051
        %v4171 = vmul.f32 %v3098, %v4053
        %v4172 = vmul.f32 %v3099, %v4055
        %v4173 = vmul.f32 %v3100, %v4057
        %v4174 = vmul.f32 %v3101, %v4059
        %v4175 = vmul.f32 %v3102, %v4061
        %v4176 = vmul.f32 %v3103, %v4063
        %v4177 = vmul.f32 %v3104, %v4065
        %v4178 = vmul.f32 %v3105, %v4067
        %v4179 = vmul.f32 %v3106, %v4069
        %v4180 = vmul.f32 %v3107, %v4071
        %v4181 = vmul.f32 %v3108, %v4073
        %v4182 = vmul.f32 %v3109, %v4075
        %v4183 = vmul.f32 %v3110, %v4077
        %v4184 = vmul.f32 %v3111, %v4079
        %v4185 = vmul.f32 %v3112, %v4081
        %v4186 = vmul.f32 %v3113, %v4083
        %v4187 = vmul.f32 %v3114, %v4085
        %v4188 = vmul.f32 %v3115, %v4087
        %v4189 = vmul.f32 %v3116, %v4089
        %v4190 = vmul.f32 %v3117, %v4091
        %v4191 = vmul.f32 %v3118, %v4093
        %v4192 = vmul.f32 %v3119, %v4095
        %v4193 = vmul.f32 %v3120, %v4097
        %4242 = vrot.lane.b32.xlu0 %v3858, 96
        %v4243 = vpop.permute.xlu0 %4242
        %4244 = vrot.lane.b32.xlu0 %v3859, 96
        %v4245 = vpop.permute.xlu0 %4244
        %4246 = vrot.lane.b32.xlu0 %v3860, 96
        %v4247 = vpop.permute.xlu0 %4246
        %4248 = vrot.lane.b32.xlu0 %v3861, 96
        %v4249 = vpop.permute.xlu0 %4248
        %4250 = vrot.lane.b32.xlu0 %v3862, 96
        %v4251 = vpop.permute.xlu0 %4250
        %4252 = vrot.lane.b32.xlu0 %v3863, 96
        %v4253 = vpop.permute.xlu0 %4252
        %4254 = vrot.lane.b32.xlu0 %v3864, 96
        %v4255 = vpop.permute.xlu0 %4254
        %4256 = vrot.lane.b32.xlu0 %v3865, 96
        %v4257 = vpop.permute.xlu0 %4256
        %4258 = vrot.lane.b32.xlu0 %v3866, 96
        %v4259 = vpop.permute.xlu0 %4258
        %4260 = vrot.lane.b32.xlu0 %v3867, 96
        %v4261 = vpop.permute.xlu0 %4260
        %4262 = vrot.lane.b32.xlu0 %v3868, 96
        %v4263 = vpop.permute.xlu0 %4262
        %4264 = vrot.lane.b32.xlu0 %v3869, 96
        %v4265 = vpop.permute.xlu0 %4264
        %4266 = vrot.lane.b32.xlu0 %v3870, 96
        %v4267 = vpop.permute.xlu0 %4266
        %4268 = vrot.lane.b32.xlu0 %v3871, 96
        %v4269 = vpop.permute.xlu0 %4268
        %4270 = vrot.lane.b32.xlu0 %v3872, 96
        %v4271 = vpop.permute.xlu0 %4270
        %4272 = vrot.lane.b32.xlu0 %v3873, 96
        %v4273 = vpop.permute.xlu0 %4272
        %4274 = vrot.lane.b32.xlu0 %v3874, 96
        %v4275 = vpop.permute.xlu0 %4274
        %4276 = vrot.lane.b32.xlu0 %v3875, 96
        %v4277 = vpop.permute.xlu0 %4276
        %4278 = vrot.lane.b32.xlu0 %v3876, 96
        %v4279 = vpop.permute.xlu0 %4278
        %4280 = vrot.lane.b32.xlu0 %v3877, 96
        %v4281 = vpop.permute.xlu0 %4280
        %4282 = vrot.lane.b32.xlu0 %v3878, 96
        %v4283 = vpop.permute.xlu0 %4282
        %4284 = vrot.lane.b32.xlu0 %v3879, 96
        %v4285 = vpop.permute.xlu0 %4284
        %4286 = vrot.lane.b32.xlu0 %v3880, 96
        %v4287 = vpop.permute.xlu0 %4286
        %4288 = vrot.lane.b32.xlu0 %v3881, 96
        %v4289 = vpop.permute.xlu0 %4288
        %4290 = vrot.lane.b32.xlu0 %v3882, 96
        %v4291 = vpop.permute.xlu0 %4290
        %4292 = vrot.lane.b32.xlu0 %v3883, 96
        %v4293 = vpop.permute.xlu0 %4292
        %4294 = vrot.lane.b32.xlu0 %v3884, 96
        %v4295 = vpop.permute.xlu0 %4294
        %4296 = vrot.lane.b32.xlu0 %v3885, 96
        %v4297 = vpop.permute.xlu0 %4296
        %4298 = vrot.lane.b32.xlu0 %v3886, 96
        %v4299 = vpop.permute.xlu0 %4298
        %4300 = vrot.lane.b32.xlu0 %v3887, 96
        %v4301 = vpop.permute.xlu0 %4300
        %4302 = vrot.lane.b32.xlu0 %v3888, 96
        %v4303 = vpop.permute.xlu0 %4302
        %4304 = vrot.lane.b32.xlu0 %v3889, 96
        %v4305 = vpop.permute.xlu0 %4304
        %4306 = vrot.lane.b32.xlu0 %v3890, 96
        %v4307 = vpop.permute.xlu0 %4306
        %4308 = vrot.lane.b32.xlu0 %v3891, 96
        %v4309 = vpop.permute.xlu0 %4308
        %4310 = vrot.lane.b32.xlu0 %v3892, 96
        %v4311 = vpop.permute.xlu0 %4310
        %4312 = vrot.lane.b32.xlu0 %v3893, 96
        %v4313 = vpop.permute.xlu0 %4312
        %4314 = vrot.lane.b32.xlu0 %v3894, 96
        %v4315 = vpop.permute.xlu0 %4314
        %4316 = vrot.lane.b32.xlu0 %v3895, 96
        %v4317 = vpop.permute.xlu0 %4316
        %4318 = vrot.lane.b32.xlu0 %v3896, 96
        %v4319 = vpop.permute.xlu0 %4318
        %4320 = vrot.lane.b32.xlu0 %v3897, 96
        %v4321 = vpop.permute.xlu0 %4320
        %4322 = vrot.lane.b32.xlu0 %v3898, 96
        %v4323 = vpop.permute.xlu0 %4322
        %4324 = vrot.lane.b32.xlu0 %v3899, 96
        %v4325 = vpop.permute.xlu0 %4324
        %4326 = vrot.lane.b32.xlu0 %v3900, 96
        %v4327 = vpop.permute.xlu0 %4326
        %4328 = vrot.lane.b32.xlu0 %v3901, 96
        %v4329 = vpop.permute.xlu0 %4328
        %4330 = vrot.lane.b32.xlu0 %v3902, 96
        %v4331 = vpop.permute.xlu0 %4330
        %4332 = vrot.lane.b32.xlu0 %v3903, 96
        %v4333 = vpop.permute.xlu0 %4332
        %4334 = vrot.lane.b32.xlu0 %v3904, 96
        %v4335 = vpop.permute.xlu0 %4334
        %4336 = vrot.lane.b32.xlu0 %v3905, 96
        %v4337 = vpop.permute.xlu0 %4336
        %vm4386 = vcmask 261127
        %4387 = vst.msk [vmem:[%s302 - $0x7] sm:$0x80] %vm4386, %v4243
        %vm4388 = vcmask 261120
        %4389 = vst.msk [vmem:[%s302 + $0x1] sm:$0xff] %vm4388, %v4245
        %vm4390 = vcmask 260096
        %4391 = vst.msk [vmem:[%s302 + $0x9] sm:$0x7f] %vm4390, %v4247
        %4392 = vst.msk [vmem:[%s302 + $0x9] sm:$0x80] %vm4386, %v4249
        %4393 = vst.msk [vmem:[%s302 + $0x11] sm:$0xff] %vm4388, %v4251
        %4394 = vst.msk [vmem:[%s302 + $0x19] sm:$0x7f] %vm4390, %v4253
        %4395 = vst.msk [vmem:[%s302 + $0x19] sm:$0x80] %vm4386, %v4255
        %4396 = vst.msk [vmem:[%s302 + $0x21] sm:$0xff] %vm4388, %v4257
        %4397 = vst.msk [vmem:[%s302 + $0x29] sm:$0x7f] %vm4390, %v4259
        %4398 = vst.msk [vmem:[%s302 + $0x29] sm:$0x80] %vm4386, %v4261
        %4399 = vst.msk [vmem:[%s302 + $0x31] sm:$0xff] %vm4388, %v4263
        %4400 = vst.msk [vmem:[%s302 + $0x39] sm:$0x7f] %vm4390, %v4265
        %4401 = vst.msk [vmem:[%s302 + $0x39] sm:$0x80] %vm4386, %v4267
        %4402 = vst.msk [vmem:[%s302 + $0x41] sm:$0xff] %vm4388, %v4269
        %4403 = vst.msk [vmem:[%s302 + $0x49] sm:$0x7f] %vm4390, %v4271
        %4404 = vst.msk [vmem:[%s302 + $0x49] sm:$0x80] %vm4386, %v4273
        %4405 = vst.msk [vmem:[%s302 + $0x51] sm:$0xff] %vm4388, %v4275
        %4406 = vst.msk [vmem:[%s302 + $0x59] sm:$0x7f] %vm4390, %v4277
        %4407 = vst.msk [vmem:[%s302 + $0x59] sm:$0x80] %vm4386, %v4279
        %4408 = vst.msk [vmem:[%s302 + $0x61] sm:$0xff] %vm4388, %v4281
        %4409 = vst.msk [vmem:[%s302 + $0x69] sm:$0x7f] %vm4390, %v4283
        %4410 = vst.msk [vmem:[%s302 + $0x69] sm:$0x80] %vm4386, %v4285
        %4411 = vst.msk [vmem:[%s302 + $0x71] sm:$0xff] %vm4388, %v4287
        %4412 = vst.msk [vmem:[%s302 + $0x79] sm:$0x7f] %vm4390, %v4289
        %4413 = vst.msk [vmem:[%s302 + $0x79] sm:$0x80] %vm4386, %v4291
        %4414 = vst.msk [vmem:[%s302 + $0x81] sm:$0xff] %vm4388, %v4293
        %4415 = vst.msk [vmem:[%s302 + $0x89] sm:$0x7f] %vm4390, %v4295
        %4416 = vst.msk [vmem:[%s302 + $0x89] sm:$0x80] %vm4386, %v4297
        %4417 = vst.msk [vmem:[%s302 + $0x91] sm:$0xff] %vm4388, %v4299
        %4418 = vst.msk [vmem:[%s302 + $0x99] sm:$0x7f] %vm4390, %v4301
        %4419 = vst.msk [vmem:[%s302 + $0x99] sm:$0x80] %vm4386, %v4303
        %4420 = vst.msk [vmem:[%s302 + $0xa1] sm:$0xff] %vm4388, %v4305
        %4421 = vst.msk [vmem:[%s302 + $0xa9] sm:$0x7f] %vm4390, %v4307
        %4422 = vst.msk [vmem:[%s302 + $0xa9] sm:$0x80] %vm4386, %v4309
        %4423 = vst.msk [vmem:[%s302 + $0xb1] sm:$0xff] %vm4388, %v4311
        %4424 = vst.msk [vmem:[%s302 + $0xb9] sm:$0x7f] %vm4390, %v4313
        %4425 = vst.msk [vmem:[%s302 + $0xb9] sm:$0x80] %vm4386, %v4315
        %4426 = vst.msk [vmem:[%s302 + $0xc1] sm:$0xff] %vm4388, %v4317
        %4427 = vst.msk [vmem:[%s302 + $0xc9] sm:$0x7f] %vm4390, %v4319
        %4428 = vst.msk [vmem:[%s302 + $0xc9] sm:$0x80] %vm4386, %v4321
        %4429 = vst.msk [vmem:[%s302 + $0xd1] sm:$0xff] %vm4388, %v4323
        %4430 = vst.msk [vmem:[%s302 + $0xd9] sm:$0x7f] %vm4390, %v4325
        %4431 = vst.msk [vmem:[%s302 + $0xd9] sm:$0x80] %vm4386, %v4327
        %4432 = vst.msk [vmem:[%s302 + $0xe1] sm:$0xff] %vm4388, %v4329
        %4433 = vst.msk [vmem:[%s302 + $0xe9] sm:$0x7f] %vm4390, %v4331
        %4434 = vst.msk [vmem:[%s302 + $0xe9] sm:$0x80] %vm4386, %v4333
        %4435 = vst.msk [vmem:[%s302 + $0xf1] sm:$0xff] %vm4388, %v4335
        %4436 = vst.msk [vmem:[%s302 + $0xf9] sm:$0x7f] %vm4390, %v4337
        %4485 = vrot.lane.b32.xlu0 %v4146, 64
        %v4486 = vpop.permute.xlu0 %4485
        %4487 = vrot.lane.b32.xlu0 %v4147, 64
        %v4488 = vpop.permute.xlu0 %4487
        %4489 = vrot.lane.b32.xlu0 %v4148, 64
        %v4490 = vpop.permute.xlu0 %4489
        %4491 = vrot.lane.b32.xlu0 %v4149, 64
        %v4492 = vpop.permute.xlu0 %4491
        %4493 = vrot.lane.b32.xlu0 %v4150, 64
        %v4494 = vpop.permute.xlu0 %4493
        %4495 = vrot.lane.b32.xlu0 %v4151, 64
        %v4496 = vpop.permute.xlu0 %4495
        %4497 = vrot.lane.b32.xlu0 %v4152, 64
        %v4498 = vpop.permute.xlu0 %4497
        %4499 = vrot.lane.b32.xlu0 %v4153, 64
        %v4500 = vpop.permute.xlu0 %4499
        %4501 = vrot.lane.b32.xlu0 %v4154, 64
        %v4502 = vpop.permute.xlu0 %4501
        %4503 = vrot.lane.b32.xlu0 %v4155, 64
        %v4504 = vpop.permute.xlu0 %4503
        %4505 = vrot.lane.b32.xlu0 %v4156, 64
        %v4506 = vpop.permute.xlu0 %4505
        %4507 = vrot.lane.b32.xlu0 %v4157, 64
        %v4508 = vpop.permute.xlu0 %4507
        %4509 = vrot.lane.b32.xlu0 %v4158, 64
        %v4510 = vpop.permute.xlu0 %4509
        %4511 = vrot.lane.b32.xlu0 %v4159, 64
        %v4512 = vpop.permute.xlu0 %4511
        %4513 = vrot.lane.b32.xlu0 %v4160, 64
        %v4514 = vpop.permute.xlu0 %4513
        %4515 = vrot.lane.b32.xlu0 %v4161, 64
        %v4516 = vpop.permute.xlu0 %4515
        %4517 = vrot.lane.b32.xlu0 %v4162, 64
        %v4518 = vpop.permute.xlu0 %4517
        %4519 = vrot.lane.b32.xlu0 %v4163, 64
        %v4520 = vpop.permute.xlu0 %4519
        %4521 = vrot.lane.b32.xlu0 %v4164, 64
        %v4522 = vpop.permute.xlu0 %4521
        %4523 = vrot.lane.b32.xlu0 %v4165, 64
        %v4524 = vpop.permute.xlu0 %4523
        %4525 = vrot.lane.b32.xlu0 %v4166, 64
        %v4526 = vpop.permute.xlu0 %4525
        %4527 = vrot.lane.b32.xlu0 %v4167, 64
        %v4528 = vpop.permute.xlu0 %4527
        %4529 = vrot.lane.b32.xlu0 %v4168, 64
        %v4530 = vpop.permute.xlu0 %4529
        %4531 = vrot.lane.b32.xlu0 %v4169, 64
        %v4532 = vpop.permute.xlu0 %4531
        %4533 = vrot.lane.b32.xlu0 %v4170, 64
        %v4534 = vpop.permute.xlu0 %4533
        %4535 = vrot.lane.b32.xlu0 %v4171, 64
        %v4536 = vpop.permute.xlu0 %4535
        %4537 = vrot.lane.b32.xlu0 %v4172, 64
        %v4538 = vpop.permute.xlu0 %4537
        %4539 = vrot.lane.b32.xlu0 %v4173, 64
        %v4540 = vpop.permute.xlu0 %4539
        %4541 = vrot.lane.b32.xlu0 %v4174, 64
        %v4542 = vpop.permute.xlu0 %4541
        %4543 = vrot.lane.b32.xlu0 %v4175, 64
        %v4544 = vpop.permute.xlu0 %4543
        %4545 = vrot.lane.b32.xlu0 %v4176, 64
        %v4546 = vpop.permute.xlu0 %4545
        %4547 = vrot.lane.b32.xlu0 %v4177, 64
        %v4548 = vpop.permute.xlu0 %4547
        %4549 = vrot.lane.b32.xlu0 %v4178, 64
        %v4550 = vpop.permute.xlu0 %4549
        %4551 = vrot.lane.b32.xlu0 %v4179, 64
        %v4552 = vpop.permute.xlu0 %4551
        %4553 = vrot.lane.b32.xlu0 %v4180, 64
        %v4554 = vpop.permute.xlu0 %4553
        %4555 = vrot.lane.b32.xlu0 %v4181, 64
        %v4556 = vpop.permute.xlu0 %4555
        %4557 = vrot.lane.b32.xlu0 %v4182, 64
        %v4558 = vpop.permute.xlu0 %4557
        %4559 = vrot.lane.b32.xlu0 %v4183, 64
        %v4560 = vpop.permute.xlu0 %4559
        %4561 = vrot.lane.b32.xlu0 %v4184, 64
        %v4562 = vpop.permute.xlu0 %4561
        %4563 = vrot.lane.b32.xlu0 %v4185, 64
        %v4564 = vpop.permute.xlu0 %4563
        %4565 = vrot.lane.b32.xlu0 %v4186, 64
        %v4566 = vpop.permute.xlu0 %4565
        %4567 = vrot.lane.b32.xlu0 %v4187, 64
        %v4568 = vpop.permute.xlu0 %4567
        %4569 = vrot.lane.b32.xlu0 %v4188, 64
        %v4570 = vpop.permute.xlu0 %4569
        %4571 = vrot.lane.b32.xlu0 %v4189, 64
        %v4572 = vpop.permute.xlu0 %4571
        %4573 = vrot.lane.b32.xlu0 %v4190, 64
        %v4574 = vpop.permute.xlu0 %4573
        %4575 = vrot.lane.b32.xlu0 %v4191, 64
        %v4576 = vpop.permute.xlu0 %4575
        %4577 = vrot.lane.b32.xlu0 %v4192, 64
        %v4578 = vpop.permute.xlu0 %4577
        %4579 = vrot.lane.b32.xlu0 %v4193, 64
        %v4580 = vpop.permute.xlu0 %4579
        %4629 = vst.msk [vmem:[%s275 - $0x7] sm:$0x80] %vm4386, %v4486
        %4630 = vst.msk [vmem:[%s275 + $0x1] sm:$0xff] %vm4388, %v4488
        %4631 = vst.msk [vmem:[%s275 + $0x9] sm:$0x7f] %vm4390, %v4490
        %4632 = vst.msk [vmem:[%s275 + $0x9] sm:$0x80] %vm4386, %v4492
        %4633 = vst.msk [vmem:[%s275 + $0x11] sm:$0xff] %vm4388, %v4494
        %4634 = vst.msk [vmem:[%s275 + $0x19] sm:$0x7f] %vm4390, %v4496
        %4635 = vst.msk [vmem:[%s275 + $0x19] sm:$0x80] %vm4386, %v4498
        %4636 = vst.msk [vmem:[%s275 + $0x21] sm:$0xff] %vm4388, %v4500
        %4637 = vst.msk [vmem:[%s275 + $0x29] sm:$0x7f] %vm4390, %v4502
        %4638 = vst.msk [vmem:[%s275 + $0x29] sm:$0x80] %vm4386, %v4504
        %4639 = vst.msk [vmem:[%s275 + $0x31] sm:$0xff] %vm4388, %v4506
        %4640 = vst.msk [vmem:[%s275 + $0x39] sm:$0x7f] %vm4390, %v4508
        %4641 = vst.msk [vmem:[%s275 + $0x39] sm:$0x80] %vm4386, %v4510
        %4642 = vst.msk [vmem:[%s275 + $0x41] sm:$0xff] %vm4388, %v4512
        %4643 = vst.msk [vmem:[%s275 + $0x49] sm:$0x7f] %vm4390, %v4514
        %4644 = vst.msk [vmem:[%s275 + $0x49] sm:$0x80] %vm4386, %v4516
        %4645 = vst.msk [vmem:[%s275 + $0x51] sm:$0xff] %vm4388, %v4518
        %4646 = vst.msk [vmem:[%s275 + $0x59] sm:$0x7f] %vm4390, %v4520
        %4647 = vst.msk [vmem:[%s275 + $0x59] sm:$0x80] %vm4386, %v4522
        %4648 = vst.msk [vmem:[%s275 + $0x61] sm:$0xff] %vm4388, %v4524
        %4649 = vst.msk [vmem:[%s275 + $0x69] sm:$0x7f] %vm4390, %v4526
        %4650 = vst.msk [vmem:[%s275 + $0x69] sm:$0x80] %vm4386, %v4528
        %4651 = vst.msk [vmem:[%s275 + $0x71] sm:$0xff] %vm4388, %v4530
        %4652 = vst.msk [vmem:[%s275 + $0x79] sm:$0x7f] %vm4390, %v4532
        %4653 = vst.msk [vmem:[%s275 + $0x79] sm:$0x80] %vm4386, %v4534
        %4654 = vst.msk [vmem:[%s275 + $0x81] sm:$0xff] %vm4388, %v4536
        %4655 = vst.msk [vmem:[%s275 + $0x89] sm:$0x7f] %vm4390, %v4538
        %4656 = vst.msk [vmem:[%s275 + $0x89] sm:$0x80] %vm4386, %v4540
        %4657 = vst.msk [vmem:[%s275 + $0x91] sm:$0xff] %vm4388, %v4542
        %4658 = vst.msk [vmem:[%s275 + $0x99] sm:$0x7f] %vm4390, %v4544
        %4659 = vst.msk [vmem:[%s275 + $0x99] sm:$0x80] %vm4386, %v4546
        %4660 = vst.msk [vmem:[%s275 + $0xa1] sm:$0xff] %vm4388, %v4548
        %4661 = vst.msk [vmem:[%s275 + $0xa9] sm:$0x7f] %vm4390, %v4550
        %4662 = vst.msk [vmem:[%s275 + $0xa9] sm:$0x80] %vm4386, %v4552
        %4663 = vst.msk [vmem:[%s275 + $0xb1] sm:$0xff] %vm4388, %v4554
        %4664 = vst.msk [vmem:[%s275 + $0xb9] sm:$0x7f] %vm4390, %v4556
        %4665 = vst.msk [vmem:[%s275 + $0xb9] sm:$0x80] %vm4386, %v4558
        %4666 = vst.msk [vmem:[%s275 + $0xc1] sm:$0xff] %vm4388, %v4560
        %4667 = vst.msk [vmem:[%s275 + $0xc9] sm:$0x7f] %vm4390, %v4562
        %4668 = vst.msk [vmem:[%s275 + $0xc9] sm:$0x80] %vm4386, %v4564
        %4669 = vst.msk [vmem:[%s275 + $0xd1] sm:$0xff] %vm4388, %v4566
        %4670 = vst.msk [vmem:[%s275 + $0xd9] sm:$0x7f] %vm4390, %v4568
        %4671 = vst.msk [vmem:[%s275 + $0xd9] sm:$0x80] %vm4386, %v4570
        %4672 = vst.msk [vmem:[%s275 + $0xe1] sm:$0xff] %vm4388, %v4572
        %4673 = vst.msk [vmem:[%s275 + $0xe9] sm:$0x7f] %vm4390, %v4574
        %4674 = vst.msk [vmem:[%s275 + $0xe9] sm:$0x80] %vm4386, %v4576
        %4675 = vst.msk [vmem:[%s275 + $0xf1] sm:$0xff] %vm4388, %v4578
        %4676 = vst.msk [vmem:[%s275 + $0xf9] sm:$0x7f] %vm4390, %v4580
        %s4677 = sand.u32 %s149, 1
        %s4678 = scalar_lea.sflag [#allocation4], %s4677
        %s4679 = sand.u32 %s149, 1
        %s4680 = smul.addr %s4679, 256
        %s4681 = scalar_lea.vmem [#allocation3], %s4680
        %p4682 = scmp.lt.s32.totalorder %s21, 1
        %s4683 = scalar_select %p4682, %s21, 1
        %s4684 = smul.addr %s4683, 32
        %s4685 = smul.addr %s4684, 8
        %s4686 = scalar_lea.vmem %s6, %s4685
        // Predicated region
        $region41: #{convlstm_cell_forward.1} parent=39 // pred_check
          %p4687 = pneg %p159
        $region42: #{convlstm_cell_forward.1} parent=39 // pred_check_branch
          %4689 = sbr.rel (%p4687) target = $region44
        $region43: #{convlstm_cell_forward.1} parent=39 // pred_region
          %s4691 = ssub.s32 4096, 4096
          %4692 = vsyncadd %s4678, %s4691
          %s4693 = smul.addr %s21, 32
          %s4694 = smul.addr %s4693, 128
          %s4695 = scalar_lea.hbm %s5, %s4694
          %s4696 = sshll.u32 %s4681, 4
          %s4697 = int_to_ptr.vmem [resolvable:$true] %s4696
          %4702 = dma.vmem_to_hbm [thread:$0]  %s4697, 4096, %s4695, %s4678, 128, 128, 8
        $region44: #{convlstm_cell_forward.1} parent=39 // pred_fallthru
          _
        // Predicated region
        $region45: #{convlstm_cell_forward.1} parent=39 // pred_check
          %p4703 = pneg %p185
        $region46: #{convlstm_cell_forward.1} parent=39 // pred_check_branch
          %4705 = sbr.rel (%p4703) target = $region48
        $region47: #{convlstm_cell_forward.1} parent=39 // pred_region
          _
        $region48: #{convlstm_cell_forward.1} parent=39 // pred_fallthru
          _
      $region40: #{convlstm_cell_forward.1} parent=5 // pred_fallthru
        _
      %p4706 = scmp.le.s32.totalorder 2, %s16
      // Predicated region
      $region49: #{convlstm_cell_forward.1} parent=5 // pred_check
        %p4707 = pneg %p4706
      $region50: #{convlstm_cell_forward.1} parent=5 // pred_check_branch
        %4709 = sbr.rel (%p4707) target = $region52
      $region51: #{convlstm_cell_forward.1} parent=5 // pred_region
        %s4710 = ssub.s32 %s16, 2
        // Predicated region
        $region53: #{convlstm_cell_forward.1} parent=51 // pred_check
          %p4711 = pneg %p165
        $region54: #{convlstm_cell_forward.1} parent=51 // pred_check_branch
          %4713 = sbr.rel (%p4711) target = $region56
        $region55: #{convlstm_cell_forward.1} parent=51 // pred_region
          %s4714 = sand.u32 %s150, 1
          %s4715 = scalar_lea.sflag [#allocation4], %s4714
          %s4716 = sand.u32 %s150, 1
          %s4717 = smul.addr %s4716, 256
          %s4718 = scalar_lea.vmem [#allocation3], %s4717
          %4719 = dma.done %s4715, 4096
        $region56: #{convlstm_cell_forward.1} parent=51 // pred_fallthru
          _
        // Predicated region
        $region57: #{convlstm_cell_forward.1} parent=51 // pred_check
          %p4720 = pneg %p191
        $region58: #{convlstm_cell_forward.1} parent=51 // pred_check_branch
          %4722 = sbr.rel (%p4720) target = $region60
        $region59: #{convlstm_cell_forward.1} parent=51 // pred_region
          %p4723 = scmp.lt.s32.totalorder %s22, 1
          %s4724 = scalar_select %p4723, %s22, 1
          %s4725 = smul.addr %s4724, 32
          %s4726 = smul.addr %s4725, 8
          %s4727 = scalar_lea.vmem %s6, %s4726
        $region60: #{convlstm_cell_forward.1} parent=51 // pred_fallthru
          _
      $region52: #{convlstm_cell_forward.1} parent=5 // pred_fallthru
        _
    $region6: #{convlstm_cell_forward.1} parent=1 // loop_footer
      %s20 = sadd.s32 1, %s16
    $region7: #{convlstm_cell_forward.1} parent=1 // loop_footer_branch
      %15 = sbr.rel target = $region3
    $region8: #{convlstm_cell_forward.1} parent=1 // loop_exit
      _
    %4728 = vsyncpa [#allocation4], 1
    %s4729 = scalar_lea.sflag [#allocation4], 1
    %4730 = vsyncpa %s4729, 1

</llo_original>
